<compile_context>
chip_gen: v6e
topology: v6e:2x2x1
jax: 0.10.0
libtpu: 0.0.40
codegen_flags: <defaults>
</compile_context>

<pallas_src>
import functools
import math

import jax
import jax.numpy as jnp
from jax.experimental import pallas as pl
from jax.experimental.pallas import tpu as pltpu


# ------------------------------------------------------------------ VMEM / tiling helpers
def _vmem_budget_bytes():
    """Generation-aware VMEM budget (v5e/v6e: 128 MiB, v7x: 64 MiB physical)."""
    cap = 64 << 20
    try:
        info = pltpu.get_tpu_info()
        cap = int(getattr(info, "vmem_capacity_bytes", cap))
    except Exception:
        pass
    # ~3/4 of physical, capped, leaving headroom for compiler scratch / DMA.
    return max(16 << 20, min((cap * 3) // 4, 96 << 20))


def _pick_tm(m, row_bytes, fixed_bytes, budget):
    """Largest row tile dividing m (multiple of 16 -> safe for bf16 sublane
    packing too) whose fully-accounted VMEM footprint fits the budget."""
    for tm in (1024, 512, 256, 128, 64, 32, 16):
        if tm <= m and m % tm == 0 and fixed_bytes + tm * row_bytes <= budget:
            return tm
    return m                      # full extent is always a legal block shape


def _pick_tn(n):
    """Output-feature tile: full if small, else a multiple of 128 (lane rule)."""
    if n <= 512:
        return n
    for tn in (512, 384, 256, 128):
        if n % tn == 0:
            return tn
    return n


def _pick_seq_tile(s, cap=128):
    if s <= cap:
        return s
    for t in (cap, 64, 32, 16):
        if s % t == 0:
            return t
    return s


# ------------------------------------------------------------------ kernels
def _linear_kernel(x_ref, w_ref, b_ref, o_ref, *, activation):
    # Operands go to the MXU in their stored dtype; accumulate in f32.
    y = jnp.dot(x_ref[...], w_ref[...], preferred_element_type=jnp.float32)
    y = y + b_ref[...].astype(jnp.float32)          # (1, tn) broadcast
    if activation == "relu":
        y = jnp.maximum(y, 0.0)
    o_ref[...] = y.astype(o_ref.dtype)


def _flash_attention_kernel(q_ref, k_ref, v_ref, o_ref, m_sc, l_sc, acc_sc, *, scale):
    ki = pl.program_id(3)

    @pl.when(ki == 0)
    def _():
        m_sc[...] = jnp.full(m_sc.shape, -jnp.inf, m_sc.dtype)
        l_sc[...] = jnp.zeros(l_sc.shape, l_sc.dtype)
        acc_sc[...] = jnp.zeros(acc_sc.shape, acc_sc.dtype)

    q = q_ref[...] * scale                          # fold 1/sqrt(Dh) into q
    # q @ k^T without an explicit transpose (contract last dims).
    s = jax.lax.dot_general(q, k_ref[...], (((1,), (1,)), ((), ())),
                            preferred_element_type=jnp.float32)   # (tq, tk)
    m_prev = m_sc[...]
    m_new = jnp.maximum(m_prev, jnp.max(s, axis=-1, keepdims=True))
    alpha = jnp.exp(m_prev - m_new)
    p = jnp.exp(s - m_new)
    l_sc[...] = alpha * l_sc[...] + jnp.sum(p, axis=-1, keepdims=True)
    acc_sc[...] = alpha * acc_sc[...] + jnp.dot(
        p.astype(v_ref.dtype), v_ref[...], preferred_element_type=jnp.float32)
    m_sc[...] = m_new

    @pl.when(ki == pl.num_programs(3) - 1)
    def _():
        o_ref[...] = (acc_sc[...] *
                      pl.reciprocal(l_sc[...], approx=True)).astype(o_ref.dtype)


def _linear_res_ln_kernel(x_ref, w_ref, b_ref, r_ref, g_ref, bt_ref, o_ref,
                          acc_ref, *, eps):
    g = pl.program_id(1)

    @pl.when(g == 0)
    def _():
        acc_ref[...] = jnp.zeros(acc_ref.shape, acc_ref.dtype)

    acc_ref[...] += jnp.dot(x_ref[...], w_ref[...],
                            preferred_element_type=jnp.float32)

    @pl.when(g == pl.num_programs(1) - 1)
    def _():
        h = (acc_ref[...] + b_ref[...].astype(jnp.float32)
             + r_ref[...].astype(jnp.float32))                 # fused residual
        mu = jnp.mean(h, axis=-1, keepdims=True)
        cen = h - mu
        var = jnp.mean(cen * cen, axis=-1, keepdims=True)
        y = cen * jax.lax.rsqrt(var + eps)
        y = y * g_ref[...].astype(jnp.float32) + bt_ref[...].astype(jnp.float32)
        o_ref[...] = y.astype(o_ref.dtype)


# ------------------------------------------------------------------ wrappers
def pallas_linear(x, w_blk, b_blk, activation=None):
    """y = x @ W + b (optional ReLU); W pre-blocked as (NB, K, tn), b as (NB, 1, tn)."""
    m, k = x.shape
    nb, k2, tn = w_blk.shape
    assert k == k2
    n = nb * tn
    itemsize = x.dtype.itemsize
    budget = _vmem_budget_bytes()
    fixed = 2 * (k * tn + tn) * itemsize + (2 << 20)
    row_bytes = 2 * (k + tn) * itemsize
    tm = _pick_tm(m, row_bytes, fixed, int(budget * 0.8))
    return pl.pallas_call(
        functools.partial(_linear_kernel, activation=activation),
        out_shape=jax.ShapeDtypeStruct((m, n), x.dtype),
        grid=(m // tm, nb),                     # inner axis = N blocks -> x tile reused
        in_specs=[
            pl.BlockSpec((tm, k), lambda i, j: (i, 0)),
            pl.BlockSpec((None, k, tn), lambda i, j: (j, 0, 0)),
            pl.BlockSpec((None, 1, tn), lambda i, j: (j, 0, 0)),
        ],
        out_specs=pl.BlockSpec((tm, tn), lambda i, j: (i, j)),
        compiler_params=pltpu.CompilerParams(
            dimension_semantics=("parallel", "parallel"),
            vmem_limit_bytes=budget),
    )(x, w_blk, b_blk)


def pallas_qkv(x, w_hm, b_hm):
    """Fused Q/K/V projection writing a head-major (3H, M, Dh) output directly."""
    m, d = x.shape
    nb, d2, dh = w_hm.shape                     # nb = 3 * num_heads
    assert d == d2
    itemsize = x.dtype.itemsize
    budget = _vmem_budget_bytes()
    fixed = 2 * (d * dh + dh) * itemsize + (2 << 20)
    row_bytes = 2 * (d + dh) * itemsize
    tm = _pick_tm(m, row_bytes, fixed, int(budget * 0.8))
    return pl.pallas_call(
        functools.partial(_linear_kernel, activation=None),
        out_shape=jax.ShapeDtypeStruct((nb, m, dh), x.dtype),
        grid=(m // tm, nb),
        in_specs=[
            pl.BlockSpec((tm, d), lambda i, j: (i, 0)),
            pl.BlockSpec((None, d, dh), lambda i, j: (j, 0, 0)),
            pl.BlockSpec((None, 1, dh), lambda i, j: (j, 0, 0)),
        ],
        out_specs=pl.BlockSpec((None, tm, dh), lambda i, j: (j, i, 0)),
        compiler_params=pltpu.CompilerParams(
            dimension_semantics=("parallel", "parallel"),
            vmem_limit_bytes=budget),
    )(x, w_hm, b_hm)


def pallas_flash_attention(qkv, batch, seq, num_heads):
    """Online-softmax attention over a head-major (3H, B*S, Dh) qkv tensor."""
    three_h, m, dh = qkv.shape
    nh = num_heads
    assert three_h == 3 * nh and m == batch * seq
    scale = 1.0 / math.sqrt(dh)
    tq = _pick_seq_tile(seq)
    tk = _pick_seq_tile(seq)
    nq, nk = seq // tq, seq // tk
    budget = _vmem_budget_bytes()
    q_spec = pl.BlockSpec((None, tq, dh), lambda b, hd, qi, ki: (hd, b * nq + qi, 0))
    k_spec = pl.BlockSpec((None, tk, dh), lambda b, hd, qi, ki: (nh + hd, b * nk + ki, 0))
    v_spec = pl.BlockSpec((None, tk, dh), lambda b, hd, qi, ki: (2 * nh + hd, b * nk + ki, 0))
    o_spec = pl.BlockSpec((None, tq, dh), lambda b, hd, qi, ki: (hd, b * nq + qi, 0))
    return pl.pallas_call(
        functools.partial(_flash_attention_kernel, scale=scale),
        out_shape=jax.ShapeDtypeStruct((nh, m, dh), qkv.dtype),
        grid=(batch, nh, nq, nk),
        in_specs=[q_spec, k_spec, v_spec],
        out_specs=o_spec,
        scratch_shapes=[pltpu.VMEM((tq, 1), jnp.float32),
                        pltpu.VMEM((tq, 1), jnp.float32),
                        pltpu.VMEM((tq, dh), jnp.float32)],
        compiler_params=pltpu.CompilerParams(
            dimension_semantics=("parallel", "parallel", "parallel", "arbitrary"),
            vmem_limit_bytes=budget),
    )(qkv, qkv, qkv)


def pallas_linear_res_ln(x_grp, w_grp, b, residual, gamma, beta, eps=1e-5):
    """LayerNorm(residual + x_grp . w_grp + b) * gamma + beta.
    x_grp: (G, M, Kb) grouped-K activations (attention heads, or G=1 for FF2);
    w_grp: (G, Kb, D)."""
    g_blocks, m, kb = x_grp.shape
    _, _, d = w_grp.shape
    itemsize = residual.dtype.itemsize
    budget = _vmem_budget_bytes()
    fixed = 2 * (kb * d) * itemsize + 12 * d + (2 << 20)
    row_bytes = 2 * (kb + 2 * d) * itemsize + 4 * d     # x + res + out (x2) + f32 acc
    tm = _pick_tm(m, row_bytes, fixed, int(budget * 0.8))
    return pl.pallas_call(
        functools.partial(_linear_res_ln_kernel, eps=eps),
        out_shape=jax.ShapeDtypeStruct((m, d), residual.dtype),
        grid=(m // tm, g_blocks),
        in_specs=[
            pl.BlockSpec((None, tm, kb), lambda i, g: (g, i, 0)),
            pl.BlockSpec((None, kb, d), lambda i, g: (g, 0, 0)),
            pl.BlockSpec((1, d), lambda i, g: (0, 0)),
            pl.BlockSpec((tm, d), lambda i, g: (i, 0)),
            pl.BlockSpec((1, d), lambda i, g: (0, 0)),
            pl.BlockSpec((1, d), lambda i, g: (0, 0)),
        ],
        out_specs=pl.BlockSpec((tm, d), lambda i, g: (i, 0)),
        scratch_shapes=[pltpu.VMEM((tm, d), jnp.float32)],
        compiler_params=pltpu.CompilerParams(
            dimension_semantics=("parallel", "arbitrary"),
            vmem_limit_bytes=budget),
    )(x_grp, w_grp, b, residual, gamma, beta)


# ------------------------------------------------------------------ forward
def transformer_encoder_forward(x, prepped, num_heads):
    b, s, _ = x.shape
    m = b * s
    emb_w, emb_b = prepped["emb"]

    h = pallas_linear(x.reshape(m, -1), emb_w, emb_b)            # (M, D)

    for layer in prepped["layers"]:
        # --- self-attention block (post-norm) ---
        qkv = pallas_qkv(h, layer["wqkv"], layer["bqkv"])        # (3H, M, Dh)
        attn = pallas_flash_attention(qkv, b, s, num_heads)      # (H,  M, Dh)
        # Wo projection over the head axis + residual + LayerNorm, fused.
        h = pallas_linear_res_ln(attn, layer["wo"], layer["bo"],
                                 h, layer["g1"], layer["be1"])
        # TODO(synk): dropout layers of TransformerEncoderLayer are identity here
        # (eval-mode forward semantics).

        # --- feed-forward block (post-norm) ---
        ff = pallas_linear(h, layer["w1"], layer["b1"], activation="relu")  # (M, F)
        h = pallas_linear_res_ln(ff[None], layer["w2"], layer["b2"],
                                 h, layer["g2"], layer["be2"])

    return h.reshape(b, s, h.shape[-1])


# ------------------------------------------------------------------ params
def init_params(key, input_size, d_model, num_layers, dim_ff):
    keys = jax.random.split(key, 2 + num_layers)
    sc = 0.1
    params = {
        "emb_w": jax.random.normal(keys[0], (input_size, d_model), jnp.float32) * sc,
        "emb_b": jax.random.normal(keys[1], (d_model,), jnp.float32) * sc,
        "layers": [],
    }
    for l in range(num_layers):
        ks = jax.random.split(keys[2 + l], 12)
        params["layers"].append({
            "wq": jax.random.normal(ks[0], (d_model, d_model), jnp.float32) * sc,
            "bq": jax.random.normal(ks[1], (d_model,), jnp.float32) * sc,
            "wk": jax.random.normal(ks[2], (d_model, d_model), jnp.float32) * sc,
            "bk": jax.random.normal(ks[3], (d_model,), jnp.float32) * sc,
            "wv": jax.random.normal(ks[4], (d_model, d_model), jnp.float32) * sc,
            "bv": jax.random.normal(ks[5], (d_model,), jnp.float32) * sc,
            "wo": jax.random.normal(ks[6], (d_model, d_model), jnp.float32) * sc,
            "bo": jax.random.normal(ks[7], (d_model,), jnp.float32) * sc,
            "w1": jax.random.normal(ks[8], (d_model, dim_ff), jnp.float32) * sc,
            "b1": jax.random.normal(ks[9], (dim_ff,), jnp.float32) * sc,
            "w2": jax.random.normal(ks[10], (dim_ff, d_model), jnp.float32) * sc,
            "b2": jax.random.normal(ks[11], (d_model,), jnp.float32) * sc,
            "g1": jnp.ones((d_model,), jnp.float32),
            "be1": jnp.zeros((d_model,), jnp.float32),
            "g2": jnp.ones((d_model,), jnp.float32),
            "be2": jnp.zeros((d_model,), jnp.float32),
        })
    return params


def prepare_params(params, num_heads, weight_dtype=None):
    """One-time re-layout of weights into the blocked / head-major layouts the
    kernels consume (so the hot path needs no XLA transposes).  Weights may be
    cast to bf16; biases / norm params stay f32 (kernels up-cast them at use)."""
    d_model = params["emb_w"].shape[1]
    dim_ff = params["layers"][0]["w1"].shape[1] if params["layers"] else d_model
    nh = num_heads
    dh = d_model // nh
    wcast = (lambda a: a.astype(weight_dtype)) if weight_dtype is not None else (lambda a: a)

    def blk_linear(w, b):
        k, n = w.shape
        tn = _pick_tn(n)
        nb = n // tn
        w_blk = w.reshape(k, nb, tn).transpose(1, 0, 2)   # (NB, K, tn)
        b_blk = b.reshape(nb, 1, tn)                      # (NB, 1, tn)
        return wcast(w_blk), b_blk

    def per_head(w):                                      # (D, D) -> (H, D, Dh)
        return w.reshape(d_model, nh, dh).transpose(1, 0, 2)

    prepped = {"emb": blk_linear(params["emb_w"], params["emb_b"]), "layers": []}
    for L in params["layers"]:
        wqkv = jnp.concatenate([per_head(L["wq"]), per_head(L["wk"]),
                                per_head(L["wv"])], axis=0)            # (3H, D, Dh)
        bqkv = jnp.concatenate([L["bq"].reshape(nh, 1, dh),
                                L["bk"].reshape(nh, 1, dh),
                                L["bv"].reshape(nh, 1, dh)], axis=0)   # (3H, 1, Dh)
        w1_blk, b1_blk = blk_linear(L["w1"], L["b1"])
        prepped["layers"].append({
            "wqkv": wcast(wqkv), "bqkv": bqkv,
            "wo": wcast(L["wo"].reshape(nh, dh, d_model)),             # grouped K
            "bo": L["bo"].reshape(1, d_model),
            "w1": w1_blk, "b1": b1_blk,
            "w2": wcast(L["w2"].reshape(1, dim_ff, d_model)),
            "b2": L["b2"].reshape(1, d_model),
            "g1": L["g1"].reshape(1, d_model), "be1": L["be1"].reshape(1, d_model),
            "g2": L["g2"].reshape(1, d_model), "be2": L["be2"].reshape(1, d_model),
        })
    return prepped


# ------------------------------------------------------------------ reference
def _layernorm_ref(h, g, b, eps=1e-5):
    mu = jnp.mean(h, axis=-1, keepdims=True)
    var = jnp.mean((h - mu) ** 2, axis=-1, keepdims=True)
    return (h - mu) * jax.lax.rsqrt(var + eps) * g + b


def reference_forward(x, params, num_heads):
    b, s, _ = x.shape
    d_model = params["emb_w"].shape[1]
    dh = d_model // num_heads
    h = x.reshape(b * s, -1) @ params["emb_w"] + params["emb_b"]
    for layer in params["layers"]:
        q = (h @ layer["wq"] + layer["bq"]).reshape(b, s, num_heads, dh).transpose(0, 2, 1, 3)
        k = (h @ layer["wk"] + layer["bk"]).reshape(b, s, num_heads, dh).transpose(0, 2, 1, 3)
        v = (h @ layer["wv"] + layer["bv"]).reshape(b, s, num_heads, dh).transpose(0, 2, 1, 3)
        logits = jnp.einsum("bhqd,bhkd->bhqk", q, k) / math.sqrt(dh)
        p = jax.nn.softmax(logits, axis=-1)
        o = jnp.einsum("bhqk,bhkd->bhqd", p, v).transpose(0, 2, 1, 3).reshape(b * s, d_model)
        o = o @ layer["wo"] + layer["bo"]
        h = _layernorm_ref(h + o, layer["g1"], layer["be1"])
        f = jnp.maximum(h @ layer["w1"] + layer["b1"], 0.0)
        f = f @ layer["w2"] + layer["b2"]
        h = _layernorm_ref(h + f, layer["g2"], layer["be2"])
    return h.reshape(b, s, d_model)


# ------------------------------------------------------------------ main
if __name__ == "__main__":
    key = jax.random.PRNGKey(0)
    k_x, k_p = jax.random.split(key)

    batch, seq, input_size = 2, 8, 16
    d_model, num_heads, num_layers, dim_ff = 32, 4, 2, 64

    x = jax.random.normal(k_x, (batch, seq, input_size), dtype=jnp.float32)
    params = init_params(k_p, input_size, d_model, num_layers, dim_ff)

    fwd = jax.jit(functools.partial(transformer_encoder_forward, num_heads=num_heads))

    # --- f32 path: strict check against the pure-JAX reference -------------
    prepped_f32 = prepare_params(params, num_heads)
    out = fwd(x, prepped_f32)
    jax.block_until_ready(out)
    with jax.default_matmul_precision("highest"):
        ref = reference_forward(x, params, num_heads)
    assert out.shape == (batch, seq, d_model)
    assert bool(jnp.all(jnp.isfinite(out)))
    max_diff = float(jnp.max(jnp.abs(out - ref)))
    assert jnp.allclose(out, ref, rtol=2e-2, atol=2e-2), max_diff

    # --- bf16 weight/activation path (native MXU dtype): smoke check -------
    # Use seq=16 so every bf16 tile has a packed-sublane-aligned (>=16) row count.
    seq_bf = 16
    x_bf = jax.random.normal(jax.random.PRNGKey(1), (batch, seq_bf, input_size),
                             dtype=jnp.float32)
    prepped_bf16 = prepare_params(params, num_heads, weight_dtype=jnp.bfloat16)
    out_bf = fwd(x_bf.astype(jnp.bfloat16), prepped_bf16)
    jax.block_until_ready(out_bf)
    ref_bf = reference_forward(x_bf, params, num_heads)
    out_bf32 = out_bf.astype(jnp.float32)
    assert out_bf.shape == (batch, seq_bf, d_model)
    assert bool(jnp.all(jnp.isfinite(out_bf32)))
    assert float(jnp.max(jnp.abs(out_bf32 - ref_bf))) < 0.5

    print("KERNEL_OK")
</pallas_src>

<mosaic_0001>
module attributes {stable_mosaic.version = 11 : i64} {
  func.func @_linear_kernel(%arg0: i32, %arg1: i32, %arg2: memref<16x16xf32, #tpu.memory_space<vmem>>, %arg3: memref<1x16x32xf32, #tpu.memory_space<vmem>>, %arg4: memref<1x1x32xf32, #tpu.memory_space<vmem>>, %arg5: memref<16x32xf32, #tpu.memory_space<vmem>>) attributes {dimension_semantics = [#tpu.dimension_semantics<parallel>, #tpu.dimension_semantics<parallel>], iteration_bounds = array<i64: 1, 1>, scalar_prefetch = 0 : i64, scratch_operands = 0 : i64, tpu.core_type = #tpu.core_type<tc>, window_params = [{transform_indices = @transform_0, window_bounds = array<i64: 16, 16>}, {transform_indices = @transform_1, window_bounds = array<i64: 1, 16, 32>}, {transform_indices = @transform_2, window_bounds = array<i64: 1, 1, 32>}, {transform_indices = @transform_3, window_bounds = array<i64: 16, 32>}]} {
    %c0 = arith.constant 0 : index
    %c0_0 = arith.constant 0 : index
    %0 = vector.load %arg2[%c0, %c0_0] : memref<16x16xf32, #tpu.memory_space<vmem>>, vector<16x16xf32>
    %c0_1 = arith.constant 0 : index
    %c0_2 = arith.constant 0 : index
    %c0_3 = arith.constant 0 : index
    %1 = vector.load %arg3[%c0_1, %c0_2, %c0_3] : memref<1x16x32xf32, #tpu.memory_space<vmem>>, vector<1x16x32xf32>
    %2 = vector.shape_cast %1 : vector<1x16x32xf32> to vector<16x32xf32>
    %cst = arith.constant dense<0.000000e+00> : vector<16x32xf32>
    %3 = tpu.matmul %0, %2, %cst {dimension_numbers = #tpu.dot_dimension_numbers<[1], [0], [0], [1], [0, 0, 1, 1], [], []>} : vector<16x16xf32>, vector<16x32xf32>, vector<16x32xf32> -> vector<16x32xf32>
    %c0_4 = arith.constant 0 : index
    %c0_5 = arith.constant 0 : index
    %c0_6 = arith.constant 0 : index
    %4 = vector.load %arg4[%c0_4, %c0_5, %c0_6] : memref<1x1x32xf32, #tpu.memory_space<vmem>>, vector<1x1x32xf32>
    %5 = vector.shape_cast %4 : vector<1x1x32xf32> to vector<1x32xf32>
    %6 = vector.broadcast %5 : vector<1x32xf32> to vector<16x32xf32>
    %7 = arith.addf %3, %6 : vector<16x32xf32>
    %c0_7 = arith.constant 0 : index
    %c0_8 = arith.constant 0 : index
    %8 = vector.load %arg5[%c0_7, %c0_8] : memref<16x32xf32, #tpu.memory_space<vmem>>, vector<16x32xf32>
    tpu.vector_store %arg5[%c0_7, %c0_8], %7 {strides = array<i32>} : memref<16x32xf32, #tpu.memory_space<vmem>>, vector<16x32xf32>,
    return
  }
  func.func @transform_0(%arg0: i32, %arg1: i32) -> (i32, i32) {
    %c0_i32 = arith.constant 0 : i32
    %c0_i32_0 = arith.constant 0 : i32
    return %arg0, %c0_i32 : i32, i32
  }
  func.func @transform_1(%arg0: i32, %arg1: i32) -> (i32, i32, i32) {
    %c0_i32 = arith.constant 0 : i32
    %c0_i32_0 = arith.constant 0 : i32
    %c0_i32_1 = arith.constant 0 : i32
    return %arg1, %c0_i32, %c0_i32_0 : i32, i32, i32
  }
  func.func @transform_2(%arg0: i32, %arg1: i32) -> (i32, i32, i32) {
    %c0_i32 = arith.constant 0 : i32
    %c0_i32_0 = arith.constant 0 : i32
    %c0_i32_1 = arith.constant 0 : i32
    return %arg1, %c0_i32, %c0_i32_0 : i32, i32, i32
  }
  func.func @transform_3(%arg0: i32, %arg1: i32) -> (i32, i32) {
    %c0_i32 = arith.constant 0 : i32
    return %arg0, %arg1 : i32, i32
  }
}

module attributes {stable_mosaic.version = 11 : i64} {
  func.func @_linear_kernel(%arg0: i32, %arg1: i32, %arg2: memref<16x32xf32, #tpu.memory_space<vmem>>, %arg3: memref<1x32x8xf32, #tpu.memory_space<vmem>>, %arg4: memref<1x1x8xf32, #tpu.memory_space<vmem>>, %arg5: memref<1x16x8xf32, #tpu.memory_space<vmem>>) attributes {dimension_semantics = [#tpu.dimension_semantics<parallel>, #tpu.dimension_semantics<parallel>], iteration_bounds = array<i64: 1, 12>, scalar_prefetch = 0 : i64, scratch_operands = 0 : i64, tpu.core_type = #tpu.core_type<tc>, window_params = [{transform_indices = @transform_0, window_bounds = array<i64: 16, 32>}, {transform_indices = @transform_1, window_bounds = array<i64: 1, 32, 8>}, {transform_indices = @transform_2, window_bounds = array<i64: 1, 1, 8>}, {transform_indices = @transform_3, window_bounds = array<i64: 1, 16, 8>}]} {
    %c0 = arith.constant 0 : index
    %c0_0 = arith.constant 0 : index
    %0 = vector.load %arg2[%c0, %c0_0] : memref<16x32xf32, #tpu.memory_space<vmem>>, vector<16x32xf32>
    %c0_1 = arith.constant 0 : index
    %c0_2 = arith.constant 0 : index
    %c0_3 = arith.constant 0 : index
    %1 = vector.load %arg3[%c0_1, %c0_2, %c0_3] : memref<1x32x8xf32, #tpu.memory_space<vmem>>, vector<1x32x8xf32>
    %2 = vector.shape_cast %1 : vector<1x32x8xf32> to vector<32x8xf32>
    %cst = arith.constant dense<0.000000e+00> : vector<16x8xf32>
    %3 = tpu.matmul %0, %2, %cst {dimension_numbers = #tpu.dot_dimension_numbers<[1], [0], [0], [1], [0, 0, 1, 1], [], []>} : vector<16x32xf32>, vector<32x8xf32>, vector<16x8xf32> -> vector<16x8xf32>
    %c0_4 = arith.constant 0 : index
    %c0_5 = arith.constant 0 : index
    %c0_6 = arith.constant 0 : index
    %4 = vector.load %arg4[%c0_4, %c0_5, %c0_6] : memref<1x1x8xf32, #tpu.memory_space<vmem>>, vector<1x1x8xf32>
    %5 = vector.shape_cast %4 : vector<1x1x8xf32> to vector<1x8xf32>
    %6 = vector.broadcast %5 : vector<1x8xf32> to vector<16x8xf32>
    %7 = arith.addf %3, %6 : vector<16x8xf32>
    %c0_7 = arith.constant 0 : index
    %c0_8 = arith.constant 0 : index
    %c0_9 = arith.constant 0 : index
    %8 = vector.load %arg5[%c0_7, %c0_8, %c0_9] : memref<1x16x8xf32, #tpu.memory_space<vmem>>, vector<1x16x8xf32>
    %9 = vector.shape_cast %8 : vector<1x16x8xf32> to vector<16x8xf32>
    %10 = vector.shape_cast %7 : vector<16x8xf32> to vector<1x16x8xf32>
    tpu.vector_store %arg5[%c0_7, %c0_8, %c0_9], %10 {strides = array<i32>} : memref<1x16x8xf32, #tpu.memory_space<vmem>>, vector<1x16x8xf32>,
    return
  }
  func.func @transform_0(%arg0: i32, %arg1: i32) -> (i32, i32) {
    %c0_i32 = arith.constant 0 : i32
    %c0_i32_0 = arith.constant 0 : i32
    return %arg0, %c0_i32 : i32, i32
  }
  func.func @transform_1(%arg0: i32, %arg1: i32) -> (i32, i32, i32) {
    %c0_i32 = arith.constant 0 : i32
    %c0_i32_0 = arith.constant 0 : i32
    %c0_i32_1 = arith.constant 0 : i32
    return %arg1, %c0_i32, %c0_i32_0 : i32, i32, i32
  }
  func.func @transform_2(%arg0: i32, %arg1: i32) -> (i32, i32, i32) {
    %c0_i32 = arith.constant 0 : i32
    %c0_i32_0 = arith.constant 0 : i32
    %c0_i32_1 = arith.constant 0 : i32
    return %arg1, %c0_i32, %c0_i32_0 : i32, i32, i32
  }
  func.func @transform_3(%arg0: i32, %arg1: i32) -> (i32, i32, i32) {
    %c0_i32 = arith.constant 0 : i32
    %c0_i32_0 = arith.constant 0 : i32
    return %arg1, %arg0, %c0_i32 : i32, i32, i32
  }
}

module attributes {stable_mosaic.version = 11 : i64} {
  func.func @_flash_attention_kernel(%arg0: i32, %arg1: i32, %arg2: i32, %arg3: i32, %arg4: memref<1x8x8xf32, #tpu.memory_space<vmem>>, %arg5: memref<1x8x8xf32, #tpu.memory_space<vmem>>, %arg6: memref<1x8x8xf32, #tpu.memory_space<vmem>>, %arg7: memref<1x8x8xf32, #tpu.memory_space<vmem>>, %arg8: memref<8x1xf32, #tpu.memory_space<vmem>>, %arg9: memref<8x1xf32, #tpu.memory_space<vmem>>, %arg10: memref<8x8xf32, #tpu.memory_space<vmem>>) attributes {dimension_semantics = [#tpu.dimension_semantics<parallel>, #tpu.dimension_semantics<parallel>, #tpu.dimension_semantics<parallel>, #tpu.dimension_semantics<arbitrary>], iteration_bounds = array<i64: 2, 4, 1, 1>, scalar_prefetch = 0 : i64, scratch_operands = 3 : i64, tpu.core_type = #tpu.core_type<tc>, window_params = [{transform_indices = @transform_0, window_bounds = array<i64: 1, 8, 8>}, {transform_indices = @transform_1, window_bounds = array<i64: 1, 8, 8>}, {transform_indices = @transform_2, window_bounds = array<i64: 1, 8, 8>}, {transform_indices = @transform_3, window_bounds = array<i64: 1, 8, 8>}]} {
    %c0_i32 = arith.constant 0 : i32
    %0 = arith.cmpi eq, %arg3, %c0_i32 : i32
    %1 = arith.extui %0 : i1 to i32
    %c0_i32_0 = arith.constant 0 : i32
    %2 = arith.cmpi ne, %1, %c0_i32_0 : i32
    scf.if %2 {
      %cst_27 = arith.constant 0xFF800000 : f32
      %37 = vector.broadcast %cst_27 : f32 to vector<8x1xf32>
      %c0_28 = arith.constant 0 : index
      %c0_29 = arith.constant 0 : index
      %38 = vector.load %arg8[%c0_28, %c0_29] : memref<8x1xf32, #tpu.memory_space<vmem>>, vector<8x1xf32>
      tpu.vector_store %arg8[%c0_28, %c0_29], %37 {strides = array<i32>} : memref<8x1xf32, #tpu.memory_space<vmem>>, vector<8x1xf32>,
      %cst_30 = arith.constant 0.000000e+00 : f32
      %39 = vector.broadcast %cst_30 : f32 to vector<8x1xf32>
      %c0_31 = arith.constant 0 : index
      %c0_32 = arith.constant 0 : index
      %40 = vector.load %arg9[%c0_31, %c0_32] : memref<8x1xf32, #tpu.memory_space<vmem>>, vector<8x1xf32>
      tpu.vector_store %arg9[%c0_31, %c0_32], %39 {strides = array<i32>} : memref<8x1xf32, #tpu.memory_space<vmem>>, vector<8x1xf32>,
      %cst_33 = arith.constant 0.000000e+00 : f32
      %41 = vector.broadcast %cst_33 : f32 to vector<8x8xf32>
      %c0_34 = arith.constant 0 : index
      %c0_35 = arith.constant 0 : index
      %42 = vector.load %arg10[%c0_34, %c0_35] : memref<8x8xf32, #tpu.memory_space<vmem>>, vector<8x8xf32>
      tpu.vector_store %arg10[%c0_34, %c0_35], %41 {strides = array<i32>} : memref<8x8xf32, #tpu.memory_space<vmem>>, vector<8x8xf32>,
    } else {
    }
    %c0 = arith.constant 0 : index
    %c0_1 = arith.constant 0 : index
    %c0_2 = arith.constant 0 : index
    %3 = vector.load %arg4[%c0, %c0_1, %c0_2] : memref<1x8x8xf32, #tpu.memory_space<vmem>>, vector<1x8x8xf32>
    %4 = vector.shape_cast %3 : vector<1x8x8xf32> to vector<8x8xf32>
    %cst = arith.constant 0.353553385 : f32
    %5 = vector.broadcast %cst : f32 to vector<8x8xf32>
    %6 = arith.mulf %4, %5 : vector<8x8xf32>
    %c0_3 = arith.constant 0 : index
    %c0_4 = arith.constant 0 : index
    %c0_5 = arith.constant 0 : index
    %7 = vector.load %arg5[%c0_3, %c0_4, %c0_5] : memref<1x8x8xf32, #tpu.memory_space<vmem>>, vector<1x8x8xf32>
    %8 = vector.shape_cast %7 : vector<1x8x8xf32> to vector<8x8xf32>
    %cst_6 = arith.constant dense<0.000000e+00> : vector<8x8xf32>
    %9 = tpu.matmul %6, %8, %cst_6 {dimension_numbers = #tpu.dot_dimension_numbers<[1], [1], [0], [0], [0, 0, 1, 0], [], []>} : vector<8x8xf32>, vector<8x8xf32>, vector<8x8xf32> -> vector<8x8xf32>
    %c0_7 = arith.constant 0 : index
    %c0_8 = arith.constant 0 : index
    %10 = vector.load %arg8[%c0_7, %c0_8] : memref<8x1xf32, #tpu.memory_space<vmem>>, vector<8x1xf32>
    %cst_9 = arith.constant dense<0xFF800000> : vector<8xf32>
    %11 = vector.multi_reduction <maximumf>, %9, %cst_9 [1] : vector<8x8xf32> to vector<8xf32>
    %12 = vector.shape_cast %11 : vector<8xf32> to vector<8x1xf32>
    %13 = arith.maximumf %10, %12 : vector<8x1xf32>
    %14 = arith.subf %10, %13 : vector<8x1xf32>
    %15 = math.exp %14 : vector<8x1xf32>
    %16 = vector.broadcast %13 : vector<8x1xf32> to vector<8x8xf32>
    %17 = arith.subf %9, %16 : vector<8x8xf32>
    %18 = math.exp %17 : vector<8x8xf32>
    %c0_10 = arith.constant 0 : index
    %c0_11 = arith.constant 0 : index
    %19 = vector.load %arg9[%c0_10, %c0_11] : memref<8x1xf32, #tpu.memory_space<vmem>>, vector<8x1xf32>
    %20 = arith.mulf %15, %19 : vector<8x1xf32>
    %cst_12 = arith.constant dense<0.000000e+00> : vector<8xf32>
    %21 = vector.multi_reduction <add>, %18, %cst_12 [1] : vector<8x8xf32> to vector<8xf32>
    %22 = vector.shape_cast %21 : vector<8xf32> to vector<8x1xf32>
    %23 = arith.addf %20, %22 : vector<8x1xf32>
    %c0_13 = arith.constant 0 : index
    %c0_14 = arith.constant 0 : index
    %24 = vector.load %arg9[%c0_13, %c0_14] : memref<8x1xf32, #tpu.memory_space<vmem>>, vector<8x1xf32>
    tpu.vector_store %arg9[%c0_13, %c0_14], %23 {strides = array<i32>} : memref<8x1xf32, #tpu.memory_space<vmem>>, vector<8x1xf32>,
    %c0_15 = arith.constant 0 : index
    %c0_16 = arith.constant 0 : index
    %25 = vector.load %arg10[%c0_15, %c0_16] : memref<8x8xf32, #tpu.memory_space<vmem>>, vector<8x8xf32>
    %26 = vector.broadcast %15 : vector<8x1xf32> to vector<8x8xf32>
    %27 = arith.mulf %26, %25 : vector<8x8xf32>
    %c0_17 = arith.constant 0 : index
    %c0_18 = arith.constant 0 : index
    %c0_19 = arith.constant 0 : index
    %28 = vector.load %arg6[%c0_17, %c0_18, %c0_19] : memref<1x8x8xf32, #tpu.memory_space<vmem>>, vector<1x8x8xf32>
    %29 = vector.shape_cast %28 : vector<1x8x8xf32> to vector<8x8xf32>
    %cst_20 = arith.constant dense<0.000000e+00> : vector<8x8xf32>
    %30 = tpu.matmul %18, %29, %cst_20 {dimension_numbers = #tpu.dot_dimension_numbers<[1], [0], [0], [1], [0, 0, 1, 1], [], []>} : vector<8x8xf32>, vector<8x8xf32>, vector<8x8xf32> -> vector<8x8xf32>
    %31 = arith.addf %27, %30 : vector<8x8xf32>
    %c0_21 = arith.constant 0 : index
    %c0_22 = arith.constant 0 : index
    %32 = vector.load %arg10[%c0_21, %c0_22] : memref<8x8xf32, #tpu.memory_space<vmem>>, vector<8x8xf32>
    tpu.vector_store %arg10[%c0_21, %c0_22], %31 {strides = array<i32>} : memref<8x8xf32, #tpu.memory_space<vmem>>, vector<8x8xf32>,
    %c0_23 = arith.constant 0 : index
    %c0_24 = arith.constant 0 : index
    %33 = vector.load %arg8[%c0_23, %c0_24] : memref<8x1xf32, #tpu.memory_space<vmem>>, vector<8x1xf32>
    tpu.vector_store %arg8[%c0_23, %c0_24], %13 {strides = array<i32>} : memref<8x1xf32, #tpu.memory_space<vmem>>, vector<8x1xf32>,
    %c0_i32_25 = arith.constant 0 : i32
    %34 = arith.cmpi eq, %arg3, %c0_i32_25 : i32
    %35 = arith.extui %34 : i1 to i32
    %c0_i32_26 = arith.constant 0 : i32
    %36 = arith.cmpi ne, %35, %c0_i32_26 : i32
    scf.if %36 {
      %c0_27 = arith.constant 0 : index
      %c0_28 = arith.constant 0 : index
      %37 = vector.load %arg10[%c0_27, %c0_28] : memref<8x8xf32, #tpu.memory_space<vmem>>, vector<8x8xf32>
      %c0_29 = arith.constant 0 : index
      %c0_30 = arith.constant 0 : index
      %38 = vector.load %arg9[%c0_29, %c0_30] : memref<8x1xf32, #tpu.memory_space<vmem>>, vector<8x1xf32>
      %39 = tpu.reciprocal %38 {approx = true} : vector<8x1xf32> -> vector<8x1xf32>
      %40 = vector.broadcast %39 : vector<8x1xf32> to vector<8x8xf32>
      %41 = arith.mulf %37, %40 : vector<8x8xf32>
      %c0_31 = arith.constant 0 : index
      %c0_32 = arith.constant 0 : index
      %c0_33 = arith.constant 0 : index
      %42 = vector.load %arg7[%c0_31, %c0_32, %c0_33] : memref<1x8x8xf32, #tpu.memory_space<vmem>>, vector<1x8x8xf32>
      %43 = vector.shape_cast %42 : vector<1x8x8xf32> to vector<8x8xf32>
      %44 = vector.shape_cast %41 : vector<8x8xf32> to vector<1x8x8xf32>
      tpu.vector_store %arg7[%c0_31, %c0_32, %c0_33], %44 {strides = array<i32>} : memref<1x8x8xf32, #tpu.memory_space<vmem>>, vector<1x8x8xf32>,
    } else {
    }
    return
  }
  func.func @transform_0(%arg0: i32, %arg1: i32, %arg2: i32, %arg3: i32) -> (i32, i32, i32) {
    %c1_i32 = arith.constant 1 : i32
    %0 = arith.muli %arg0, %c1_i32 : i32
    %1 = arith.addi %0, %arg2 : i32
    %c0_i32 = arith.constant 0 : i32
    %c0_i32_0 = arith.constant 0 : i32
    return %arg1, %1, %c0_i32 : i32, i32, i32
  }
  func.func @transform_1(%arg0: i32, %arg1: i32, %arg2: i32, %arg3: i32) -> (i32, i32, i32) {
    %c4_i32 = arith.constant 4 : i32
    %0 = arith.addi %c4_i32, %arg1 : i32
    %c1_i32 = arith.constant 1 : i32
    %1 = arith.muli %arg0, %c1_i32 : i32
    %2 = arith.addi %1, %arg3 : i32
    %c0_i32 = arith.constant 0 : i32
    %c0_i32_0 = arith.constant 0 : i32
    return %0, %2, %c0_i32 : i32, i32, i32
  }
  func.func @transform_2(%arg0: i32, %arg1: i32, %arg2: i32, %arg3: i32) -> (i32, i32, i32) {
    %c8_i32 = arith.constant 8 : i32
    %0 = arith.addi %c8_i32, %arg1 : i32
    %c1_i32 = arith.constant 1 : i32
    %1 = arith.muli %arg0, %c1_i32 : i32
    %2 = arith.addi %1, %arg3 : i32
    %c0_i32 = arith.constant 0 : i32
    %c0_i32_0 = arith.constant 0 : i32
    return %0, %2, %c0_i32 : i32, i32, i32
  }
  func.func @transform_3(%arg0: i32, %arg1: i32, %arg2: i32, %arg3: i32) -> (i32, i32, i32) {
    %c1_i32 = arith.constant 1 : i32
    %0 = arith.muli %arg0, %c1_i32 : i32
    %1 = arith.addi %0, %arg2 : i32
    %c0_i32 = arith.constant 0 : i32
    %c0_i32_0 = arith.constant 0 : i32
    return %arg1, %1, %c0_i32 : i32, i32, i32
  }
}

module attributes {stable_mosaic.version = 11 : i64} {
  func.func @_linear_res_ln_kernel(%arg0: i32, %arg1: i32, %arg2: memref<1x16x8xf32, #tpu.memory_space<vmem>>, %arg3: memref<1x8x32xf32, #tpu.memory_space<vmem>>, %arg4: memref<1x32xf32, #tpu.memory_space<vmem>>, %arg5: memref<16x32xf32, #tpu.memory_space<vmem>>, %arg6: memref<1x32xf32, #tpu.memory_space<vmem>>, %arg7: memref<1x32xf32, #tpu.memory_space<vmem>>, %arg8: memref<16x32xf32, #tpu.memory_space<vmem>>, %arg9: memref<16x32xf32, #tpu.memory_space<vmem>>) attributes {dimension_semantics = [#tpu.dimension_semantics<parallel>, #tpu.dimension_semantics<arbitrary>], iteration_bounds = array<i64: 1, 4>, scalar_prefetch = 0 : i64, scratch_operands = 1 : i64, tpu.core_type = #tpu.core_type<tc>, window_params = [{transform_indices = @transform_0, window_bounds = array<i64: 1, 16, 8>}, {transform_indices = @transform_1, window_bounds = array<i64: 1, 8, 32>}, {pipeline_mode = #tpu.pipeline_mode<synchronous>, transform_indices = @transform_2, window_bounds = array<i64: 1, 32>}, {transform_indices = @transform_3, window_bounds = array<i64: 16, 32>}, {pipeline_mode = #tpu.pipeline_mode<synchronous>, transform_indices = @transform_4, window_bounds = array<i64: 1, 32>}, {pipeline_mode = #tpu.pipeline_mode<synchronous>, transform_indices = @transform_5, window_bounds = array<i64: 1, 32>}, {transform_indices = @transform_6, window_bounds = array<i64: 16, 32>}]} {
    %c0_i32 = arith.constant 0 : i32
    %0 = arith.cmpi eq, %arg1, %c0_i32 : i32
    %1 = arith.extui %0 : i1 to i32
    %c0_i32_0 = arith.constant 0 : i32
    %2 = arith.cmpi ne, %1, %c0_i32_0 : i32
    scf.if %2 {
      %cst_11 = arith.constant 0.000000e+00 : f32
      %14 = vector.broadcast %cst_11 : f32 to vector<16x32xf32>
      %c0_12 = arith.constant 0 : index
      %c0_13 = arith.constant 0 : index
      %15 = vector.load %arg9[%c0_12, %c0_13] : memref<16x32xf32, #tpu.memory_space<vmem>>, vector<16x32xf32>
      tpu.vector_store %arg9[%c0_12, %c0_13], %14 {strides = array<i32>} : memref<16x32xf32, #tpu.memory_space<vmem>>, vector<16x32xf32>,
    } else {
    }
    %c0 = arith.constant 0 : index
    %c0_1 = arith.constant 0 : index
    %3 = vector.load %arg9[%c0, %c0_1] : memref<16x32xf32, #tpu.memory_space<vmem>>, vector<16x32xf32>
    %c0_2 = arith.constant 0 : index
    %c0_3 = arith.constant 0 : index
    %c0_4 = arith.constant 0 : index
    %4 = vector.load %arg2[%c0_2, %c0_3, %c0_4] : memref<1x16x8xf32, #tpu.memory_space<vmem>>, vector<1x16x8xf32>
    %5 = vector.shape_cast %4 : vector<1x16x8xf32> to vector<16x8xf32>
    %c0_5 = arith.constant 0 : index
    %c0_6 = arith.constant 0 : index
    %c0_7 = arith.constant 0 : index
    %6 = vector.load %arg3[%c0_5, %c0_6, %c0_7] : memref<1x8x32xf32, #tpu.memory_space<vmem>>, vector<1x8x32xf32>
    %7 = vector.shape_cast %6 : vector<1x8x32xf32> to vector<8x32xf32>
    %cst = arith.constant dense<0.000000e+00> : vector<16x32xf32>
    %8 = tpu.matmul %5, %7, %cst {dimension_numbers = #tpu.dot_dimension_numbers<[1], [0], [0], [1], [0, 0, 1, 1], [], []>} : vector<16x8xf32>, vector<8x32xf32>, vector<16x32xf32> -> vector<16x32xf32>
    %9 = arith.addf %3, %8 : vector<16x32xf32>
    %c0_8 = arith.constant 0 : index
    %c0_9 = arith.constant 0 : index
    %10 = vector.load %arg9[%c0_8, %c0_9] : memref<16x32xf32, #tpu.memory_space<vmem>>, vector<16x32xf32>
    tpu.vector_store %arg9[%c0_8, %c0_9], %9 {strides = array<i32>} : memref<16x32xf32, #tpu.memory_space<vmem>>, vector<16x32xf32>,
    %c3_i32 = arith.constant 3 : i32
    %11 = arith.cmpi eq, %arg1, %c3_i32 : i32
    %12 = arith.extui %11 : i1 to i32
    %c0_i32_10 = arith.constant 0 : i32
    %13 = arith.cmpi ne, %12, %c0_i32_10 : i32
    scf.if %13 {
      %c0_11 = arith.constant 0 : index
      %c0_12 = arith.constant 0 : index
      %14 = vector.load %arg9[%c0_11, %c0_12] : memref<16x32xf32, #tpu.memory_space<vmem>>, vector<16x32xf32>
      %c0_13 = arith.constant 0 : index
      %c0_14 = arith.constant 0 : index
      %15 = vector.load %arg4[%c0_13, %c0_14] : memref<1x32xf32, #tpu.memory_space<vmem>>, vector<1x32xf32>
      %16 = vector.broadcast %15 : vector<1x32xf32> to vector<16x32xf32>
      %17 = arith.addf %14, %16 : vector<16x32xf32>
      %c0_15 = arith.constant 0 : index
      %c0_16 = arith.constant 0 : index
      %18 = vector.load %arg5[%c0_15, %c0_16] : memref<16x32xf32, #tpu.memory_space<vmem>>, vector<16x32xf32>
      %19 = arith.addf %17, %18 : vector<16x32xf32>
      %cst_17 = arith.constant dense<0.000000e+00> : vector<16xf32>
      %20 = vector.multi_reduction <add>, %19, %cst_17 [1] : vector<16x32xf32> to vector<16xf32>
      %21 = vector.shape_cast %20 : vector<16xf32> to vector<16x1xf32>
      %cst_18 = arith.constant 3.200000e+01 : f32
      %22 = vector.broadcast %cst_18 : f32 to vector<16x1xf32>
      %23 = arith.divf %21, %22 : vector<16x1xf32>
      %24 = vector.broadcast %23 : vector<16x1xf32> to vector<16x32xf32>
      %25 = arith.subf %19, %24 : vector<16x32xf32>
      %26 = arith.mulf %25, %25 : vector<16x32xf32>
      %cst_19 = arith.constant dense<0.000000e+00> : vector<16xf32>
      %27 = vector.multi_reduction <add>, %26, %cst_19 [1] : vector<16x32xf32> to vector<16xf32>
      %28 = vector.shape_cast %27 : vector<16xf32> to vector<16x1xf32>
      %cst_20 = arith.constant 3.200000e+01 : f32
      %29 = vector.broadcast %cst_20 : f32 to vector<16x1xf32>
      %30 = arith.divf %28, %29 : vector<16x1xf32>
      %cst_21 = arith.constant 9.99999974E-6 : f32
      %31 = vector.broadcast %cst_21 : f32 to vector<16x1xf32>
      %32 = arith.addf %30, %31 : vector<16x1xf32>
      %33 = math.rsqrt %32 : vector<16x1xf32>
      %34 = vector.broadcast %33 : vector<16x1xf32> to vector<16x32xf32>
      %35 = arith.mulf %25, %34 : vector<16x32xf32>
      %c0_22 = arith.constant 0 : index
      %c0_23 = arith.constant 0 : index
      %36 = vector.load %arg6[%c0_22, %c0_23] : memref<1x32xf32, #tpu.memory_space<vmem>>, vector<1x32xf32>
      %37 = vector.broadcast %36 : vector<1x32xf32> to vector<16x32xf32>
      %38 = arith.mulf %35, %37 : vector<16x32xf32>
      %c0_24 = arith.constant 0 : index
      %c0_25 = arith.constant 0 : index
      %39 = vector.load %arg7[%c0_24, %c0_25] : memref<1x32xf32, #tpu.memory_space<vmem>>, vector<1x32xf32>
      %40 = vector.broadcast %39 : vector<1x32xf32> to vector<16x32xf32>
      %41 = arith.addf %38, %40 : vector<16x32xf32>
      %c0_26 = arith.constant 0 : index
      %c0_27 = arith.constant 0 : index
      %42 = vector.load %arg8[%c0_26, %c0_27] : memref<16x32xf32, #tpu.memory_space<vmem>>, vector<16x32xf32>
      tpu.vector_store %arg8[%c0_26, %c0_27], %41 {strides = array<i32>} : memref<16x32xf32, #tpu.memory_space<vmem>>, vector<16x32xf32>,
    } else {
    }
    return
  }
  func.func @transform_0(%arg0: i32, %arg1: i32) -> (i32, i32, i32) {
    %c0_i32 = arith.constant 0 : i32
    %c0_i32_0 = arith.constant 0 : i32
    return %arg1, %arg0, %c0_i32 : i32, i32, i32
  }
  func.func @transform_1(%arg0: i32, %arg1: i32) -> (i32, i32, i32) {
    %c0_i32 = arith.constant 0 : i32
    %c0_i32_0 = arith.constant 0 : i32
    %c0_i32_1 = arith.constant 0 : i32
    return %arg1, %c0_i32, %c0_i32_0 : i32, i32, i32
  }
  func.func @transform_2(%arg0: i32, %arg1: i32) -> (i32, i32) {
    %c0_i32 = arith.constant 0 : i32
    %c0_i32_0 = arith.constant 0 : i32
    %c0_i32_1 = arith.constant 0 : i32
    return %c0_i32, %c0_i32_0 : i32, i32
  }
  func.func @transform_3(%arg0: i32, %arg1: i32) -> (i32, i32) {
    %c0_i32 = arith.constant 0 : i32
    %c0_i32_0 = arith.constant 0 : i32
    return %arg0, %c0_i32 : i32, i32
  }
  func.func @transform_4(%arg0: i32, %arg1: i32) -> (i32, i32) {
    %c0_i32 = arith.constant 0 : i32
    %c0_i32_0 = arith.constant 0 : i32
    %c0_i32_1 = arith.constant 0 : i32
    return %c0_i32, %c0_i32_0 : i32, i32
  }
  func.func @transform_5(%arg0: i32, %arg1: i32) -> (i32, i32) {
    %c0_i32 = arith.constant 0 : i32
    %c0_i32_0 = arith.constant 0 : i32
    %c0_i32_1 = arith.constant 0 : i32
    return %c0_i32, %c0_i32_0 : i32, i32
  }
  func.func @transform_6(%arg0: i32, %arg1: i32) -> (i32, i32) {
    %c0_i32 = arith.constant 0 : i32
    %c0_i32_0 = arith.constant 0 : i32
    return %arg0, %c0_i32 : i32, i32
  }
}

module attributes {stable_mosaic.version = 11 : i64} {
  func.func @_linear_kernel(%arg0: i32, %arg1: i32, %arg2: memref<16x32xf32, #tpu.memory_space<vmem>>, %arg3: memref<1x32x64xf32, #tpu.memory_space<vmem>>, %arg4: memref<1x1x64xf32, #tpu.memory_space<vmem>>, %arg5: memref<16x64xf32, #tpu.memory_space<vmem>>) attributes {dimension_semantics = [#tpu.dimension_semantics<parallel>, #tpu.dimension_semantics<parallel>], iteration_bounds = array<i64: 1, 1>, scalar_prefetch = 0 : i64, scratch_operands = 0 : i64, tpu.core_type = #tpu.core_type<tc>, window_params = [{transform_indices = @transform_0, window_bounds = array<i64: 16, 32>}, {transform_indices = @transform_1, window_bounds = array<i64: 1, 32, 64>}, {transform_indices = @transform_2, window_bounds = array<i64: 1, 1, 64>}, {transform_indices = @transform_3, window_bounds = array<i64: 16, 64>}]} {
    %c0 = arith.constant 0 : index
    %c0_0 = arith.constant 0 : index
    %0 = vector.load %arg2[%c0, %c0_0] : memref<16x32xf32, #tpu.memory_space<vmem>>, vector<16x32xf32>
    %c0_1 = arith.constant 0 : index
    %c0_2 = arith.constant 0 : index
    %c0_3 = arith.constant 0 : index
    %1 = vector.load %arg3[%c0_1, %c0_2, %c0_3] : memref<1x32x64xf32, #tpu.memory_space<vmem>>, vector<1x32x64xf32>
    %2 = vector.shape_cast %1 : vector<1x32x64xf32> to vector<32x64xf32>
    %cst = arith.constant dense<0.000000e+00> : vector<16x64xf32>
    %3 = tpu.matmul %0, %2, %cst {dimension_numbers = #tpu.dot_dimension_numbers<[1], [0], [0], [1], [0, 0, 1, 1], [], []>} : vector<16x32xf32>, vector<32x64xf32>, vector<16x64xf32> -> vector<16x64xf32>
    %c0_4 = arith.constant 0 : index
    %c0_5 = arith.constant 0 : index
    %c0_6 = arith.constant 0 : index
    %4 = vector.load %arg4[%c0_4, %c0_5, %c0_6] : memref<1x1x64xf32, #tpu.memory_space<vmem>>, vector<1x1x64xf32>
    %5 = vector.shape_cast %4 : vector<1x1x64xf32> to vector<1x64xf32>
    %6 = vector.broadcast %5 : vector<1x64xf32> to vector<16x64xf32>
    %7 = arith.addf %3, %6 : vector<16x64xf32>
    %cst_7 = arith.constant 0.000000e+00 : f32
    %8 = vector.broadcast %cst_7 : f32 to vector<16x64xf32>
    %9 = arith.maximumf %7, %8 : vector<16x64xf32>
    %c0_8 = arith.constant 0 : index
    %c0_9 = arith.constant 0 : index
    %10 = vector.load %arg5[%c0_8, %c0_9] : memref<16x64xf32, #tpu.memory_space<vmem>>, vector<16x64xf32>
    tpu.vector_store %arg5[%c0_8, %c0_9], %9 {strides = array<i32>} : memref<16x64xf32, #tpu.memory_space<vmem>>, vector<16x64xf32>,
    return
  }
  func.func @transform_0(%arg0: i32, %arg1: i32) -> (i32, i32) {
    %c0_i32 = arith.constant 0 : i32
    %c0_i32_0 = arith.constant 0 : i32
    return %arg0, %c0_i32 : i32, i32
  }
  func.func @transform_1(%arg0: i32, %arg1: i32) -> (i32, i32, i32) {
    %c0_i32 = arith.constant 0 : i32
    %c0_i32_0 = arith.constant 0 : i32
    %c0_i32_1 = arith.constant 0 : i32
    return %arg1, %c0_i32, %c0_i32_0 : i32, i32, i32
  }
  func.func @transform_2(%arg0: i32, %arg1: i32) -> (i32, i32, i32) {
    %c0_i32 = arith.constant 0 : i32
    %c0_i32_0 = arith.constant 0 : i32
    %c0_i32_1 = arith.constant 0 : i32
    return %arg1, %c0_i32, %c0_i32_0 : i32, i32, i32
  }
  func.func @transform_3(%arg0: i32, %arg1: i32) -> (i32, i32) {
    %c0_i32 = arith.constant 0 : i32
    return %arg0, %arg1 : i32, i32
  }
}

module attributes {stable_mosaic.version = 11 : i64} {
  func.func @_linear_res_ln_kernel(%arg0: i32, %arg1: i32, %arg2: memref<1x16x64xf32, #tpu.memory_space<vmem>>, %arg3: memref<1x64x32xf32, #tpu.memory_space<vmem>>, %arg4: memref<1x32xf32, #tpu.memory_space<vmem>>, %arg5: memref<16x32xf32, #tpu.memory_space<vmem>>, %arg6: memref<1x32xf32, #tpu.memory_space<vmem>>, %arg7: memref<1x32xf32, #tpu.memory_space<vmem>>, %arg8: memref<16x32xf32, #tpu.memory_space<vmem>>, %arg9: memref<16x32xf32, #tpu.memory_space<vmem>>) attributes {dimension_semantics = [#tpu.dimension_semantics<parallel>, #tpu.dimension_semantics<arbitrary>], iteration_bounds = array<i64: 1, 1>, scalar_prefetch = 0 : i64, scratch_operands = 1 : i64, tpu.core_type = #tpu.core_type<tc>, window_params = [{transform_indices = @transform_0, window_bounds = array<i64: 1, 16, 64>}, {transform_indices = @transform_1, window_bounds = array<i64: 1, 64, 32>}, {pipeline_mode = #tpu.pipeline_mode<synchronous>, transform_indices = @transform_2, window_bounds = array<i64: 1, 32>}, {transform_indices = @transform_3, window_bounds = array<i64: 16, 32>}, {pipeline_mode = #tpu.pipeline_mode<synchronous>, transform_indices = @transform_4, window_bounds = array<i64: 1, 32>}, {pipeline_mode = #tpu.pipeline_mode<synchronous>, transform_indices = @transform_5, window_bounds = array<i64: 1, 32>}, {transform_indices = @transform_6, window_bounds = array<i64: 16, 32>}]} {
    %c0_i32 = arith.constant 0 : i32
    %0 = arith.cmpi eq, %arg1, %c0_i32 : i32
    %1 = arith.extui %0 : i1 to i32
    %c0_i32_0 = arith.constant 0 : i32
    %2 = arith.cmpi ne, %1, %c0_i32_0 : i32
    scf.if %2 {
      %cst_12 = arith.constant 0.000000e+00 : f32
      %14 = vector.broadcast %cst_12 : f32 to vector<16x32xf32>
      %c0_13 = arith.constant 0 : index
      %c0_14 = arith.constant 0 : index
      %15 = vector.load %arg9[%c0_13, %c0_14] : memref<16x32xf32, #tpu.memory_space<vmem>>, vector<16x32xf32>
      tpu.vector_store %arg9[%c0_13, %c0_14], %14 {strides = array<i32>} : memref<16x32xf32, #tpu.memory_space<vmem>>, vector<16x32xf32>,
    } else {
    }
    %c0 = arith.constant 0 : index
    %c0_1 = arith.constant 0 : index
    %3 = vector.load %arg9[%c0, %c0_1] : memref<16x32xf32, #tpu.memory_space<vmem>>, vector<16x32xf32>
    %c0_2 = arith.constant 0 : index
    %c0_3 = arith.constant 0 : index
    %c0_4 = arith.constant 0 : index
    %4 = vector.load %arg2[%c0_2, %c0_3, %c0_4] : memref<1x16x64xf32, #tpu.memory_space<vmem>>, vector<1x16x64xf32>
    %5 = vector.shape_cast %4 : vector<1x16x64xf32> to vector<16x64xf32>
    %c0_5 = arith.constant 0 : index
    %c0_6 = arith.constant 0 : index
    %c0_7 = arith.constant 0 : index
    %6 = vector.load %arg3[%c0_5, %c0_6, %c0_7] : memref<1x64x32xf32, #tpu.memory_space<vmem>>, vector<1x64x32xf32>
    %7 = vector.shape_cast %6 : vector<1x64x32xf32> to vector<64x32xf32>
    %cst = arith.constant dense<0.000000e+00> : vector<16x32xf32>
    %8 = tpu.matmul %5, %7, %cst {dimension_numbers = #tpu.dot_dimension_numbers<[1], [0], [0], [1], [0, 0, 1, 1], [], []>} : vector<16x64xf32>, vector<64x32xf32>, vector<16x32xf32> -> vector<16x32xf32>
    %9 = arith.addf %3, %8 : vector<16x32xf32>
    %c0_8 = arith.constant 0 : index
    %c0_9 = arith.constant 0 : index
    %10 = vector.load %arg9[%c0_8, %c0_9] : memref<16x32xf32, #tpu.memory_space<vmem>>, vector<16x32xf32>
    tpu.vector_store %arg9[%c0_8, %c0_9], %9 {strides = array<i32>} : memref<16x32xf32, #tpu.memory_space<vmem>>, vector<16x32xf32>,
    %c0_i32_10 = arith.constant 0 : i32
    %11 = arith.cmpi eq, %arg1, %c0_i32_10 : i32
    %12 = arith.extui %11 : i1 to i32
    %c0_i32_11 = arith.constant 0 : i32
    %13 = arith.cmpi ne, %12, %c0_i32_11 : i32
    scf.if %13 {
      %c0_12 = arith.constant 0 : index
      %c0_13 = arith.constant 0 : index
      %14 = vector.load %arg9[%c0_12, %c0_13] : memref<16x32xf32, #tpu.memory_space<vmem>>, vector<16x32xf32>
      %c0_14 = arith.constant 0 : index
      %c0_15 = arith.constant 0 : index
      %15 = vector.load %arg4[%c0_14, %c0_15] : memref<1x32xf32, #tpu.memory_space<vmem>>, vector<1x32xf32>
      %16 = vector.broadcast %15 : vector<1x32xf32> to vector<16x32xf32>
      %17 = arith.addf %14, %16 : vector<16x32xf32>
      %c0_16 = arith.constant 0 : index
      %c0_17 = arith.constant 0 : index
      %18 = vector.load %arg5[%c0_16, %c0_17] : memref<16x32xf32, #tpu.memory_space<vmem>>, vector<16x32xf32>
      %19 = arith.addf %17, %18 : vector<16x32xf32>
      %cst_18 = arith.constant dense<0.000000e+00> : vector<16xf32>
      %20 = vector.multi_reduction <add>, %19, %cst_18 [1] : vector<16x32xf32> to vector<16xf32>
      %21 = vector.shape_cast %20 : vector<16xf32> to vector<16x1xf32>
      %cst_19 = arith.constant 3.200000e+01 : f32
      %22 = vector.broadcast %cst_19 : f32 to vector<16x1xf32>
      %23 = arith.divf %21, %22 : vector<16x1xf32>
      %24 = vector.broadcast %23 : vector<16x1xf32> to vector<16x32xf32>
      %25 = arith.subf %19, %24 : vector<16x32xf32>
      %26 = arith.mulf %25, %25 : vector<16x32xf32>
      %cst_20 = arith.constant dense<0.000000e+00> : vector<16xf32>
      %27 = vector.multi_reduction <add>, %26, %cst_20 [1] : vector<16x32xf32> to vector<16xf32>
      %28 = vector.shape_cast %27 : vector<16xf32> to vector<16x1xf32>
      %cst_21 = arith.constant 3.200000e+01 : f32
      %29 = vector.broadcast %cst_21 : f32 to vector<16x1xf32>
      %30 = arith.divf %28, %29 : vector<16x1xf32>
      %cst_22 = arith.constant 9.99999974E-6 : f32
      %31 = vector.broadcast %cst_22 : f32 to vector<16x1xf32>
      %32 = arith.addf %30, %31 : vector<16x1xf32>
      %33 = math.rsqrt %32 : vector<16x1xf32>
      %34 = vector.broadcast %33 : vector<16x1xf32> to vector<16x32xf32>
      %35 = arith.mulf %25, %34 : vector<16x32xf32>
      %c0_23 = arith.constant 0 : index
      %c0_24 = arith.constant 0 : index
      %36 = vector.load %arg6[%c0_23, %c0_24] : memref<1x32xf32, #tpu.memory_space<vmem>>, vector<1x32xf32>
      %37 = vector.broadcast %36 : vector<1x32xf32> to vector<16x32xf32>
      %38 = arith.mulf %35, %37 : vector<16x32xf32>
      %c0_25 = arith.constant 0 : index
      %c0_26 = arith.constant 0 : index
      %39 = vector.load %arg7[%c0_25, %c0_26] : memref<1x32xf32, #tpu.memory_space<vmem>>, vector<1x32xf32>
      %40 = vector.broadcast %39 : vector<1x32xf32> to vector<16x32xf32>
      %41 = arith.addf %38, %40 : vector<16x32xf32>
      %c0_27 = arith.constant 0 : index
      %c0_28 = arith.constant 0 : index
      %42 = vector.load %arg8[%c0_27, %c0_28] : memref<16x32xf32, #tpu.memory_space<vmem>>, vector<16x32xf32>
      tpu.vector_store %arg8[%c0_27, %c0_28], %41 {strides = array<i32>} : memref<16x32xf32, #tpu.memory_space<vmem>>, vector<16x32xf32>,
    } else {
    }
    return
  }
  func.func @transform_0(%arg0: i32, %arg1: i32) -> (i32, i32, i32) {
    %c0_i32 = arith.constant 0 : i32
    %c0_i32_0 = arith.constant 0 : i32
    return %arg1, %arg0, %c0_i32 : i32, i32, i32
  }
  func.func @transform_1(%arg0: i32, %arg1: i32) -> (i32, i32, i32) {
    %c0_i32 = arith.constant 0 : i32
    %c0_i32_0 = arith.constant 0 : i32
    %c0_i32_1 = arith.constant 0 : i32
    return %arg1, %c0_i32, %c0_i32_0 : i32, i32, i32
  }
  func.func @transform_2(%arg0: i32, %arg1: i32) -> (i32, i32) {
    %c0_i32 = arith.constant 0 : i32
    %c0_i32_0 = arith.constant 0 : i32
    %c0_i32_1 = arith.constant 0 : i32
    return %c0_i32, %c0_i32_0 : i32, i32
  }
  func.func @transform_3(%arg0: i32, %arg1: i32) -> (i32, i32) {
    %c0_i32 = arith.constant 0 : i32
    %c0_i32_0 = arith.constant 0 : i32
    return %arg0, %c0_i32 : i32, i32
  }
  func.func @transform_4(%arg0: i32, %arg1: i32) -> (i32, i32) {
    %c0_i32 = arith.constant 0 : i32
    %c0_i32_0 = arith.constant 0 : i32
    %c0_i32_1 = arith.constant 0 : i32
    return %c0_i32, %c0_i32_0 : i32, i32
  }
  func.func @transform_5(%arg0: i32, %arg1: i32) -> (i32, i32) {
    %c0_i32 = arith.constant 0 : i32
    %c0_i32_0 = arith.constant 0 : i32
    %c0_i32_1 = arith.constant 0 : i32
    return %c0_i32, %c0_i32_0 : i32, i32
  }
  func.func @transform_6(%arg0: i32, %arg1: i32) -> (i32, i32) {
    %c0_i32 = arith.constant 0 : i32
    %c0_i32_0 = arith.constant 0 : i32
    return %arg0, %c0_i32 : i32, i32
  }
}

module attributes {stable_mosaic.version = 11 : i64} {
  func.func @_linear_res_ln_kernel(%arg0: i32, %arg1: i32, %arg2: memref<1x16x64xf32, #tpu.memory_space<vmem>>, %arg3: memref<1x64x32xf32, #tpu.memory_space<vmem>>, %arg4: memref<1x32xf32, #tpu.memory_space<vmem>>, %arg5: memref<16x32xf32, #tpu.memory_space<vmem>>, %arg6: memref<1x32xf32, #tpu.memory_space<vmem>>, %arg7: memref<1x32xf32, #tpu.memory_space<vmem>>, %arg8: memref<16x32xf32, #tpu.memory_space<vmem>>, %arg9: memref<16x32xf32, #tpu.memory_space<vmem>>) attributes {dimension_semantics = [#tpu.dimension_semantics<parallel>, #tpu.dimension_semantics<arbitrary>], iteration_bounds = array<i64: 1, 1>, scalar_prefetch = 0 : i64, scratch_operands = 1 : i64, tpu.core_type = #tpu.core_type<tc>, window_params = [{transform_indices = @transform_0, window_bounds = array<i64: 1, 16, 64>}, {transform_indices = @transform_1, window_bounds = array<i64: 1, 64, 32>}, {pipeline_mode = #tpu.pipeline_mode<synchronous>, transform_indices = @transform_2, window_bounds = array<i64: 1, 32>}, {transform_indices = @transform_3, window_bounds = array<i64: 16, 32>}, {pipeline_mode = #tpu.pipeline_mode<synchronous>, transform_indices = @transform_4, window_bounds = array<i64: 1, 32>}, {pipeline_mode = #tpu.pipeline_mode<synchronous>, transform_indices = @transform_5, window_bounds = array<i64: 1, 32>}, {transform_indices = @transform_6, window_bounds = array<i64: 16, 32>}]} {
    %c0_i32 = arith.constant 0 : i32
    %0 = arith.cmpi eq, %arg1, %c0_i32 : i32
    %1 = arith.extui %0 : i1 to i32
    %c0_i32_0 = arith.constant 0 : i32
    %2 = arith.cmpi ne, %1, %c0_i32_0 : i32
    scf.if %2 {
      %cst_12 = arith.constant 0.000000e+00 : f32
      %14 = vector.broadcast %cst_12 : f32 to vector<16x32xf32>
      %c0_13 = arith.constant 0 : index
      %c0_14 = arith.constant 0 : index
      %15 = vector.load %arg9[%c0_13, %c0_14] : memref<16x32xf32, #tpu.memory_space<vmem>>, vector<16x32xf32>
      tpu.vector_store %arg9[%c0_13, %c0_14], %14 {strides = array<i32>} : memref<16x32xf32, #tpu.memory_space<vmem>>, vector<16x32xf32>,
    } else {
    }
    %c0 = arith.constant 0 : index
    %c0_1 = arith.constant 0 : index
    %3 = vector.load %arg9[%c0, %c0_1] : memref<16x32xf32, #tpu.memory_space<vmem>>, vector<16x32xf32>
    %c0_2 = arith.constant 0 : index
    %c0_3 = arith.constant 0 : index
    %c0_4 = arith.constant 0 : index
    %4 = vector.load %arg2[%c0_2, %c0_3, %c0_4] : memref<1x16x64xf32, #tpu.memory_space<vmem>>, vector<1x16x64xf32>
    %5 = vector.shape_cast %4 : vector<1x16x64xf32> to vector<16x64xf32>
    %c0_5 = arith.constant 0 : index
    %c0_6 = arith.constant 0 : index
    %c0_7 = arith.constant 0 : index
    %6 = vector.load %arg3[%c0_5, %c0_6, %c0_7] : memref<1x64x32xf32, #tpu.memory_space<vmem>>, vector<1x64x32xf32>
    %7 = vector.shape_cast %6 : vector<1x64x32xf32> to vector<64x32xf32>
    %cst = arith.constant dense<0.000000e+00> : vector<16x32xf32>
    %8 = tpu.matmul %5, %7, %cst {dimension_numbers = #tpu.dot_dimension_numbers<[1], [0], [0], [1], [0, 0, 1, 1], [], []>} : vector<16x64xf32>, vector<64x32xf32>, vector<16x32xf32> -> vector<16x32xf32>
    %9 = arith.addf %3, %8 : vector<16x32xf32>
    %c0_8 = arith.constant 0 : index
    %c0_9 = arith.constant 0 : index
    %10 = vector.load %arg9[%c0_8, %c0_9] : memref<16x32xf32, #tpu.memory_space<vmem>>, vector<16x32xf32>
    tpu.vector_store %arg9[%c0_8, %c0_9], %9 {strides = array<i32>} : memref<16x32xf32, #tpu.memory_space<vmem>>, vector<16x32xf32>,
    %c0_i32_10 = arith.constant 0 : i32
    %11 = arith.cmpi eq, %arg1, %c0_i32_10 : i32
    %12 = arith.extui %11 : i1 to i32
    %c0_i32_11 = arith.constant 0 : i32
    %13 = arith.cmpi ne, %12, %c0_i32_11 : i32
    scf.if %13 {
      %c0_12 = arith.constant 0 : index
      %c0_13 = arith.constant 0 : index
      %14 = vector.load %arg9[%c0_12, %c0_13] : memref<16x32xf32, #tpu.memory_space<vmem>>, vector<16x32xf32>
      %c0_14 = arith.constant 0 : index
      %c0_15 = arith.constant 0 : index
      %15 = vector.load %arg4[%c0_14, %c0_15] : memref<1x32xf32, #tpu.memory_space<vmem>>, vector<1x32xf32>
      %16 = vector.broadcast %15 : vector<1x32xf32> to vector<16x32xf32>
      %17 = arith.addf %14, %16 : vector<16x32xf32>
      %c0_16 = arith.constant 0 : index
      %c0_17 = arith.constant 0 : index
      %18 = vector.load %arg5[%c0_16, %c0_17] : memref<16x32xf32, #tpu.memory_space<vmem>>, vector<16x32xf32>
      %19 = arith.addf %17, %18 : vector<16x32xf32>
      %cst_18 = arith.constant dense<0.000000e+00> : vector<16xf32>
      %20 = vector.multi_reduction <add>, %19, %cst_18 [1] : vector<16x32xf32> to vector<16xf32>
      %21 = vector.shape_cast %20 : vector<16xf32> to vector<16x1xf32>
      %cst_19 = arith.constant 3.200000e+01 : f32
      %22 = vector.broadcast %cst_19 : f32 to vector<16x1xf32>
      %23 = arith.divf %21, %22 : vector<16x1xf32>
      %24 = vector.broadcast %23 : vector<16x1xf32> to vector<16x32xf32>
      %25 = arith.subf %19, %24 : vector<16x32xf32>
      %26 = arith.mulf %25, %25 : vector<16x32xf32>
      %cst_20 = arith.constant dense<0.000000e+00> : vector<16xf32>
      %27 = vector.multi_reduction <add>, %26, %cst_20 [1] : vector<16x32xf32> to vector<16xf32>
      %28 = vector.shape_cast %27 : vector<16xf32> to vector<16x1xf32>
      %cst_21 = arith.constant 3.200000e+01 : f32
      %29 = vector.broadcast %cst_21 : f32 to vector<16x1xf32>
      %30 = arith.divf %28, %29 : vector<16x1xf32>
      %cst_22 = arith.constant 9.99999974E-6 : f32
      %31 = vector.broadcast %cst_22 : f32 to vector<16x1xf32>
      %32 = arith.addf %30, %31 : vector<16x1xf32>
      %33 = math.rsqrt %32 : vector<16x1xf32>
      %34 = vector.broadcast %33 : vector<16x1xf32> to vector<16x32xf32>
      %35 = arith.mulf %25, %34 : vector<16x32xf32>
      %c0_23 = arith.constant 0 : index
      %c0_24 = arith.constant 0 : index
      %36 = vector.load %arg6[%c0_23, %c0_24] : memref<1x32xf32, #tpu.memory_space<vmem>>, vector<1x32xf32>
      %37 = vector.broadcast %36 : vector<1x32xf32> to vector<16x32xf32>
      %38 = arith.mulf %35, %37 : vector<16x32xf32>
      %c0_25 = arith.constant 0 : index
      %c0_26 = arith.constant 0 : index
      %39 = vector.load %arg7[%c0_25, %c0_26] : memref<1x32xf32, #tpu.memory_space<vmem>>, vector<1x32xf32>
      %40 = vector.broadcast %39 : vector<1x32xf32> to vector<16x32xf32>
      %41 = arith.addf %38, %40 : vector<16x32xf32>
      %c0_27 = arith.constant 0 : index
      %c0_28 = arith.constant 0 : index
      %42 = vector.load %arg8[%c0_27, %c0_28] : memref<16x32xf32, #tpu.memory_space<vmem>>, vector<16x32xf32>
      tpu.vector_store %arg8[%c0_27, %c0_28], %41 {strides = array<i32>} : memref<16x32xf32, #tpu.memory_space<vmem>>, vector<16x32xf32>,
    } else {
    }
    return
  }
  func.func @transform_0(%arg0: i32, %arg1: i32) -> (i32, i32, i32) {
    %c0_i32 = arith.constant 0 : i32
    %c0_i32_0 = arith.constant 0 : i32
    return %arg1, %arg0, %c0_i32 : i32, i32, i32
  }
  func.func @transform_1(%arg0: i32, %arg1: i32) -> (i32, i32, i32) {
    %c0_i32 = arith.constant 0 : i32
    %c0_i32_0 = arith.constant 0 : i32
    %c0_i32_1 = arith.constant 0 : i32
    return %arg1, %c0_i32, %c0_i32_0 : i32, i32, i32
  }
  func.func @transform_2(%arg0: i32, %arg1: i32) -> (i32, i32) {
    %c0_i32 = arith.constant 0 : i32
    %c0_i32_0 = arith.constant 0 : i32
    %c0_i32_1 = arith.constant 0 : i32
    return %c0_i32, %c0_i32_0 : i32, i32
  }
  func.func @transform_3(%arg0: i32, %arg1: i32) -> (i32, i32) {
    %c0_i32 = arith.constant 0 : i32
    %c0_i32_0 = arith.constant 0 : i32
    return %arg0, %c0_i32 : i32, i32
  }
  func.func @transform_4(%arg0: i32, %arg1: i32) -> (i32, i32) {
    %c0_i32 = arith.constant 0 : i32
    %c0_i32_0 = arith.constant 0 : i32
    %c0_i32_1 = arith.constant 0 : i32
    return %c0_i32, %c0_i32_0 : i32, i32
  }
  func.func @transform_5(%arg0: i32, %arg1: i32) -> (i32, i32) {
    %c0_i32 = arith.constant 0 : i32
    %c0_i32_0 = arith.constant 0 : i32
    %c0_i32_1 = arith.constant 0 : i32
    return %c0_i32, %c0_i32_0 : i32, i32
  }
  func.func @transform_6(%arg0: i32, %arg1: i32) -> (i32, i32) {
    %c0_i32 = arith.constant 0 : i32
    %c0_i32_0 = arith.constant 0 : i32
    return %arg0, %c0_i32 : i32, i32
  }
}

</mosaic_0001>

<llo_original>
// kernel: transformer_encoder_forward.12
$region0: #{transformer_encoder_forward.12}
  #allocation0 [shape = 'u32[]', space=smem, size = 0x4, offset = 0x4, fixed_abs, tag = 'smem constant byte address 0x4 - core index']
  #allocation1 [shape = 'u32[144,128]{1,0:T(1,128)}', space=vmem, size = 0x12000, scoped, tag = 'internal scratch']
  %s0 = inlined_call_operand.vmem [shape: f32[16,32], index: 0, kind: input, shape index: {}]
  %s1 = inlined_call_operand.vmem [shape: f32[12,32,8], index: 1, kind: input, shape index: {}]
  %s2 = inlined_call_operand.vmem [shape: f32[12,1,8], index: 2, kind: input, shape index: {}]
  %s3 = inlined_call_operand.vmem [shape: f32[12,16,8], index: 3, kind: output, shape index: {}]
  %s4 = sld [smem:[#allocation0]]
  $region45: #{transformer_encoder_forward.12} parent=0
    _
  %s6 = ssub.s32 1, %s4
  %s7 = scalar_select 0, %s6, %s4
  loop: start=0, step=1, limit=14
  $region2: #{transformer_encoder_forward.12} parent=0 // loop_pre_header
    _
  $region3: #{transformer_encoder_forward.12} parent=0 // loop_header
    %s9 = sphi 0, %s13
    %p10 = scmp.ge.s32.totalorder %s9, 14
    %s16 = sphi 0, %s28
    %s17 = sphi 0, %s24
    %s18 = sphi 0, %s16
    %s19 = sphi 0, %s17
    %s20 = sphi 0, %s18
    %s21 = sphi 0, %s19
    %s31 = sphi 0, %s33
    %s34 = sphi 0, %s31
    %s35 = sphi 0, %s34
    %s51 = sphi 0, %s35
    %s57 = sphi 0, %s59
    %s60 = sphi 0, %s57
    %s61 = sphi 0, %s60
    %s77 = sphi 0, %s61
    %s83 = sphi 0, %s85
    %s86 = sphi 0, %s83
    %s87 = sphi 0, %s86
    %s103 = sphi 0, %s87
    %s111 = sphi 0, %s113
    %s114 = sphi 0, %s111
    %s115 = sphi 0, %s114
    %s131 = sphi 0, %s115
  $region4: #{transformer_encoder_forward.12} parent=0 // loop_header_branch
    %12 = sbr.rel (%p10) target = $region8
  $region5: #{transformer_encoder_forward.12} parent=0 // loop_body
    %s14 = ssub.s32 %s9, 1
    %s15 = ssub.s32 %s9, 2
    %s22 = sadd.s32 1, %s17
    %p23 = scmp.ge.s32.totalorder %s22, 12
    %s24 = scalar_select %p23, 0, %s22
    %s25 = sadd.s32 1, %s16
    %s26 = scalar_select %p23, %s25, %s16
    %p27 = scmp.ge.s32.totalorder %s26, 1
    %s28 = scalar_select %p27, 0, %s26
    %s29 = ssub.s32 %s16, %s28
    %p30 = scmp.eq.s32.totalorder %s29, 0
    %s32 = sadd.s32 %s31, 1
    %s33 = scalar_select %p30, %s31, %s32
    %p36 = pneg %p30
    %p37 = scmp.eq.s32.totalorder %s9, 11
    %p38 = por %p36, %p37
    %p39 = scmp.ne.s32.totalorder %s31, %s34
    %p40 = scmp.eq.s32.totalorder %s9, 0
    %p41 = por %p39, %p40
    %p42 = scmp.ne.s32.totalorder %s31, %s34
    %p43 = scmp.eq.s32.totalorder %s14, 11
    %p44 = por %p42, %p43
    %p45 = scmp.ne.s32.totalorder %s34, %s35
    %p46 = scmp.eq.s32.totalorder %s14, 0
    %p47 = por %p45, %p46
    %p48 = scmp.ne.s32.totalorder %s34, %s35
    %p49 = scmp.eq.s32.totalorder %s15, 11
    %p50 = por %p48, %p49
    %p52 = scmp.ne.s32.totalorder %s35, %s51
    %p53 = scmp.eq.s32.totalorder %s15, 0
    %p54 = por %p52, %p53
    %s55 = ssub.s32 %s17, %s24
    %p56 = scmp.eq.s32.totalorder %s55, 0
    %s58 = sadd.s32 %s57, 1
    %s59 = scalar_select %p56, %s57, %s58
    %p62 = pneg %p56
    %p63 = scmp.eq.s32.totalorder %s9, 11
    %p64 = por %p62, %p63
    %p65 = scmp.ne.s32.totalorder %s57, %s60
    %p66 = scmp.eq.s32.totalorder %s9, 0
    %p67 = por %p65, %p66
    %p68 = scmp.ne.s32.totalorder %s57, %s60
    %p69 = scmp.eq.s32.totalorder %s14, 11
    %p70 = por %p68, %p69
    %p71 = scmp.ne.s32.totalorder %s60, %s61
    %p72 = scmp.eq.s32.totalorder %s14, 0
    %p73 = por %p71, %p72
    %p74 = scmp.ne.s32.totalorder %s60, %s61
    %p75 = scmp.eq.s32.totalorder %s15, 11
    %p76 = por %p74, %p75
    %p78 = scmp.ne.s32.totalorder %s61, %s77
    %p79 = scmp.eq.s32.totalorder %s15, 0
    %p80 = por %p78, %p79
    %s81 = ssub.s32 %s17, %s24
    %p82 = scmp.eq.s32.totalorder %s81, 0
    %s84 = sadd.s32 %s83, 1
    %s85 = scalar_select %p82, %s83, %s84
    %p88 = pneg %p82
    %p89 = scmp.eq.s32.totalorder %s9, 11
    %p90 = por %p88, %p89
    %p91 = scmp.ne.s32.totalorder %s83, %s86
    %p92 = scmp.eq.s32.totalorder %s9, 0
    %p93 = por %p91, %p92
    %p94 = scmp.ne.s32.totalorder %s83, %s86
    %p95 = scmp.eq.s32.totalorder %s14, 11
    %p96 = por %p94, %p95
    %p97 = scmp.ne.s32.totalorder %s86, %s87
    %p98 = scmp.eq.s32.totalorder %s14, 0
    %p99 = por %p97, %p98
    %p100 = scmp.ne.s32.totalorder %s86, %s87
    %p101 = scmp.eq.s32.totalorder %s15, 11
    %p102 = por %p100, %p101
    %p104 = scmp.ne.s32.totalorder %s87, %s103
    %p105 = scmp.eq.s32.totalorder %s15, 0
    %p106 = por %p104, %p105
    %s107 = ssub.s32 %s17, %s24
    %s108 = ssub.s32 %s16, %s28
    %s109 = sor.u32 %s107, %s108
    %p110 = scmp.eq.s32.totalorder %s109, 0
    %s112 = sadd.s32 %s111, 1
    %s113 = scalar_select %p110, %s111, %s112
    %p116 = pneg %p110
    %p117 = scmp.eq.s32.totalorder %s9, 11
    %p118 = por %p116, %p117
    %p119 = scmp.ne.s32.totalorder %s111, %s114
    %p120 = scmp.eq.s32.totalorder %s9, 0
    %p121 = por %p119, %p120
    %p122 = scmp.ne.s32.totalorder %s111, %s114
    %p123 = scmp.eq.s32.totalorder %s14, 11
    %p124 = por %p122, %p123
    %p125 = scmp.ne.s32.totalorder %s114, %s115
    %p126 = scmp.eq.s32.totalorder %s14, 0
    %p127 = por %p125, %p126
    %p128 = scmp.ne.s32.totalorder %s114, %s115
    %p129 = scmp.eq.s32.totalorder %s15, 11
    %p130 = por %p128, %p129
    %p132 = scmp.ne.s32.totalorder %s115, %s131
    %p133 = scmp.eq.s32.totalorder %s15, 0
    %p134 = por %p132, %p133
    %p135 = scmp.le.s32.totalorder 1, %s9
    %p136 = scmp.lt.s32.totalorder %s9, 13
    %p137 = pnand %p135, %p136
    %p138 = pneg %p137
    // Predicated region
    $region9: #{transformer_encoder_forward.12} parent=5 // pred_check
      _
    $region10: #{transformer_encoder_forward.12} parent=5 // pred_check_branch
      %140 = sbr.rel (%p137) target = $region12
    $region11: #{transformer_encoder_forward.12} parent=5 // pred_region
      %s141 = ssub.s32 %s9, 1
      // Predicated region
      $region13: #{transformer_encoder_forward.12} parent=11 // pred_check
        %p142 = pneg %p47
      $region14: #{transformer_encoder_forward.12} parent=11 // pred_check_branch
        %144 = sbr.rel (%p142) target = $region16
      $region15: #{transformer_encoder_forward.12} parent=11 // pred_region
        %s145 = smul.u32 2, %s18
        %p146 = scmp.lt.s32.totalorder %s145, 1
        %s147 = scalar_select %p146, %s145, 1
        %s148 = smul.addr %s147, 8
        %s149 = scalar_lea.vmem %s0, %s148
        %s150 = smul.u32 2, %s18
      $region16: #{transformer_encoder_forward.12} parent=11 // pred_fallthru
        _
    $region12: #{transformer_encoder_forward.12} parent=5 // pred_fallthru
      _
    %p151 = scmp.lt.s32.totalorder %s9, 12
    // Predicated region
    $region17: #{transformer_encoder_forward.12} parent=5 // pred_check
      %p152 = pneg %p151
    $region18: #{transformer_encoder_forward.12} parent=5 // pred_check_branch
      %154 = sbr.rel (%p152) target = $region20
    $region19: #{transformer_encoder_forward.12} parent=5 // pred_region
      // Predicated region
      $region21: #{transformer_encoder_forward.12} parent=19 // pred_check
        %p155 = pneg %p67
      $region22: #{transformer_encoder_forward.12} parent=19 // pred_check_branch
        %157 = sbr.rel (%p155) target = $region24
      $region23: #{transformer_encoder_forward.12} parent=19 // pred_region
        %p158 = scmp.lt.s32.totalorder %s17, 11
        %s159 = scalar_select %p158, %s17, 11
        %s160 = smul.addr %s159, 4
        %s161 = smul.addr %s160, 8
        %s162 = scalar_lea.vmem %s1, %s161
      $region24: #{transformer_encoder_forward.12} parent=19 // pred_fallthru
        _
      // Predicated region
      $region25: #{transformer_encoder_forward.12} parent=19 // pred_check
        %p163 = pneg %p93
      $region26: #{transformer_encoder_forward.12} parent=19 // pred_check_branch
        %165 = sbr.rel (%p163) target = $region28
      $region27: #{transformer_encoder_forward.12} parent=19 // pred_region
        %p166 = scmp.lt.s32.totalorder %s17, 11
        %s167 = scalar_select %p166, %s17, 11
        %s168 = scalar_lea.vmem %s2, %s167
      $region28: #{transformer_encoder_forward.12} parent=19 // pred_fallthru
        _
    $region20: #{transformer_encoder_forward.12} parent=5 // pred_fallthru
      _
    %p169 = scmp.le.s32.totalorder 1, %s9
    %p170 = scmp.lt.s32.totalorder %s9, 13
    %p171 = pnand %p169, %p170
    %p172 = pneg %p171
    // Predicated region
    $region29: #{transformer_encoder_forward.12} parent=5 // pred_check
      _
    $region30: #{transformer_encoder_forward.12} parent=5 // pred_check_branch
      %174 = sbr.rel (%p171) target = $region32
    $region31: #{transformer_encoder_forward.12} parent=5 // pred_region
      %s175 = ssub.s32 %s9, 1
      %s176 = smul.u32 2, %s18
      %p177 = scmp.lt.s32.totalorder %s176, 1
      %s178 = scalar_select %p177, %s176, 1
      %s179 = smul.addr %s178, 8
      %s180 = scalar_lea.vmem %s0, %s179
      %p181 = pneg %p47
      %p182 = pneg %p44
      %p183 = scmp.lt.s32.totalorder %s19, 11
      %s184 = scalar_select %p183, %s19, 11
      %s185 = smul.addr %s184, 4
      %s186 = smul.addr %s185, 8
      %s187 = scalar_lea.vmem %s1, %s186
      %p188 = pneg %p73
      %p189 = pneg %p70
      %p190 = scmp.lt.s32.totalorder %s19, 11
      %s191 = scalar_select %p190, %s19, 11
      %s192 = scalar_lea.vmem %s2, %s191
      %p193 = pneg %p99
      %p194 = pneg %p96
      %p195 = pneg %p127
      %p196 = pneg %p124
      %s197 = smul.u32 2, %s18
      %p198 = scmp.lt.s32.totalorder %s19, 11
      %s199 = scalar_select %p198, %s19, 11
      %p200 = scmp.lt.s32.totalorder %s197, 1
      %s201 = scalar_select %p200, %s197, 1
      %s202 = smul.addr %s199, 2
      %s203 = sadd.s32 %s201, %s202
      %s204 = smul.addr %s203, 8
      %s205 = scalar_lea.vmem %s3, %s204
      %s206 = smul.u32 2, %s18
      %p207 = scmp.lt.s32.totalorder %s206, 1
      %s208 = scalar_select %p207, %s206, 1
      %s209 = smul.addr %s208, 8
      %s210 = scalar_lea.vmem %s0, %s209
      %s211 = smul.u32 2, %s18
      %p212 = scmp.lt.s32.totalorder %s19, 11
      %s213 = scalar_select %p212, %s19, 11
      %s214 = smul.addr %s213, 4
      %s215 = smul.addr %s214, 8
      %s216 = scalar_lea.vmem %s1, %s215
      %p217 = scmp.lt.s32.totalorder %s19, 11
      %s218 = scalar_select %p217, %s19, 11
      %s219 = scalar_lea.vmem %s2, %s218
      %s220 = smul.u32 2, %s18
      %p221 = scmp.lt.s32.totalorder %s19, 11
      %s222 = scalar_select %p221, %s19, 11
      %p223 = scmp.lt.s32.totalorder %s220, 1
      %s224 = scalar_select %p223, %s220, 1
      %s225 = smul.addr %s222, 2
      %s226 = sadd.s32 %s224, %s225
      %s227 = smul.addr %s226, 8
      %s228 = scalar_lea.vmem %s3, %s227
      %s229 = smul.u32 2, %s18
      %v230 = vld [vmem:[%s210] sm:$0xff]
      %v231 = vld [vmem:[%s210 + $0x8] sm:$0xff]
      %v232 = vld [vmem:[%s216] sm:$0xff]
      %v233 = vld [vmem:[%s216 + $0x8] sm:$0xff]
      %v234 = vld [vmem:[%s216 + $0x10] sm:$0xff]
      %v235 = vld [vmem:[%s216 + $0x18] sm:$0xff]
      %v236 = vld [vmem:[%s219] sm:$0x1]
      %v238 = vlaneseq
      %v239 = vshrl.u32 %v238, 7
      %v240 = vsub.s32 0, %v239
      %v241 = vrot.slane %v236, %v240
      %vm243 = vcmask 261120
      %v245 = vsel %vm243, %v230, 0
      %v248 = vsel %vm243, %v231, 0
      %250 = vmatprep.subr.mxu0 0.0
      %251 = vmatpush1.msra.mxu0 0.0
      %252 = vmatprep.subr.mxu0 0.0
      %253 = vmatpush1.msra.mxu0 0.0
      %254 = vmatprep.subr.mxu0 0.0
      %255 = vmatpush1.msra.mxu0 0.0
      %256 = vmatprep.subr.mxu0 0.0
      %257 = vmatpush1.msra.mxu0 0.0
      %258 = vmatprep.subr.mxu0 0.0
      %259 = vmatpush1.msra.mxu0 0.0
      %260 = vmatprep.subr.mxu0 0.0
      %261 = vmatpush1.msra.mxu0 0.0
      %262 = vmatprep.subr.mxu0 0.0
      %263 = vmatpush1.msra.mxu0 0.0
      %264 = vmatprep.subr.mxu0 0.0
      %265 = vmatpush1.msra.mxu0 0.0
      %266 = vmatprep.subr.mxu0 0.0
      %267 = vmatpush1.msra.mxu0 0.0
      %268 = vmatprep.subr.mxu0 0.0
      %269 = vmatpush1.msra.mxu0 0.0
      %270 = vmatprep.subr.mxu0 0.0
      %271 = vmatpush1.msra.mxu0 0.0
      %272 = vmatprep.subr.mxu0 0.0
      %273 = vmatpush1.msra.mxu0 0.0
      %274 = vmatprep.subr.mxu0 0.0
      %275 = vmatpush1.msra.mxu0 %v235
      %276 = vmatprep.subr.mxu0 0.0
      %277 = vmatpush1.msra.mxu0 %v234
      %278 = vmatprep.subr.mxu0 0.0
      %279 = vmatpush1.msra.mxu0 %v233
      %280 = vmatprep.subr.mxu0 0.0
      %281 = vmatpush1.msra.mxu0 %v232
      %282 = vmatprep.subr.mxu0 0.0
      %283 = vmatpush2.msra.mxu0 0.0
      %284 = vmatprep.subr.mxu0 0.0
      %285 = vmatpush2.msra.mxu0 0.0
      %286 = vmatprep.subr.mxu0 0.0
      %287 = vmatpush2.msra.mxu0 0.0
      %288 = vmatprep.subr.mxu0 0.0
      %289 = vmatpush2.msra.mxu0 0.0
      %290 = vmatprep.subr.mxu0 0.0
      %291 = vmatpush2.msra.mxu0 0.0
      %292 = vmatprep.subr.mxu0 0.0
      %293 = vmatpush2.msra.mxu0 0.0
      %294 = vmatprep.subr.mxu0 0.0
      %295 = vmatpush2.msra.mxu0 0.0
      %296 = vmatprep.subr.mxu0 0.0
      %297 = vmatpush2.msra.mxu0 0.0
      %298 = vmatprep.subr.mxu0 0.0
      %299 = vmatpush2.msra.mxu0 0.0
      %300 = vmatprep.subr.mxu0 0.0
      %301 = vmatpush2.msra.mxu0 0.0
      %302 = vmatprep.subr.mxu0 0.0
      %303 = vmatpush2.msra.mxu0 0.0
      %304 = vmatprep.subr.mxu0 0.0
      %305 = vmatpush2.msra.mxu0 0.0
      %306 = vmatprep.subr.mxu0 0.0
      %307 = vmatpush2.msra.mxu0 0.0
      %308 = vmatprep.subr.mxu0 0.0
      %309 = vmatpush2.msra.mxu0 0.0
      %310 = vmatprep.subr.mxu0 0.0
      %311 = vmatpush2.msra.mxu0 0.0
      %312 = vmatprep.subr.mxu0 0.0
      %313 = vmatpush2.msra.mxu0 0.0
      %314 = vmatprep.mubr.f32.mxu0 0.0
      %315 = vmatmul.mubr.f32.gmra.mxu0 %v245
      %v316 = vpop.f32.mrf.mxu0
      %v317 = vadd.f32 %v241, %v316
      %v318 = vpop.f32.mrf.mxu0
      %319 = vmatprep.mubr.f32.mxu0 0.0
      %320 = vmatmul.mubr.f32.gmra.mxu0 %v248
      %v321 = vpop.f32.mrf.mxu0
      %v322 = vadd.f32 %v241, %v321
      %v323 = vpop.f32.mrf.mxu0
      %324 = vdwg.mxu0
      %vm325 = vcmask 64512
      %326 = vst.msk [vmem:[%s228] sm:$0xff] %vm325, %v317
      %327 = vst.msk [vmem:[%s228 + $0x8] sm:$0xff] %vm325, %v322
      %s328 = smul.u32 2, %s18
      %p329 = scmp.lt.s32.totalorder %s19, 11
      %s330 = scalar_select %p329, %s19, 11
      %p331 = scmp.lt.s32.totalorder %s328, 1
      %s332 = scalar_select %p331, %s328, 1
      %s333 = smul.addr %s330, 2
      %s334 = sadd.s32 %s332, %s333
      %s335 = smul.addr %s334, 8
      %s336 = scalar_lea.vmem %s3, %s335
      // Predicated region
      $region33: #{transformer_encoder_forward.12} parent=31 // pred_check
        %p337 = pneg %p124
      $region34: #{transformer_encoder_forward.12} parent=31 // pred_check_branch
        %339 = sbr.rel (%p337) target = $region36
      $region35: #{transformer_encoder_forward.12} parent=31 // pred_region
        %s340 = smul.u32 2, %s18
      $region36: #{transformer_encoder_forward.12} parent=31 // pred_fallthru
        _
    $region32: #{transformer_encoder_forward.12} parent=5 // pred_fallthru
      _
    %p341 = scmp.le.s32.totalorder 2, %s9
    // Predicated region
    $region37: #{transformer_encoder_forward.12} parent=5 // pred_check
      %p342 = pneg %p341
    $region38: #{transformer_encoder_forward.12} parent=5 // pred_check_branch
      %344 = sbr.rel (%p342) target = $region40
    $region39: #{transformer_encoder_forward.12} parent=5 // pred_region
      %s345 = ssub.s32 %s9, 2
      // Predicated region
      $region41: #{transformer_encoder_forward.12} parent=39 // pred_check
        %p346 = pneg %p130
      $region42: #{transformer_encoder_forward.12} parent=39 // pred_check_branch
        %348 = sbr.rel (%p346) target = $region44
      $region43: #{transformer_encoder_forward.12} parent=39 // pred_region
        %s349 = smul.u32 2, %s20
        %p350 = scmp.lt.s32.totalorder %s21, 11
        %s351 = scalar_select %p350, %s21, 11
        %p352 = scmp.lt.s32.totalorder %s349, 1
        %s353 = scalar_select %p352, %s349, 1
        %s354 = smul.addr %s351, 2
        %s355 = sadd.s32 %s353, %s354
        %s356 = smul.addr %s355, 8
        %s357 = scalar_lea.vmem %s3, %s356
      $region44: #{transformer_encoder_forward.12} parent=39 // pred_fallthru
        _
    $region40: #{transformer_encoder_forward.12} parent=5 // pred_fallthru
      _
  $region6: #{transformer_encoder_forward.12} parent=0 // loop_footer
    %s13 = sadd.s32 1, %s9
  $region7: #{transformer_encoder_forward.12} parent=0 // loop_footer_branch
    %8 = sbr.rel target = $region3
  $region8: #{transformer_encoder_forward.12} parent=0 // loop_exit
    _

// kernel: transformer_encoder_forward.11
$region0: #{transformer_encoder_forward.11}
  #allocation0 [shape = 'u32[]', space=smem, size = 0x4, offset = 0x4, fixed_abs, tag = 'smem constant byte address 0x4 - core index']
  #allocation1 [shape = 'u32[144,128]{1,0:T(1,128)}', space=vmem, size = 0x12000, scoped, tag = 'internal scratch']
  %s0 = inlined_call_operand.vmem [shape: f32[16,16], index: 0, kind: input, shape index: {}]
  %s1 = inlined_call_operand.vmem [shape: f32[1,16,32], index: 1, kind: input, shape index: {}]
  %s2 = inlined_call_operand.vmem [shape: f32[1,1,32], index: 2, kind: input, shape index: {}]
  %s3 = inlined_call_operand.vmem [shape: f32[16,32], index: 3, kind: output, shape index: {}]
  %s4 = sld [smem:[#allocation0]]
  $region22: #{transformer_encoder_forward.11} parent=0
    _
  %s6 = ssub.s32 1, %s4
  %s7 = scalar_select 0, %s6, %s4
  // Predicated region
  $region2: #{transformer_encoder_forward.11} parent=0 // pred_check
    _
  $region3: #{transformer_encoder_forward.11} parent=0 // pred_check_branch
    %9 = sbr.rel (0) target = $region5
  $region4: #{transformer_encoder_forward.11} parent=0 // pred_region
    _
  $region5: #{transformer_encoder_forward.11} parent=0 // pred_fallthru
    _
  // Predicated region
  $region6: #{transformer_encoder_forward.11} parent=0 // pred_check
    _
  $region7: #{transformer_encoder_forward.11} parent=0 // pred_check_branch
    %11 = sbr.rel (0) target = $region9
  $region8: #{transformer_encoder_forward.11} parent=0 // pred_region
    _
  $region9: #{transformer_encoder_forward.11} parent=0 // pred_fallthru
    _
  // Predicated region
  $region10: #{transformer_encoder_forward.11} parent=0 // pred_check
    _
  $region11: #{transformer_encoder_forward.11} parent=0 // pred_check_branch
    %13 = sbr.rel (0) target = $region13
  $region12: #{transformer_encoder_forward.11} parent=0 // pred_region
    _
  $region13: #{transformer_encoder_forward.11} parent=0 // pred_fallthru
    _
  %v14 = vld [vmem:[%s0] sm:$0xff]
  %v15 = vld [vmem:[%s0 + $0x8] sm:$0xff]
  %v16 = vld [vmem:[%s1] sm:$0xff]
  %v17 = vld [vmem:[%s1 + $0x8] sm:$0xff]
  %v18 = vld [vmem:[%s2] sm:$0x1]
  %v20 = vlaneseq
  %v21 = vshrl.u32 %v20, 7
  %v22 = vsub.s32 0, %v21
  %v23 = vrot.slane %v18, %v22
  %vm25 = vcmask 130048
  %v27 = vsel %vm25, %v14, 0
  %v30 = vsel %vm25, %v15, 0
  %32 = vmatprep.subr.mxu0 0.0
  %33 = vmatpush1.msra.mxu0 0.0
  %34 = vmatprep.subr.mxu0 0.0
  %35 = vmatpush1.msra.mxu0 0.0
  %36 = vmatprep.subr.mxu0 0.0
  %37 = vmatpush1.msra.mxu0 0.0
  %38 = vmatprep.subr.mxu0 0.0
  %39 = vmatpush1.msra.mxu0 0.0
  %40 = vmatprep.subr.mxu0 0.0
  %41 = vmatpush1.msra.mxu0 0.0
  %42 = vmatprep.subr.mxu0 0.0
  %43 = vmatpush1.msra.mxu0 0.0
  %44 = vmatprep.subr.mxu0 0.0
  %45 = vmatpush1.msra.mxu0 0.0
  %46 = vmatprep.subr.mxu0 0.0
  %47 = vmatpush1.msra.mxu0 0.0
  %48 = vmatprep.subr.mxu0 0.0
  %49 = vmatpush1.msra.mxu0 0.0
  %50 = vmatprep.subr.mxu0 0.0
  %51 = vmatpush1.msra.mxu0 0.0
  %52 = vmatprep.subr.mxu0 0.0
  %53 = vmatpush1.msra.mxu0 0.0
  %54 = vmatprep.subr.mxu0 0.0
  %55 = vmatpush1.msra.mxu0 0.0
  %56 = vmatprep.subr.mxu0 0.0
  %57 = vmatpush1.msra.mxu0 0.0
  %58 = vmatprep.subr.mxu0 0.0
  %59 = vmatpush1.msra.mxu0 0.0
  %60 = vmatprep.subr.mxu0 0.0
  %61 = vmatpush1.msra.mxu0 %v17
  %62 = vmatprep.subr.mxu0 0.0
  %63 = vmatpush1.msra.mxu0 %v16
  %64 = vmatprep.subr.mxu0 0.0
  %65 = vmatpush2.msra.mxu0 0.0
  %66 = vmatprep.subr.mxu0 0.0
  %67 = vmatpush2.msra.mxu0 0.0
  %68 = vmatprep.subr.mxu0 0.0
  %69 = vmatpush2.msra.mxu0 0.0
  %70 = vmatprep.subr.mxu0 0.0
  %71 = vmatpush2.msra.mxu0 0.0
  %72 = vmatprep.subr.mxu0 0.0
  %73 = vmatpush2.msra.mxu0 0.0
  %74 = vmatprep.subr.mxu0 0.0
  %75 = vmatpush2.msra.mxu0 0.0
  %76 = vmatprep.subr.mxu0 0.0
  %77 = vmatpush2.msra.mxu0 0.0
  %78 = vmatprep.subr.mxu0 0.0
  %79 = vmatpush2.msra.mxu0 0.0
  %80 = vmatprep.subr.mxu0 0.0
  %81 = vmatpush2.msra.mxu0 0.0
  %82 = vmatprep.subr.mxu0 0.0
  %83 = vmatpush2.msra.mxu0 0.0
  %84 = vmatprep.subr.mxu0 0.0
  %85 = vmatpush2.msra.mxu0 0.0
  %86 = vmatprep.subr.mxu0 0.0
  %87 = vmatpush2.msra.mxu0 0.0
  %88 = vmatprep.subr.mxu0 0.0
  %89 = vmatpush2.msra.mxu0 0.0
  %90 = vmatprep.subr.mxu0 0.0
  %91 = vmatpush2.msra.mxu0 0.0
  %92 = vmatprep.subr.mxu0 0.0
  %93 = vmatpush2.msra.mxu0 0.0
  %94 = vmatprep.subr.mxu0 0.0
  %95 = vmatpush2.msra.mxu0 0.0
  %96 = vmatprep.mubr.f32.mxu0 0.0
  %97 = vmatmul.mubr.f32.gmra.mxu0 %v27
  %v98 = vpop.f32.mrf.mxu0
  %v99 = vadd.f32 %v23, %v98
  %v100 = vpop.f32.mrf.mxu0
  %101 = vmatprep.mubr.f32.mxu0 0.0
  %102 = vmatmul.mubr.f32.gmra.mxu0 %v30
  %v103 = vpop.f32.mrf.mxu0
  %v104 = vadd.f32 %v23, %v103
  %v105 = vpop.f32.mrf.mxu0
  %106 = vdwg.mxu0
  %vm107 = vcmask 261120
  %108 = vst.msk [vmem:[%s3] sm:$0xff] %vm107, %v99
  %109 = vst.msk [vmem:[%s3 + $0x8] sm:$0xff] %vm107, %v104
  // Predicated region
  $region14: #{transformer_encoder_forward.11} parent=0 // pred_check
    _
  $region15: #{transformer_encoder_forward.11} parent=0 // pred_check_branch
    %111 = sbr.rel (0) target = $region17
  $region16: #{transformer_encoder_forward.11} parent=0 // pred_region
    _
  $region17: #{transformer_encoder_forward.11} parent=0 // pred_fallthru
    _
  // Predicated region
  $region18: #{transformer_encoder_forward.11} parent=0 // pred_check
    _
  $region19: #{transformer_encoder_forward.11} parent=0 // pred_check_branch
    %113 = sbr.rel (0) target = $region21
  $region20: #{transformer_encoder_forward.11} parent=0 // pred_region
    _
  $region21: #{transformer_encoder_forward.11} parent=0 // pred_fallthru
    _

// kernel: transformer_encoder_forward.13
$region0: #{transformer_encoder_forward.13}
  #allocation0 [shape = 'u32[]', space=smem, size = 0x4, offset = 0x4, fixed_abs, tag = 'smem constant byte address 0x4 - core index']
  #allocation1 [shape = 'u32[144,128]{1,0:T(1,128)}', space=vmem, size = 0x12000, scoped, tag = 'internal scratch']
  #allocation2 [shape = 'f32[8,1]{1,0:T(8,128)}', space=vmem, size = 0x1000, scoped, tag = 'scratch operand']
  #allocation3 [shape = 'f32[8,1]{1,0:T(8,128)}', space=vmem, size = 0x1000, scoped, tag = 'scratch operand']
  #allocation4 [shape = 'f32[8,8]{1,0:T(8,128)}', space=vmem, size = 0x1000, scoped, tag = 'scratch operand']
  %s0 = inlined_call_operand.vmem [shape: f32[12,16,8], index: 0, kind: input, shape index: {}, may-alias: {0,1,2}]
  %s1 = inlined_call_operand.vmem [shape: f32[12,16,8], index: 1, kind: input, shape index: {}, may-alias: {0,1,2}]
  %s2 = inlined_call_operand.vmem [shape: f32[12,16,8], index: 2, kind: input, shape index: {}, may-alias: {0,1,2}]
  %s3 = inlined_call_operand.vmem [shape: f32[4,16,8], index: 3, kind: output, shape index: {}]
  %s4 = sld [smem:[#allocation0]]
  $region53: #{transformer_encoder_forward.13} parent=0
    _
  %s6 = ssub.s32 1, %s4
  %s7 = scalar_select 0, %s6, %s4
  loop: start=0, step=1, limit=10
  $region2: #{transformer_encoder_forward.13} parent=0 // loop_pre_header
    _
  $region3: #{transformer_encoder_forward.13} parent=0 // loop_header
    %s9 = sphi 0, %s13
    %p10 = scmp.ge.s32.totalorder %s9, 10
    %s16 = sphi 0, %s42
    %s17 = sphi 0, %s38
    %s18 = sphi 0, %s34
    %s19 = sphi 0, %s30
    %s20 = sphi 0, %s16
    %s21 = sphi 0, %s17
    %s22 = sphi 0, %s18
    %s23 = sphi 0, %s19
    %s24 = sphi 0, %s20
    %s25 = sphi 0, %s21
    %s26 = sphi 0, %s22
    %s27 = sphi 0, %s23
    %s49 = sphi 0, %s51
    %s52 = sphi 0, %s49
    %s53 = sphi 0, %s52
    %s69 = sphi 0, %s53
    %s81 = sphi 0, %s83
    %s84 = sphi 0, %s81
    %s85 = sphi 0, %s84
    %s101 = sphi 0, %s85
    %s113 = sphi 0, %s115
    %s116 = sphi 0, %s113
    %s117 = sphi 0, %s116
    %s133 = sphi 0, %s117
    %s143 = sphi 0, %s145
    %s146 = sphi 0, %s143
    %s147 = sphi 0, %s146
    %s163 = sphi 0, %s147
  $region4: #{transformer_encoder_forward.13} parent=0 // loop_header_branch
    %12 = sbr.rel (%p10) target = $region8
  $region5: #{transformer_encoder_forward.13} parent=0 // loop_body
    %s14 = ssub.s32 %s9, 1
    %s15 = ssub.s32 %s9, 2
    %s28 = sadd.s32 1, %s19
    %p29 = scmp.ge.s32.totalorder %s28, 1
    %s30 = scalar_select %p29, 0, %s28
    %s31 = sadd.s32 1, %s18
    %s32 = scalar_select %p29, %s31, %s18
    %p33 = scmp.ge.s32.totalorder %s32, 1
    %s34 = scalar_select %p33, 0, %s32
    %s35 = sadd.s32 1, %s17
    %s36 = scalar_select %p33, %s35, %s17
    %p37 = scmp.ge.s32.totalorder %s36, 4
    %s38 = scalar_select %p37, 0, %s36
    %s39 = sadd.s32 1, %s16
    %s40 = scalar_select %p37, %s39, %s16
    %p41 = scmp.ge.s32.totalorder %s40, 2
    %s42 = scalar_select %p41, 0, %s40
    %s43 = sadd.s32 %s16, %s18
    %s44 = sadd.s32 %s42, %s34
    %s45 = ssub.s32 %s17, %s38
    %s46 = ssub.s32 %s43, %s44
    %s47 = sor.u32 %s45, %s46
    %p48 = scmp.eq.s32.totalorder %s47, 0
    %s50 = sadd.s32 %s49, 1
    %s51 = scalar_select %p48, %s49, %s50
    %p54 = pneg %p48
    %p55 = scmp.eq.s32.totalorder %s9, 7
    %p56 = por %p54, %p55
    %p57 = scmp.ne.s32.totalorder %s49, %s52
    %p58 = scmp.eq.s32.totalorder %s9, 0
    %p59 = por %p57, %p58
    %p60 = scmp.ne.s32.totalorder %s49, %s52
    %p61 = scmp.eq.s32.totalorder %s14, 7
    %p62 = por %p60, %p61
    %p63 = scmp.ne.s32.totalorder %s52, %s53
    %p64 = scmp.eq.s32.totalorder %s14, 0
    %p65 = por %p63, %p64
    %p66 = scmp.ne.s32.totalorder %s52, %s53
    %p67 = scmp.eq.s32.totalorder %s15, 7
    %p68 = por %p66, %p67
    %p70 = scmp.ne.s32.totalorder %s53, %s69
    %p71 = scmp.eq.s32.totalorder %s15, 0
    %p72 = por %p70, %p71
    %s73 = sadd.s32 %s17, 4
    %s74 = sadd.s32 %s16, %s19
    %s75 = sadd.s32 %s38, 4
    %s76 = sadd.s32 %s42, %s30
    %s77 = ssub.s32 %s73, %s75
    %s78 = ssub.s32 %s74, %s76
    %s79 = sor.u32 %s77, %s78
    %p80 = scmp.eq.s32.totalorder %s79, 0
    %s82 = sadd.s32 %s81, 1
    %s83 = scalar_select %p80, %s81, %s82
    %p86 = pneg %p80
    %p87 = scmp.eq.s32.totalorder %s9, 7
    %p88 = por %p86, %p87
    %p89 = scmp.ne.s32.totalorder %s81, %s84
    %p90 = scmp.eq.s32.totalorder %s9, 0
    %p91 = por %p89, %p90
    %p92 = scmp.ne.s32.totalorder %s81, %s84
    %p93 = scmp.eq.s32.totalorder %s14, 7
    %p94 = por %p92, %p93
    %p95 = scmp.ne.s32.totalorder %s84, %s85
    %p96 = scmp.eq.s32.totalorder %s14, 0
    %p97 = por %p95, %p96
    %p98 = scmp.ne.s32.totalorder %s84, %s85
    %p99 = scmp.eq.s32.totalorder %s15, 7
    %p100 = por %p98, %p99
    %p102 = scmp.ne.s32.totalorder %s85, %s101
    %p103 = scmp.eq.s32.totalorder %s15, 0
    %p104 = por %p102, %p103
    %s105 = sadd.s32 %s17, 8
    %s106 = sadd.s32 %s16, %s19
    %s107 = sadd.s32 %s38, 8
    %s108 = sadd.s32 %s42, %s30
    %s109 = ssub.s32 %s105, %s107
    %s110 = ssub.s32 %s106, %s108
    %s111 = sor.u32 %s109, %s110
    %p112 = scmp.eq.s32.totalorder %s111, 0
    %s114 = sadd.s32 %s113, 1
    %s115 = scalar_select %p112, %s113, %s114
    %p118 = pneg %p112
    %p119 = scmp.eq.s32.totalorder %s9, 7
    %p120 = por %p118, %p119
    %p121 = scmp.ne.s32.totalorder %s113, %s116
    %p122 = scmp.eq.s32.totalorder %s9, 0
    %p123 = por %p121, %p122
    %p124 = scmp.ne.s32.totalorder %s113, %s116
    %p125 = scmp.eq.s32.totalorder %s14, 7
    %p126 = por %p124, %p125
    %p127 = scmp.ne.s32.totalorder %s116, %s117
    %p128 = scmp.eq.s32.totalorder %s14, 0
    %p129 = por %p127, %p128
    %p130 = scmp.ne.s32.totalorder %s116, %s117
    %p131 = scmp.eq.s32.totalorder %s15, 7
    %p132 = por %p130, %p131
    %p134 = scmp.ne.s32.totalorder %s117, %s133
    %p135 = scmp.eq.s32.totalorder %s15, 0
    %p136 = por %p134, %p135
    %s137 = sadd.s32 %s16, %s18
    %s138 = sadd.s32 %s42, %s34
    %s139 = ssub.s32 %s17, %s38
    %s140 = ssub.s32 %s137, %s138
    %s141 = sor.u32 %s139, %s140
    %p142 = scmp.eq.s32.totalorder %s141, 0
    %s144 = sadd.s32 %s143, 1
    %s145 = scalar_select %p142, %s143, %s144
    %p148 = pneg %p142
    %p149 = scmp.eq.s32.totalorder %s9, 7
    %p150 = por %p148, %p149
    %p151 = scmp.ne.s32.totalorder %s143, %s146
    %p152 = scmp.eq.s32.totalorder %s9, 0
    %p153 = por %p151, %p152
    %p154 = scmp.ne.s32.totalorder %s143, %s146
    %p155 = scmp.eq.s32.totalorder %s14, 7
    %p156 = por %p154, %p155
    %p157 = scmp.ne.s32.totalorder %s146, %s147
    %p158 = scmp.eq.s32.totalorder %s14, 0
    %p159 = por %p157, %p158
    %p160 = scmp.ne.s32.totalorder %s146, %s147
    %p161 = scmp.eq.s32.totalorder %s15, 7
    %p162 = por %p160, %p161
    %p164 = scmp.ne.s32.totalorder %s147, %s163
    %p165 = scmp.eq.s32.totalorder %s15, 0
    %p166 = por %p164, %p165
    %p167 = scmp.le.s32.totalorder 1, %s9
    %p168 = scmp.lt.s32.totalorder %s9, 9
    %p169 = pnand %p167, %p168
    %p170 = pneg %p169
    // Predicated region
    $region9: #{transformer_encoder_forward.13} parent=5 // pred_check
      _
    $region10: #{transformer_encoder_forward.13} parent=5 // pred_check_branch
      %172 = sbr.rel (%p169) target = $region12
    $region11: #{transformer_encoder_forward.13} parent=5 // pred_region
      %s173 = ssub.s32 %s9, 1
    $region12: #{transformer_encoder_forward.13} parent=5 // pred_fallthru
      _
    %p174 = scmp.lt.s32.totalorder %s9, 8
    // Predicated region
    $region13: #{transformer_encoder_forward.13} parent=5 // pred_check
      %p175 = pneg %p174
    $region14: #{transformer_encoder_forward.13} parent=5 // pred_check_branch
      %177 = sbr.rel (%p175) target = $region16
    $region15: #{transformer_encoder_forward.13} parent=5 // pred_region
      // Predicated region
      $region17: #{transformer_encoder_forward.13} parent=15 // pred_check
        %p178 = pneg %p59
      $region18: #{transformer_encoder_forward.13} parent=15 // pred_check_branch
        %180 = sbr.rel (%p178) target = $region20
      $region19: #{transformer_encoder_forward.13} parent=15 // pred_region
        %s181 = sadd.s32 %s16, %s18
        %p182 = scmp.lt.s32.totalorder %s17, 11
        %s183 = scalar_select %p182, %s17, 11
        %p184 = scmp.lt.s32.totalorder %s181, 1
        %s185 = scalar_select %p184, %s181, 1
        %s186 = smul.addr %s183, 2
        %s187 = sadd.s32 %s185, %s186
        %s188 = smul.addr %s187, 8
        %s189 = scalar_lea.vmem %s0, %s188
        %s190 = sadd.s32 %s16, %s18
      $region20: #{transformer_encoder_forward.13} parent=15 // pred_fallthru
        _
      // Predicated region
      $region21: #{transformer_encoder_forward.13} parent=15 // pred_check
        %p191 = pneg %p91
      $region22: #{transformer_encoder_forward.13} parent=15 // pred_check_branch
        %193 = sbr.rel (%p191) target = $region24
      $region23: #{transformer_encoder_forward.13} parent=15 // pred_region
        %s194 = sadd.s32 %s17, 4
        %s195 = sadd.s32 %s16, %s19
        %p196 = scmp.lt.s32.totalorder %s194, 11
        %s197 = scalar_select %p196, %s194, 11
        %p198 = scmp.lt.s32.totalorder %s195, 1
        %s199 = scalar_select %p198, %s195, 1
        %s200 = smul.addr %s197, 2
        %s201 = sadd.s32 %s199, %s200
        %s202 = smul.addr %s201, 8
        %s203 = scalar_lea.vmem %s1, %s202
        %s204 = sadd.s32 %s17, 4
        %s205 = sadd.s32 %s16, %s19
      $region24: #{transformer_encoder_forward.13} parent=15 // pred_fallthru
        _
      // Predicated region
      $region25: #{transformer_encoder_forward.13} parent=15 // pred_check
        %p206 = pneg %p123
      $region26: #{transformer_encoder_forward.13} parent=15 // pred_check_branch
        %208 = sbr.rel (%p206) target = $region28
      $region27: #{transformer_encoder_forward.13} parent=15 // pred_region
        %s209 = sadd.s32 %s17, 8
        %s210 = sadd.s32 %s16, %s19
        %p211 = scmp.lt.s32.totalorder %s209, 11
        %s212 = scalar_select %p211, %s209, 11
        %p213 = scmp.lt.s32.totalorder %s210, 1
        %s214 = scalar_select %p213, %s210, 1
        %s215 = smul.addr %s212, 2
        %s216 = sadd.s32 %s214, %s215
        %s217 = smul.addr %s216, 8
        %s218 = scalar_lea.vmem %s2, %s217
        %s219 = sadd.s32 %s17, 8
        %s220 = sadd.s32 %s16, %s19
      $region28: #{transformer_encoder_forward.13} parent=15 // pred_fallthru
        _
    $region16: #{transformer_encoder_forward.13} parent=5 // pred_fallthru
      _
    %p221 = scmp.le.s32.totalorder 1, %s9
    %p222 = scmp.lt.s32.totalorder %s9, 9
    %p223 = pnand %p221, %p222
    %p224 = pneg %p223
    // Predicated region
    $region29: #{transformer_encoder_forward.13} parent=5 // pred_check
      _
    $region30: #{transformer_encoder_forward.13} parent=5 // pred_check_branch
      %226 = sbr.rel (%p223) target = $region32
    $region31: #{transformer_encoder_forward.13} parent=5 // pred_region
      %s227 = ssub.s32 %s9, 1
      %s228 = sadd.s32 %s20, %s22
      %p229 = scmp.lt.s32.totalorder %s21, 11
      %s230 = scalar_select %p229, %s21, 11
      %p231 = scmp.lt.s32.totalorder %s228, 1
      %s232 = scalar_select %p231, %s228, 1
      %s233 = smul.addr %s230, 2
      %s234 = sadd.s32 %s232, %s233
      %s235 = smul.addr %s234, 8
      %s236 = scalar_lea.vmem %s0, %s235
      %p237 = pneg %p65
      %p238 = pneg %p62
      %s239 = sadd.s32 %s21, 4
      %s240 = sadd.s32 %s20, %s23
      %p241 = scmp.lt.s32.totalorder %s239, 11
      %s242 = scalar_select %p241, %s239, 11
      %p243 = scmp.lt.s32.totalorder %s240, 1
      %s244 = scalar_select %p243, %s240, 1
      %s245 = smul.addr %s242, 2
      %s246 = sadd.s32 %s244, %s245
      %s247 = smul.addr %s246, 8
      %s248 = scalar_lea.vmem %s1, %s247
      %p249 = pneg %p97
      %p250 = pneg %p94
      %s251 = sadd.s32 %s21, 8
      %s252 = sadd.s32 %s20, %s23
      %p253 = scmp.lt.s32.totalorder %s251, 11
      %s254 = scalar_select %p253, %s251, 11
      %p255 = scmp.lt.s32.totalorder %s252, 1
      %s256 = scalar_select %p255, %s252, 1
      %s257 = smul.addr %s254, 2
      %s258 = sadd.s32 %s256, %s257
      %s259 = smul.addr %s258, 8
      %s260 = scalar_lea.vmem %s2, %s259
      %p261 = pneg %p129
      %p262 = pneg %p126
      %p263 = pneg %p159
      %p264 = pneg %p156
      %s265 = sadd.s32 %s20, %s22
      %p266 = scmp.lt.s32.totalorder %s21, 3
      %s267 = scalar_select %p266, %s21, 3
      %p268 = scmp.lt.s32.totalorder %s265, 1
      %s269 = scalar_select %p268, %s265, 1
      %s270 = smul.addr %s267, 2
      %s271 = sadd.s32 %s269, %s270
      %s272 = smul.addr %s271, 8
      %s273 = scalar_lea.vmem %s3, %s272
      %s274 = sadd.s32 %s20, %s22
      %p275 = scmp.lt.s32.totalorder %s21, 11
      %s276 = scalar_select %p275, %s21, 11
      %p277 = scmp.lt.s32.totalorder %s274, 1
      %s278 = scalar_select %p277, %s274, 1
      %s279 = smul.addr %s276, 2
      %s280 = sadd.s32 %s278, %s279
      %s281 = smul.addr %s280, 8
      %s282 = scalar_lea.vmem %s0, %s281
      %s283 = sadd.s32 %s20, %s22
      %s284 = sadd.s32 %s21, 4
      %s285 = sadd.s32 %s20, %s23
      %p286 = scmp.lt.s32.totalorder %s284, 11
      %s287 = scalar_select %p286, %s284, 11
      %p288 = scmp.lt.s32.totalorder %s285, 1
      %s289 = scalar_select %p288, %s285, 1
      %s290 = smul.addr %s287, 2
      %s291 = sadd.s32 %s289, %s290
      %s292 = smul.addr %s291, 8
      %s293 = scalar_lea.vmem %s1, %s292
      %s294 = sadd.s32 %s21, 4
      %s295 = sadd.s32 %s20, %s23
      %s296 = sadd.s32 %s21, 8
      %s297 = sadd.s32 %s20, %s23
      %p298 = scmp.lt.s32.totalorder %s296, 11
      %s299 = scalar_select %p298, %s296, 11
      %p300 = scmp.lt.s32.totalorder %s297, 1
      %s301 = scalar_select %p300, %s297, 1
      %s302 = smul.addr %s299, 2
      %s303 = sadd.s32 %s301, %s302
      %s304 = smul.addr %s303, 8
      %s305 = scalar_lea.vmem %s2, %s304
      %s306 = sadd.s32 %s21, 8
      %s307 = sadd.s32 %s20, %s23
      %s308 = sadd.s32 %s20, %s22
      %p309 = scmp.lt.s32.totalorder %s21, 3
      %s310 = scalar_select %p309, %s21, 3
      %p311 = scmp.lt.s32.totalorder %s308, 1
      %s312 = scalar_select %p311, %s308, 1
      %s313 = smul.addr %s310, 2
      %s314 = sadd.s32 %s312, %s313
      %s315 = smul.addr %s314, 8
      %s316 = scalar_lea.vmem %s3, %s315
      %s317 = sadd.s32 %s20, %s22
      %p318 = scmp.eq.s32.totalorder %s23, 0
      // Predicated region
      $region33: #{transformer_encoder_forward.13} parent=31 // pred_check
        %p319 = pneg %p318
      $region34: #{transformer_encoder_forward.13} parent=31 // pred_check_branch
        %321 = sbr.rel (%p319) target = $region36
      $region35: #{transformer_encoder_forward.13} parent=31 // pred_region
        %vm322 = vcmask 7168
        %323 = vst.msk [vmem:[#allocation2] sm:$0xff] %vm322, -inf
        %324 = vst.msk [vmem:[#allocation3] sm:$0xff] %vm322, 0.0
        %vm325 = vcmask 64512
        %326 = vst.msk [vmem:[#allocation4] sm:$0xff] %vm325, 0.0
      $region36: #{transformer_encoder_forward.13} parent=31 // pred_fallthru
        _
      %v327 = vld [vmem:[%s282] sm:$0xff]
      %v328 = vmul.f32 %v327, 0.35355338
      %v329 = vld [vmem:[%s293] sm:$0xff]
      %vm330 = vcmask 64512
      %v332 = vsel %vm330, %v328, 0
      %v335 = vsel %vm330, %v329, 0
      %337 = vmatprep.subr.mxu0 0.0
      %338 = vmatpush1.xpose.msra.mxu0 0.0
      %339 = vmatprep.subr.mxu0 0.0
      %340 = vmatpush1.xpose.msra.mxu0 0.0
      %341 = vmatprep.subr.mxu0 0.0
      %342 = vmatpush1.xpose.msra.mxu0 0.0
      %343 = vmatprep.subr.mxu0 0.0
      %344 = vmatpush1.xpose.msra.mxu0 0.0
      %345 = vmatprep.subr.mxu0 0.0
      %346 = vmatpush1.xpose.msra.mxu0 0.0
      %347 = vmatprep.subr.mxu0 0.0
      %348 = vmatpush1.xpose.msra.mxu0 0.0
      %349 = vmatprep.subr.mxu0 0.0
      %350 = vmatpush1.xpose.msra.mxu0 0.0
      %351 = vmatprep.subr.mxu0 0.0
      %352 = vmatpush1.xpose.msra.mxu0 0.0
      %353 = vmatprep.subr.mxu0 0.0
      %354 = vmatpush1.xpose.msra.mxu0 0.0
      %355 = vmatprep.subr.mxu0 0.0
      %356 = vmatpush1.xpose.msra.mxu0 0.0
      %357 = vmatprep.subr.mxu0 0.0
      %358 = vmatpush1.xpose.msra.mxu0 0.0
      %359 = vmatprep.subr.mxu0 0.0
      %360 = vmatpush1.xpose.msra.mxu0 0.0
      %361 = vmatprep.subr.mxu0 0.0
      %362 = vmatpush1.xpose.msra.mxu0 0.0
      %363 = vmatprep.subr.mxu0 0.0
      %364 = vmatpush1.xpose.msra.mxu0 0.0
      %365 = vmatprep.subr.mxu0 0.0
      %366 = vmatpush1.xpose.msra.mxu0 0.0
      %367 = vmatprep.subr.mxu0 0.0
      %368 = vmatpush1.xpose.msra.mxu0 %v335
      %369 = vmatprep.subr.mxu0 0.0
      %370 = vmatpush2.xpose.msra.mxu0 0.0
      %371 = vmatprep.subr.mxu0 0.0
      %372 = vmatpush2.xpose.msra.mxu0 0.0
      %373 = vmatprep.subr.mxu0 0.0
      %374 = vmatpush2.xpose.msra.mxu0 0.0
      %375 = vmatprep.subr.mxu0 0.0
      %376 = vmatpush2.xpose.msra.mxu0 0.0
      %377 = vmatprep.subr.mxu0 0.0
      %378 = vmatpush2.xpose.msra.mxu0 0.0
      %379 = vmatprep.subr.mxu0 0.0
      %380 = vmatpush2.xpose.msra.mxu0 0.0
      %381 = vmatprep.subr.mxu0 0.0
      %382 = vmatpush2.xpose.msra.mxu0 0.0
      %383 = vmatprep.subr.mxu0 0.0
      %384 = vmatpush2.xpose.msra.mxu0 0.0
      %385 = vmatprep.subr.mxu0 0.0
      %386 = vmatpush2.xpose.msra.mxu0 0.0
      %387 = vmatprep.subr.mxu0 0.0
      %388 = vmatpush2.xpose.msra.mxu0 0.0
      %389 = vmatprep.subr.mxu0 0.0
      %390 = vmatpush2.xpose.msra.mxu0 0.0
      %391 = vmatprep.subr.mxu0 0.0
      %392 = vmatpush2.xpose.msra.mxu0 0.0
      %393 = vmatprep.subr.mxu0 0.0
      %394 = vmatpush2.xpose.msra.mxu0 0.0
      %395 = vmatprep.subr.mxu0 0.0
      %396 = vmatpush2.xpose.msra.mxu0 0.0
      %397 = vmatprep.subr.mxu0 0.0
      %398 = vmatpush2.xpose.msra.mxu0 0.0
      %399 = vmatprep.subr.mxu0 0.0
      %400 = vmatpush2.xpose.msra.mxu0 0.0
      %401 = vmatprep.mubr.f32.mxu0 0.0
      %402 = vmatmul.mubr.f32.gmra.mxu0 %v332
      %v403 = vpop.f32.mrf.mxu0
      %v404 = vadd.f32 0.0, %v403
      %v405 = vpop.f32.mrf.mxu0
      %406 = vdwg.mxu0
      %v407 = vld [vmem:[#allocation2] sm:$0xff]
      %v408 = vsel %vm330, %v404, -inf
      %409 = vmax.xlane.f32.xlu0 %v408
      %v410 = vpop.xlane.xlu0 %409
      %v411 = vmax.f32 %v407, %v410
      %v412 = vsub.f32 %v407, %v411
      %v413 = vmul.f32 %v412, 1.442695
      %v414 = vpow.pop %v413
      %416 = vset.pattern.permute.xlu0 0
      %417 = vperm.xlu0 %416, %v411
      %v418 = vpop.permute.xlu0 %417
      %v420 = vsub.f32 %v404, %v418
      %v421 = vmul.f32 %v420, 1.442695
      %v422 = vpow.pop %v421
      %v423 = vld [vmem:[#allocation3] sm:$0xff]
      %v424 = vmul.f32 %v414, %v423
      %v425 = vsel %vm330, %v422, 0.0
      %426 = vadd.xlane.f32.xlu0 %v425
      %v427 = vpop.xlane.xlu0 %426
      %v428 = vadd.f32 %v424, %v427
      %vm429 = vcmask 7168
      %430 = vst.msk [vmem:[#allocation3] sm:$0xff] %vm429, %v428
      %v431 = vld [vmem:[#allocation4] sm:$0xff]
      %433 = vset.pattern.permute.xlu0 0
      %434 = vperm.xlu0 %433, %v414
      %v435 = vpop.permute.xlu0 %434
      %v437 = vmul.f32 %v435, %v431
      %v438 = vld [vmem:[%s305] sm:$0xff]
      %v440 = vsel %vm330, %v422, 0
      %442 = vmatprep.subr.mxu0 0.0
      %443 = vmatpush1.msra.mxu0 0.0
      %444 = vmatprep.subr.mxu0 0.0
      %445 = vmatpush1.msra.mxu0 0.0
      %446 = vmatprep.subr.mxu0 0.0
      %447 = vmatpush1.msra.mxu0 0.0
      %448 = vmatprep.subr.mxu0 0.0
      %449 = vmatpush1.msra.mxu0 0.0
      %450 = vmatprep.subr.mxu0 0.0
      %451 = vmatpush1.msra.mxu0 0.0
      %452 = vmatprep.subr.mxu0 0.0
      %453 = vmatpush1.msra.mxu0 0.0
      %454 = vmatprep.subr.mxu0 0.0
      %455 = vmatpush1.msra.mxu0 0.0
      %456 = vmatprep.subr.mxu0 0.0
      %457 = vmatpush1.msra.mxu0 0.0
      %458 = vmatprep.subr.mxu0 0.0
      %459 = vmatpush1.msra.mxu0 0.0
      %460 = vmatprep.subr.mxu0 0.0
      %461 = vmatpush1.msra.mxu0 0.0
      %462 = vmatprep.subr.mxu0 0.0
      %463 = vmatpush1.msra.mxu0 0.0
      %464 = vmatprep.subr.mxu0 0.0
      %465 = vmatpush1.msra.mxu0 0.0
      %466 = vmatprep.subr.mxu0 0.0
      %467 = vmatpush1.msra.mxu0 0.0
      %468 = vmatprep.subr.mxu0 0.0
      %469 = vmatpush1.msra.mxu0 0.0
      %470 = vmatprep.subr.mxu0 0.0
      %471 = vmatpush1.msra.mxu0 0.0
      %472 = vmatprep.subr.mxu0 0.0
      %473 = vmatpush1.msra.mxu0 %v438
      %474 = vmatprep.subr.mxu0 0.0
      %475 = vmatpush2.msra.mxu0 0.0
      %476 = vmatprep.subr.mxu0 0.0
      %477 = vmatpush2.msra.mxu0 0.0
      %478 = vmatprep.subr.mxu0 0.0
      %479 = vmatpush2.msra.mxu0 0.0
      %480 = vmatprep.subr.mxu0 0.0
      %481 = vmatpush2.msra.mxu0 0.0
      %482 = vmatprep.subr.mxu0 0.0
      %483 = vmatpush2.msra.mxu0 0.0
      %484 = vmatprep.subr.mxu0 0.0
      %485 = vmatpush2.msra.mxu0 0.0
      %486 = vmatprep.subr.mxu0 0.0
      %487 = vmatpush2.msra.mxu0 0.0
      %488 = vmatprep.subr.mxu0 0.0
      %489 = vmatpush2.msra.mxu0 0.0
      %490 = vmatprep.subr.mxu0 0.0
      %491 = vmatpush2.msra.mxu0 0.0
      %492 = vmatprep.subr.mxu0 0.0
      %493 = vmatpush2.msra.mxu0 0.0
      %494 = vmatprep.subr.mxu0 0.0
      %495 = vmatpush2.msra.mxu0 0.0
      %496 = vmatprep.subr.mxu0 0.0
      %497 = vmatpush2.msra.mxu0 0.0
      %498 = vmatprep.subr.mxu0 0.0
      %499 = vmatpush2.msra.mxu0 0.0
      %500 = vmatprep.subr.mxu0 0.0
      %501 = vmatpush2.msra.mxu0 0.0
      %502 = vmatprep.subr.mxu0 0.0
      %503 = vmatpush2.msra.mxu0 0.0
      %504 = vmatprep.subr.mxu0 0.0
      %505 = vmatpush2.msra.mxu0 0.0
      %506 = vmatprep.mubr.f32.mxu0 0.0
      %507 = vmatmul.mubr.f32.gmra.mxu0 %v440
      %v508 = vpop.f32.mrf.mxu0
      %v509 = vadd.f32 0.0, %v508
      %v510 = vpop.f32.mrf.mxu0
      %511 = vdwg.mxu0
      %v512 = vadd.f32 %v437, %v509
      %513 = vst.msk [vmem:[#allocation4] sm:$0xff] %vm330, %v512
      %514 = vst.msk [vmem:[#allocation2] sm:$0xff] %vm429, %v411
      // Predicated region
      $region37: #{transformer_encoder_forward.13} parent=31 // pred_check
        %p515 = pneg %p318
      $region38: #{transformer_encoder_forward.13} parent=31 // pred_check_branch
        %517 = sbr.rel (%p515) target = $region40
      $region39: #{transformer_encoder_forward.13} parent=31 // pred_region
        %v518 = vld [vmem:[#allocation4] sm:$0xff]
        %v519 = vld [vmem:[#allocation3] sm:$0xff]
        %v520 = vrcp.pop %v519
        %522 = vset.pattern.permute.xlu0 0
        %523 = vperm.xlu0 %522, %v520
        %v524 = vpop.permute.xlu0 %523
        %v526 = vmul.f32 %v518, %v524
        %527 = vst.msk [vmem:[%s316] sm:$0xff] %vm330, %v526
      $region40: #{transformer_encoder_forward.13} parent=31 // pred_fallthru
        _
      %s528 = sadd.s32 %s20, %s22
      %p529 = scmp.lt.s32.totalorder %s21, 3
      %s530 = scalar_select %p529, %s21, 3
      %p531 = scmp.lt.s32.totalorder %s528, 1
      %s532 = scalar_select %p531, %s528, 1
      %s533 = smul.addr %s530, 2
      %s534 = sadd.s32 %s532, %s533
      %s535 = smul.addr %s534, 8
      %s536 = scalar_lea.vmem %s3, %s535
      // Predicated region
      $region41: #{transformer_encoder_forward.13} parent=31 // pred_check
        %p537 = pneg %p156
      $region42: #{transformer_encoder_forward.13} parent=31 // pred_check_branch
        %539 = sbr.rel (%p537) target = $region44
      $region43: #{transformer_encoder_forward.13} parent=31 // pred_region
        %s540 = sadd.s32 %s20, %s22
      $region44: #{transformer_encoder_forward.13} parent=31 // pred_fallthru
        _
    $region32: #{transformer_encoder_forward.13} parent=5 // pred_fallthru
      _
    %p541 = scmp.le.s32.totalorder 2, %s9
    // Predicated region
    $region45: #{transformer_encoder_forward.13} parent=5 // pred_check
      %p542 = pneg %p541
    $region46: #{transformer_encoder_forward.13} parent=5 // pred_check_branch
      %544 = sbr.rel (%p542) target = $region48
    $region47: #{transformer_encoder_forward.13} parent=5 // pred_region
      %s545 = ssub.s32 %s9, 2
      // Predicated region
      $region49: #{transformer_encoder_forward.13} parent=47 // pred_check
        %p546 = pneg %p162
      $region50: #{transformer_encoder_forward.13} parent=47 // pred_check_branch
        %548 = sbr.rel (%p546) target = $region52
      $region51: #{transformer_encoder_forward.13} parent=47 // pred_region
        %s549 = sadd.s32 %s24, %s26
        %p550 = scmp.lt.s32.totalorder %s25, 3
        %s551 = scalar_select %p550, %s25, 3
        %p552 = scmp.lt.s32.totalorder %s549, 1
        %s553 = scalar_select %p552, %s549, 1
        %s554 = smul.addr %s551, 2
        %s555 = sadd.s32 %s553, %s554
        %s556 = smul.addr %s555, 8
        %s557 = scalar_lea.vmem %s3, %s556
      $region52: #{transformer_encoder_forward.13} parent=47 // pred_fallthru
        _
    $region48: #{transformer_encoder_forward.13} parent=5 // pred_fallthru
      _
  $region6: #{transformer_encoder_forward.13} parent=0 // loop_footer
    %s13 = sadd.s32 1, %s9
  $region7: #{transformer_encoder_forward.13} parent=0 // loop_footer_branch
    %8 = sbr.rel target = $region3
  $region8: #{transformer_encoder_forward.13} parent=0 // loop_exit
    _

// kernel: transformer_encoder_forward.14
$region0: #{transformer_encoder_forward.14}
  #allocation0 [shape = 'u32[]', space=smem, size = 0x4, offset = 0x4, fixed_abs, tag = 'smem constant byte address 0x4 - core index']
  #allocation1 [shape = 'u32[144,128]{1,0:T(1,128)}', space=vmem, size = 0x12000, scoped, tag = 'internal scratch']
  #allocation2 [shape = 'f32[16,32]{1,0:T(8,128)}', space=vmem, size = 0x2000, scoped, tag = 'scratch operand']
  %s0 = inlined_call_operand.vmem [shape: f32[4,16,8], index: 0, kind: input, shape index: {}]
  %s1 = inlined_call_operand.vmem [shape: f32[4,8,32], index: 1, kind: input, shape index: {}]
  %s2 = inlined_call_operand.vmem [shape: f32[1,32], index: 2, kind: input, shape index: {}]
  %s3 = inlined_call_operand.vmem [shape: f32[16,32], index: 3, kind: input, shape index: {}]
  %s4 = inlined_call_operand.vmem [shape: f32[1,32], index: 4, kind: input, shape index: {}]
  %s5 = inlined_call_operand.vmem [shape: f32[1,32], index: 5, kind: input, shape index: {}]
  %s6 = inlined_call_operand.vmem [shape: f32[16,32], index: 6, kind: output, shape index: {}]
  %s7 = sld [smem:[#allocation0]]
  $region65: #{transformer_encoder_forward.14} parent=0
    _
  %s9 = ssub.s32 1, %s7
  %s10 = scalar_select 0, %s9, %s7
  loop: start=0, step=1, limit=6
  $region2: #{transformer_encoder_forward.14} parent=0 // loop_pre_header
    _
  $region3: #{transformer_encoder_forward.14} parent=0 // loop_header
    %s12 = sphi 0, %s16
    %p13 = scmp.ge.s32.totalorder %s12, 6
    %s19 = sphi 0, %s31
    %s20 = sphi 0, %s27
    %s21 = sphi 0, %s19
    %s22 = sphi 0, %s20
    %s23 = sphi 0, %s21
    %s24 = sphi 0, %s22
    %s36 = sphi 0, %s38
    %s39 = sphi 0, %s36
    %s40 = sphi 0, %s39
    %s56 = sphi 0, %s40
    %s62 = sphi 0, %s64
    %s65 = sphi 0, %s62
    %s66 = sphi 0, %s65
    %s82 = sphi 0, %s66
    %s86 = sphi 0, %s86
    %s88 = sphi 0, %s86
    %s89 = sphi 0, %s88
    %s103 = sphi 0, %s89
    %s109 = sphi 0, %s111
    %s112 = sphi 0, %s109
    %s113 = sphi 0, %s112
    %s129 = sphi 0, %s113
    %s133 = sphi 0, %s133
    %s135 = sphi 0, %s133
    %s136 = sphi 0, %s135
    %s150 = sphi 0, %s136
    %s154 = sphi 0, %s154
    %s156 = sphi 0, %s154
    %s157 = sphi 0, %s156
    %s171 = sphi 0, %s157
    %s177 = sphi 0, %s179
    %s180 = sphi 0, %s177
    %s181 = sphi 0, %s180
    %s197 = sphi 0, %s181
  $region4: #{transformer_encoder_forward.14} parent=0 // loop_header_branch
    %15 = sbr.rel (%p13) target = $region8
  $region5: #{transformer_encoder_forward.14} parent=0 // loop_body
    %s17 = ssub.s32 %s12, 1
    %s18 = ssub.s32 %s12, 2
    %s25 = sadd.s32 1, %s20
    %p26 = scmp.ge.s32.totalorder %s25, 4
    %s27 = scalar_select %p26, 0, %s25
    %s28 = sadd.s32 1, %s19
    %s29 = scalar_select %p26, %s28, %s19
    %p30 = scmp.ge.s32.totalorder %s29, 1
    %s31 = scalar_select %p30, 0, %s29
    %s32 = ssub.s32 %s20, %s27
    %s33 = ssub.s32 %s19, %s31
    %s34 = sor.u32 %s32, %s33
    %p35 = scmp.eq.s32.totalorder %s34, 0
    %s37 = sadd.s32 %s36, 1
    %s38 = scalar_select %p35, %s36, %s37
    %p41 = pneg %p35
    %p42 = scmp.eq.s32.totalorder %s12, 3
    %p43 = por %p41, %p42
    %p44 = scmp.ne.s32.totalorder %s36, %s39
    %p45 = scmp.eq.s32.totalorder %s12, 0
    %p46 = por %p44, %p45
    %p47 = scmp.ne.s32.totalorder %s36, %s39
    %p48 = scmp.eq.s32.totalorder %s17, 3
    %p49 = por %p47, %p48
    %p50 = scmp.ne.s32.totalorder %s39, %s40
    %p51 = scmp.eq.s32.totalorder %s17, 0
    %p52 = por %p50, %p51
    %p53 = scmp.ne.s32.totalorder %s39, %s40
    %p54 = scmp.eq.s32.totalorder %s18, 3
    %p55 = por %p53, %p54
    %p57 = scmp.ne.s32.totalorder %s40, %s56
    %p58 = scmp.eq.s32.totalorder %s18, 0
    %p59 = por %p57, %p58
    %s60 = ssub.s32 %s20, %s27
    %p61 = scmp.eq.s32.totalorder %s60, 0
    %s63 = sadd.s32 %s62, 1
    %s64 = scalar_select %p61, %s62, %s63
    %p67 = pneg %p61
    %p68 = scmp.eq.s32.totalorder %s12, 3
    %p69 = por %p67, %p68
    %p70 = scmp.ne.s32.totalorder %s62, %s65
    %p71 = scmp.eq.s32.totalorder %s12, 0
    %p72 = por %p70, %p71
    %p73 = scmp.ne.s32.totalorder %s62, %s65
    %p74 = scmp.eq.s32.totalorder %s17, 3
    %p75 = por %p73, %p74
    %p76 = scmp.ne.s32.totalorder %s65, %s66
    %p77 = scmp.eq.s32.totalorder %s17, 0
    %p78 = por %p76, %p77
    %p79 = scmp.ne.s32.totalorder %s65, %s66
    %p80 = scmp.eq.s32.totalorder %s18, 3
    %p81 = por %p79, %p80
    %p83 = scmp.ne.s32.totalorder %s66, %s82
    %p84 = scmp.eq.s32.totalorder %s18, 0
    %p85 = por %p83, %p84
    %s87 = sadd.s32 %s86, 1
    %p90 = scmp.eq.s32.totalorder %s12, 3
    %p91 = scmp.ne.s32.totalorder %s86, %s88
    %p92 = scmp.eq.s32.totalorder %s12, 0
    %p93 = por %p91, %p92
    %p94 = scmp.ne.s32.totalorder %s86, %s88
    %p95 = scmp.eq.s32.totalorder %s17, 3
    %p96 = por %p94, %p95
    %p97 = scmp.ne.s32.totalorder %s88, %s89
    %p98 = scmp.eq.s32.totalorder %s17, 0
    %p99 = por %p97, %p98
    %p100 = scmp.ne.s32.totalorder %s88, %s89
    %p101 = scmp.eq.s32.totalorder %s18, 3
    %p102 = por %p100, %p101
    %p104 = scmp.ne.s32.totalorder %s89, %s103
    %p105 = scmp.eq.s32.totalorder %s18, 0
    %p106 = por %p104, %p105
    %s107 = ssub.s32 %s19, %s31
    %p108 = scmp.eq.s32.totalorder %s107, 0
    %s110 = sadd.s32 %s109, 1
    %s111 = scalar_select %p108, %s109, %s110
    %p114 = pneg %p108
    %p115 = scmp.eq.s32.totalorder %s12, 3
    %p116 = por %p114, %p115
    %p117 = scmp.ne.s32.totalorder %s109, %s112
    %p118 = scmp.eq.s32.totalorder %s12, 0
    %p119 = por %p117, %p118
    %p120 = scmp.ne.s32.totalorder %s109, %s112
    %p121 = scmp.eq.s32.totalorder %s17, 3
    %p122 = por %p120, %p121
    %p123 = scmp.ne.s32.totalorder %s112, %s113
    %p124 = scmp.eq.s32.totalorder %s17, 0
    %p125 = por %p123, %p124
    %p126 = scmp.ne.s32.totalorder %s112, %s113
    %p127 = scmp.eq.s32.totalorder %s18, 3
    %p128 = por %p126, %p127
    %p130 = scmp.ne.s32.totalorder %s113, %s129
    %p131 = scmp.eq.s32.totalorder %s18, 0
    %p132 = por %p130, %p131
    %s134 = sadd.s32 %s133, 1
    %p137 = scmp.eq.s32.totalorder %s12, 3
    %p138 = scmp.ne.s32.totalorder %s133, %s135
    %p139 = scmp.eq.s32.totalorder %s12, 0
    %p140 = por %p138, %p139
    %p141 = scmp.ne.s32.totalorder %s133, %s135
    %p142 = scmp.eq.s32.totalorder %s17, 3
    %p143 = por %p141, %p142
    %p144 = scmp.ne.s32.totalorder %s135, %s136
    %p145 = scmp.eq.s32.totalorder %s17, 0
    %p146 = por %p144, %p145
    %p147 = scmp.ne.s32.totalorder %s135, %s136
    %p148 = scmp.eq.s32.totalorder %s18, 3
    %p149 = por %p147, %p148
    %p151 = scmp.ne.s32.totalorder %s136, %s150
    %p152 = scmp.eq.s32.totalorder %s18, 0
    %p153 = por %p151, %p152
    %s155 = sadd.s32 %s154, 1
    %p158 = scmp.eq.s32.totalorder %s12, 3
    %p159 = scmp.ne.s32.totalorder %s154, %s156
    %p160 = scmp.eq.s32.totalorder %s12, 0
    %p161 = por %p159, %p160
    %p162 = scmp.ne.s32.totalorder %s154, %s156
    %p163 = scmp.eq.s32.totalorder %s17, 3
    %p164 = por %p162, %p163
    %p165 = scmp.ne.s32.totalorder %s156, %s157
    %p166 = scmp.eq.s32.totalorder %s17, 0
    %p167 = por %p165, %p166
    %p168 = scmp.ne.s32.totalorder %s156, %s157
    %p169 = scmp.eq.s32.totalorder %s18, 3
    %p170 = por %p168, %p169
    %p172 = scmp.ne.s32.totalorder %s157, %s171
    %p173 = scmp.eq.s32.totalorder %s18, 0
    %p174 = por %p172, %p173
    %s175 = ssub.s32 %s19, %s31
    %p176 = scmp.eq.s32.totalorder %s175, 0
    %s178 = sadd.s32 %s177, 1
    %s179 = scalar_select %p176, %s177, %s178
    %p182 = pneg %p176
    %p183 = scmp.eq.s32.totalorder %s12, 3
    %p184 = por %p182, %p183
    %p185 = scmp.ne.s32.totalorder %s177, %s180
    %p186 = scmp.eq.s32.totalorder %s12, 0
    %p187 = por %p185, %p186
    %p188 = scmp.ne.s32.totalorder %s177, %s180
    %p189 = scmp.eq.s32.totalorder %s17, 3
    %p190 = por %p188, %p189
    %p191 = scmp.ne.s32.totalorder %s180, %s181
    %p192 = scmp.eq.s32.totalorder %s17, 0
    %p193 = por %p191, %p192
    %p194 = scmp.ne.s32.totalorder %s180, %s181
    %p195 = scmp.eq.s32.totalorder %s18, 3
    %p196 = por %p194, %p195
    %p198 = scmp.ne.s32.totalorder %s181, %s197
    %p199 = scmp.eq.s32.totalorder %s18, 0
    %p200 = por %p198, %p199
    %p201 = scmp.le.s32.totalorder 1, %s12
    %p202 = scmp.lt.s32.totalorder %s12, 5
    %p203 = pnand %p201, %p202
    %p204 = pneg %p203
    // Predicated region
    $region9: #{transformer_encoder_forward.14} parent=5 // pred_check
      _
    $region10: #{transformer_encoder_forward.14} parent=5 // pred_check_branch
      %206 = sbr.rel (%p203) target = $region12
    $region11: #{transformer_encoder_forward.14} parent=5 // pred_region
      %s207 = ssub.s32 %s12, 1
      // Predicated region
      $region13: #{transformer_encoder_forward.14} parent=11 // pred_check
        %p208 = pneg %p99
      $region14: #{transformer_encoder_forward.14} parent=11 // pred_check_branch
        %210 = sbr.rel (%p208) target = $region16
      $region15: #{transformer_encoder_forward.14} parent=11 // pred_region
        _
      $region16: #{transformer_encoder_forward.14} parent=11 // pred_fallthru
        _
      // Predicated region
      $region17: #{transformer_encoder_forward.14} parent=11 // pred_check
        %p211 = pneg %p125
      $region18: #{transformer_encoder_forward.14} parent=11 // pred_check_branch
        %213 = sbr.rel (%p211) target = $region20
      $region19: #{transformer_encoder_forward.14} parent=11 // pred_region
        %s214 = smul.u32 2, %s21
        %p215 = scmp.lt.s32.totalorder %s214, 1
        %s216 = scalar_select %p215, %s214, 1
        %s217 = smul.addr %s216, 8
        %s218 = scalar_lea.vmem %s3, %s217
        %s219 = smul.u32 2, %s21
      $region20: #{transformer_encoder_forward.14} parent=11 // pred_fallthru
        _
      // Predicated region
      $region21: #{transformer_encoder_forward.14} parent=11 // pred_check
        %p220 = pneg %p146
      $region22: #{transformer_encoder_forward.14} parent=11 // pred_check_branch
        %222 = sbr.rel (%p220) target = $region24
      $region23: #{transformer_encoder_forward.14} parent=11 // pred_region
        _
      $region24: #{transformer_encoder_forward.14} parent=11 // pred_fallthru
        _
      // Predicated region
      $region25: #{transformer_encoder_forward.14} parent=11 // pred_check
        %p223 = pneg %p167
      $region26: #{transformer_encoder_forward.14} parent=11 // pred_check_branch
        %225 = sbr.rel (%p223) target = $region28
      $region27: #{transformer_encoder_forward.14} parent=11 // pred_region
        _
      $region28: #{transformer_encoder_forward.14} parent=11 // pred_fallthru
        _
    $region12: #{transformer_encoder_forward.14} parent=5 // pred_fallthru
      _
    %p226 = scmp.lt.s32.totalorder %s12, 4
    // Predicated region
    $region29: #{transformer_encoder_forward.14} parent=5 // pred_check
      %p227 = pneg %p226
    $region30: #{transformer_encoder_forward.14} parent=5 // pred_check_branch
      %229 = sbr.rel (%p227) target = $region32
    $region31: #{transformer_encoder_forward.14} parent=5 // pred_region
      // Predicated region
      $region33: #{transformer_encoder_forward.14} parent=31 // pred_check
        %p230 = pneg %p46
      $region34: #{transformer_encoder_forward.14} parent=31 // pred_check_branch
        %232 = sbr.rel (%p230) target = $region36
      $region35: #{transformer_encoder_forward.14} parent=31 // pred_region
        %s233 = smul.u32 2, %s19
        %p234 = scmp.lt.s32.totalorder %s20, 3
        %s235 = scalar_select %p234, %s20, 3
        %p236 = scmp.lt.s32.totalorder %s233, 1
        %s237 = scalar_select %p236, %s233, 1
        %s238 = smul.addr %s235, 2
        %s239 = sadd.s32 %s237, %s238
        %s240 = smul.addr %s239, 8
        %s241 = scalar_lea.vmem %s0, %s240
        %s242 = smul.u32 2, %s19
      $region36: #{transformer_encoder_forward.14} parent=31 // pred_fallthru
        _
      // Predicated region
      $region37: #{transformer_encoder_forward.14} parent=31 // pred_check
        %p243 = pneg %p72
      $region38: #{transformer_encoder_forward.14} parent=31 // pred_check_branch
        %245 = sbr.rel (%p243) target = $region40
      $region39: #{transformer_encoder_forward.14} parent=31 // pred_region
        %p246 = scmp.lt.s32.totalorder %s20, 3
        %s247 = scalar_select %p246, %s20, 3
        %s248 = smul.addr %s247, 8
        %s249 = scalar_lea.vmem %s1, %s248
      $region40: #{transformer_encoder_forward.14} parent=31 // pred_fallthru
        _
    $region32: #{transformer_encoder_forward.14} parent=5 // pred_fallthru
      _
    %p250 = scmp.le.s32.totalorder 1, %s12
    %p251 = scmp.lt.s32.totalorder %s12, 5
    %p252 = pnand %p250, %p251
    %p253 = pneg %p252
    // Predicated region
    $region41: #{transformer_encoder_forward.14} parent=5 // pred_check
      _
    $region42: #{transformer_encoder_forward.14} parent=5 // pred_check_branch
      %255 = sbr.rel (%p252) target = $region44
    $region43: #{transformer_encoder_forward.14} parent=5 // pred_region
      %s256 = ssub.s32 %s12, 1
      %s257 = smul.u32 2, %s21
      %p258 = scmp.lt.s32.totalorder %s22, 3
      %s259 = scalar_select %p258, %s22, 3
      %p260 = scmp.lt.s32.totalorder %s257, 1
      %s261 = scalar_select %p260, %s257, 1
      %s262 = smul.addr %s259, 2
      %s263 = sadd.s32 %s261, %s262
      %s264 = smul.addr %s263, 8
      %s265 = scalar_lea.vmem %s0, %s264
      %p266 = pneg %p52
      %p267 = pneg %p49
      %p268 = scmp.lt.s32.totalorder %s22, 3
      %s269 = scalar_select %p268, %s22, 3
      %s270 = smul.addr %s269, 8
      %s271 = scalar_lea.vmem %s1, %s270
      %p272 = pneg %p78
      %p273 = pneg %p75
      %p274 = pneg %p99
      %p275 = pneg %p96
      %s276 = smul.u32 2, %s21
      %p277 = scmp.lt.s32.totalorder %s276, 1
      %s278 = scalar_select %p277, %s276, 1
      %s279 = smul.addr %s278, 8
      %s280 = scalar_lea.vmem %s3, %s279
      %p281 = pneg %p125
      %p282 = pneg %p122
      %p283 = pneg %p146
      %p284 = pneg %p143
      %p285 = pneg %p167
      %p286 = pneg %p164
      %p287 = pneg %p193
      %p288 = pneg %p190
      %s289 = smul.u32 2, %s21
      %p290 = scmp.lt.s32.totalorder %s289, 1
      %s291 = scalar_select %p290, %s289, 1
      %s292 = smul.addr %s291, 8
      %s293 = scalar_lea.vmem %s6, %s292
      %s294 = smul.u32 2, %s21
      %p295 = scmp.lt.s32.totalorder %s22, 3
      %s296 = scalar_select %p295, %s22, 3
      %p297 = scmp.lt.s32.totalorder %s294, 1
      %s298 = scalar_select %p297, %s294, 1
      %s299 = smul.addr %s296, 2
      %s300 = sadd.s32 %s298, %s299
      %s301 = smul.addr %s300, 8
      %s302 = scalar_lea.vmem %s0, %s301
      %s303 = smul.u32 2, %s21
      %p304 = scmp.lt.s32.totalorder %s22, 3
      %s305 = scalar_select %p304, %s22, 3
      %s306 = smul.addr %s305, 8
      %s307 = scalar_lea.vmem %s1, %s306
      %s308 = smul.u32 2, %s21
      %p309 = scmp.lt.s32.totalorder %s308, 1
      %s310 = scalar_select %p309, %s308, 1
      %s311 = smul.addr %s310, 8
      %s312 = scalar_lea.vmem %s3, %s311
      %s313 = smul.u32 2, %s21
      %s314 = smul.u32 2, %s21
      %p315 = scmp.lt.s32.totalorder %s314, 1
      %s316 = scalar_select %p315, %s314, 1
      %s317 = smul.addr %s316, 8
      %s318 = scalar_lea.vmem %s6, %s317
      %s319 = smul.u32 2, %s21
      %p320 = scmp.eq.s32.totalorder %s22, 0
      // Predicated region
      $region45: #{transformer_encoder_forward.14} parent=43 // pred_check
        %p321 = pneg %p320
      $region46: #{transformer_encoder_forward.14} parent=43 // pred_check_branch
        %323 = sbr.rel (%p321) target = $region48
      $region47: #{transformer_encoder_forward.14} parent=43 // pred_region
        %vm324 = vcmask 261120
        %325 = vst.msk [vmem:[#allocation2] sm:$0xff] %vm324, 0.0
        %326 = vst.msk [vmem:[#allocation2 + $0x8] sm:$0xff] %vm324, 0.0
      $region48: #{transformer_encoder_forward.14} parent=43 // pred_fallthru
        _
      %v327 = vld [vmem:[#allocation2] sm:$0xff]
      %v328 = vld [vmem:[#allocation2 + $0x8] sm:$0xff]
      %v329 = vld [vmem:[%s302] sm:$0xff]
      %v330 = vld [vmem:[%s302 + $0x8] sm:$0xff]
      %v331 = vld [vmem:[%s307] sm:$0xff]
      %vm332 = vcmask 64512
      %v334 = vsel %vm332, %v329, 0
      %v337 = vsel %vm332, %v330, 0
      %339 = vmatprep.subr.mxu0 0.0
      %340 = vmatpush1.msra.mxu0 0.0
      %341 = vmatprep.subr.mxu0 0.0
      %342 = vmatpush1.msra.mxu0 0.0
      %343 = vmatprep.subr.mxu0 0.0
      %344 = vmatpush1.msra.mxu0 0.0
      %345 = vmatprep.subr.mxu0 0.0
      %346 = vmatpush1.msra.mxu0 0.0
      %347 = vmatprep.subr.mxu0 0.0
      %348 = vmatpush1.msra.mxu0 0.0
      %349 = vmatprep.subr.mxu0 0.0
      %350 = vmatpush1.msra.mxu0 0.0
      %351 = vmatprep.subr.mxu0 0.0
      %352 = vmatpush1.msra.mxu0 0.0
      %353 = vmatprep.subr.mxu0 0.0
      %354 = vmatpush1.msra.mxu0 0.0
      %355 = vmatprep.subr.mxu0 0.0
      %356 = vmatpush1.msra.mxu0 0.0
      %357 = vmatprep.subr.mxu0 0.0
      %358 = vmatpush1.msra.mxu0 0.0
      %359 = vmatprep.subr.mxu0 0.0
      %360 = vmatpush1.msra.mxu0 0.0
      %361 = vmatprep.subr.mxu0 0.0
      %362 = vmatpush1.msra.mxu0 0.0
      %363 = vmatprep.subr.mxu0 0.0
      %364 = vmatpush1.msra.mxu0 0.0
      %365 = vmatprep.subr.mxu0 0.0
      %366 = vmatpush1.msra.mxu0 0.0
      %367 = vmatprep.subr.mxu0 0.0
      %368 = vmatpush1.msra.mxu0 0.0
      %369 = vmatprep.subr.mxu0 0.0
      %370 = vmatpush1.msra.mxu0 %v331
      %371 = vmatprep.subr.mxu0 0.0
      %372 = vmatpush2.msra.mxu0 0.0
      %373 = vmatprep.subr.mxu0 0.0
      %374 = vmatpush2.msra.mxu0 0.0
      %375 = vmatprep.subr.mxu0 0.0
      %376 = vmatpush2.msra.mxu0 0.0
      %377 = vmatprep.subr.mxu0 0.0
      %378 = vmatpush2.msra.mxu0 0.0
      %379 = vmatprep.subr.mxu0 0.0
      %380 = vmatpush2.msra.mxu0 0.0
      %381 = vmatprep.subr.mxu0 0.0
      %382 = vmatpush2.msra.mxu0 0.0
      %383 = vmatprep.subr.mxu0 0.0
      %384 = vmatpush2.msra.mxu0 0.0
      %385 = vmatprep.subr.mxu0 0.0
      %386 = vmatpush2.msra.mxu0 0.0
      %387 = vmatprep.subr.mxu0 0.0
      %388 = vmatpush2.msra.mxu0 0.0
      %389 = vmatprep.subr.mxu0 0.0
      %390 = vmatpush2.msra.mxu0 0.0
      %391 = vmatprep.subr.mxu0 0.0
      %392 = vmatpush2.msra.mxu0 0.0
      %393 = vmatprep.subr.mxu0 0.0
      %394 = vmatpush2.msra.mxu0 0.0
      %395 = vmatprep.subr.mxu0 0.0
      %396 = vmatpush2.msra.mxu0 0.0
      %397 = vmatprep.subr.mxu0 0.0
      %398 = vmatpush2.msra.mxu0 0.0
      %399 = vmatprep.subr.mxu0 0.0
      %400 = vmatpush2.msra.mxu0 0.0
      %401 = vmatprep.subr.mxu0 0.0
      %402 = vmatpush2.msra.mxu0 0.0
      %403 = vmatprep.mubr.f32.mxu0 0.0
      %404 = vmatmul.mubr.f32.gmra.mxu0 %v334
      %v405 = vpop.f32.mrf.mxu0
      %v406 = vadd.f32 0.0, %v405
      %v407 = vpop.f32.mrf.mxu0
      %408 = vmatprep.mubr.f32.mxu0 0.0
      %409 = vmatmul.mubr.f32.gmra.mxu0 %v337
      %v410 = vpop.f32.mrf.mxu0
      %v411 = vadd.f32 0.0, %v410
      %v412 = vpop.f32.mrf.mxu0
      %413 = vdwg.mxu0
      %v414 = vadd.f32 %v327, %v406
      %v415 = vadd.f32 %v328, %v411
      %vm416 = vcmask 261120
      %417 = vst.msk [vmem:[#allocation2] sm:$0xff] %vm416, %v414
      %418 = vst.msk [vmem:[#allocation2 + $0x8] sm:$0xff] %vm416, %v415
      %p419 = scmp.eq.s32.totalorder %s22, 3
      // Predicated region
      $region49: #{transformer_encoder_forward.14} parent=43 // pred_check
        %p420 = pneg %p419
      $region50: #{transformer_encoder_forward.14} parent=43 // pred_check_branch
        %422 = sbr.rel (%p420) target = $region52
      $region51: #{transformer_encoder_forward.14} parent=43 // pred_region
        %v423 = vld [vmem:[#allocation2] sm:$0xff]
        %v424 = vld [vmem:[#allocation2 + $0x8] sm:$0xff]
        %v425 = vld [vmem:[%s2] sm:$0x1]
        %v427 = vlaneseq
        %v428 = vshrl.u32 %v427, 7
        %v429 = vsub.s32 0, %v428
        %v430 = vrot.slane %v425, %v429
        %v432 = vadd.f32 %v423, %v430
        %v433 = vadd.f32 %v424, %v430
        %v434 = vld [vmem:[%s312] sm:$0xff]
        %v435 = vld [vmem:[%s312 + $0x8] sm:$0xff]
        %v436 = vadd.f32 %v432, %v434
        %v437 = vadd.f32 %v433, %v435
        %v438 = vsel %vm416, %v436, 0.0
        %439 = vadd.xlane.f32.xlu0 %v438
        %v440 = vpop.xlane.xlu0 %439
        %v441 = vsel %vm416, %v437, 0.0
        %442 = vadd.xlane.f32.xlu0 %v441
        %v443 = vpop.xlane.xlu0 %442
        %v444 = vrcp.pop 32.0
        %v445 = vmul.f32 %v440, %v444
        %v446 = vmul.f32 %v443, %v444
        %v447 = vsub.f32 %v436, %v445
        %v448 = vsub.f32 %v437, %v446
        %v449 = vmul.f32 %v447, %v447
        %v450 = vmul.f32 %v448, %v448
        %v451 = vsel %vm416, %v449, 0.0
        %452 = vadd.xlane.f32.xlu0 %v451
        %v453 = vpop.xlane.xlu0 %452
        %v454 = vsel %vm416, %v450, 0.0
        %455 = vadd.xlane.f32.xlu0 %v454
        %v456 = vpop.xlane.xlu0 %455
        %v457 = vmul.f32 %v453, %v444
        %v458 = vmul.f32 %v456, %v444
        %v459 = vadd.f32 %v457, 1e-05
        %v460 = vadd.f32 %v458, 1e-05
        %v461 = vrsqrt.pop %v459
        %v462 = vrsqrt.pop %v460
        %v463 = vmul.f32 %v447, %v461
        %v464 = vmul.f32 %v448, %v462
        %v465 = vld [vmem:[%s4] sm:$0x1]
        %v467 = vlaneseq
        %v468 = vshrl.u32 %v467, 7
        %v469 = vsub.s32 0, %v468
        %v470 = vrot.slane %v465, %v469
        %v472 = vmul.f32 %v463, %v470
        %v473 = vmul.f32 %v464, %v470
        %v474 = vld [vmem:[%s5] sm:$0x1]
        %v476 = vlaneseq
        %v477 = vshrl.u32 %v476, 7
        %v478 = vsub.s32 0, %v477
        %v479 = vrot.slane %v474, %v478
        %v481 = vadd.f32 %v472, %v479
        %v482 = vadd.f32 %v473, %v479
        %483 = vst.msk [vmem:[%s318] sm:$0xff] %vm416, %v481
        %484 = vst.msk [vmem:[%s318 + $0x8] sm:$0xff] %vm416, %v482
      $region52: #{transformer_encoder_forward.14} parent=43 // pred_fallthru
        _
      %s485 = smul.u32 2, %s21
      %p486 = scmp.lt.s32.totalorder %s485, 1
      %s487 = scalar_select %p486, %s485, 1
      %s488 = smul.addr %s487, 8
      %s489 = scalar_lea.vmem %s6, %s488
      // Predicated region
      $region53: #{transformer_encoder_forward.14} parent=43 // pred_check
        %p490 = pneg %p190
      $region54: #{transformer_encoder_forward.14} parent=43 // pred_check_branch
        %492 = sbr.rel (%p490) target = $region56
      $region55: #{transformer_encoder_forward.14} parent=43 // pred_region
        %s493 = smul.u32 2, %s21
      $region56: #{transformer_encoder_forward.14} parent=43 // pred_fallthru
        _
      // Predicated region
      $region57: #{transformer_encoder_forward.14} parent=43 // pred_check
        %p494 = pneg %p190
      $region58: #{transformer_encoder_forward.14} parent=43 // pred_check_branch
        %496 = sbr.rel (%p494) target = $region60
      $region59: #{transformer_encoder_forward.14} parent=43 // pred_region
        %s497 = smul.u32 2, %s21
        %p498 = scmp.lt.s32.totalorder %s497, 1
        %s499 = scalar_select %p498, %s497, 1
        %s500 = smul.addr %s499, 8
        %s501 = scalar_lea.vmem %s6, %s500
      $region60: #{transformer_encoder_forward.14} parent=43 // pred_fallthru
        _
    $region44: #{transformer_encoder_forward.14} parent=5 // pred_fallthru
      _
    %p502 = scmp.le.s32.totalorder 2, %s12
    // Predicated region
    $region61: #{transformer_encoder_forward.14} parent=5 // pred_check
      %p503 = pneg %p502
    $region62: #{transformer_encoder_forward.14} parent=5 // pred_check_branch
      %505 = sbr.rel (%p503) target = $region64
    $region63: #{transformer_encoder_forward.14} parent=5 // pred_region
      %s506 = ssub.s32 %s12, 2
    $region64: #{transformer_encoder_forward.14} parent=5 // pred_fallthru
      _
  $region6: #{transformer_encoder_forward.14} parent=0 // loop_footer
    %s16 = sadd.s32 1, %s12
  $region7: #{transformer_encoder_forward.14} parent=0 // loop_footer_branch
    %11 = sbr.rel target = $region3
  $region8: #{transformer_encoder_forward.14} parent=0 // loop_exit
    _

// kernel: transformer_encoder_forward.15
$region0: #{transformer_encoder_forward.15}
  #allocation0 [shape = 'u32[]', space=smem, size = 0x4, offset = 0x4, fixed_abs, tag = 'smem constant byte address 0x4 - core index']
  #allocation1 [shape = 'u32[144,128]{1,0:T(1,128)}', space=vmem, size = 0x12000, scoped, tag = 'internal scratch']
  %s0 = inlined_call_operand.vmem [shape: f32[16,32], index: 0, kind: input, shape index: {}]
  %s1 = inlined_call_operand.vmem [shape: f32[1,32,64], index: 1, kind: input, shape index: {}]
  %s2 = inlined_call_operand.vmem [shape: f32[1,1,64], index: 2, kind: input, shape index: {}]
  %s3 = inlined_call_operand.vmem [shape: f32[16,64], index: 3, kind: output, shape index: {}]
  %s4 = sld [smem:[#allocation0]]
  $region22: #{transformer_encoder_forward.15} parent=0
    _
  %s6 = ssub.s32 1, %s4
  %s7 = scalar_select 0, %s6, %s4
  // Predicated region
  $region2: #{transformer_encoder_forward.15} parent=0 // pred_check
    _
  $region3: #{transformer_encoder_forward.15} parent=0 // pred_check_branch
    %9 = sbr.rel (0) target = $region5
  $region4: #{transformer_encoder_forward.15} parent=0 // pred_region
    _
  $region5: #{transformer_encoder_forward.15} parent=0 // pred_fallthru
    _
  // Predicated region
  $region6: #{transformer_encoder_forward.15} parent=0 // pred_check
    _
  $region7: #{transformer_encoder_forward.15} parent=0 // pred_check_branch
    %11 = sbr.rel (0) target = $region9
  $region8: #{transformer_encoder_forward.15} parent=0 // pred_region
    _
  $region9: #{transformer_encoder_forward.15} parent=0 // pred_fallthru
    _
  // Predicated region
  $region10: #{transformer_encoder_forward.15} parent=0 // pred_check
    _
  $region11: #{transformer_encoder_forward.15} parent=0 // pred_check_branch
    %13 = sbr.rel (0) target = $region13
  $region12: #{transformer_encoder_forward.15} parent=0 // pred_region
    _
  $region13: #{transformer_encoder_forward.15} parent=0 // pred_fallthru
    _
  %v14 = vld [vmem:[%s0] sm:$0xff]
  %v15 = vld [vmem:[%s0 + $0x8] sm:$0xff]
  %v16 = vld [vmem:[%s1] sm:$0xff]
  %v17 = vld [vmem:[%s1 + $0x8] sm:$0xff]
  %v18 = vld [vmem:[%s1 + $0x10] sm:$0xff]
  %v19 = vld [vmem:[%s1 + $0x18] sm:$0xff]
  %v20 = vld [vmem:[%s2] sm:$0x1]
  %v22 = vlaneseq
  %v23 = vshrl.u32 %v22, 7
  %v24 = vsub.s32 0, %v23
  %v25 = vrot.slane %v20, %v24
  %vm27 = vcmask 261120
  %v29 = vsel %vm27, %v14, 0
  %v32 = vsel %vm27, %v15, 0
  %34 = vmatprep.subr.mxu0 0.0
  %35 = vmatpush1.msra.mxu0 0.0
  %36 = vmatprep.subr.mxu0 0.0
  %37 = vmatpush1.msra.mxu0 0.0
  %38 = vmatprep.subr.mxu0 0.0
  %39 = vmatpush1.msra.mxu0 0.0
  %40 = vmatprep.subr.mxu0 0.0
  %41 = vmatpush1.msra.mxu0 0.0
  %42 = vmatprep.subr.mxu0 0.0
  %43 = vmatpush1.msra.mxu0 0.0
  %44 = vmatprep.subr.mxu0 0.0
  %45 = vmatpush1.msra.mxu0 0.0
  %46 = vmatprep.subr.mxu0 0.0
  %47 = vmatpush1.msra.mxu0 0.0
  %48 = vmatprep.subr.mxu0 0.0
  %49 = vmatpush1.msra.mxu0 0.0
  %50 = vmatprep.subr.mxu0 0.0
  %51 = vmatpush1.msra.mxu0 0.0
  %52 = vmatprep.subr.mxu0 0.0
  %53 = vmatpush1.msra.mxu0 0.0
  %54 = vmatprep.subr.mxu0 0.0
  %55 = vmatpush1.msra.mxu0 0.0
  %56 = vmatprep.subr.mxu0 0.0
  %57 = vmatpush1.msra.mxu0 0.0
  %58 = vmatprep.subr.mxu0 0.0
  %59 = vmatpush1.msra.mxu0 %v19
  %60 = vmatprep.subr.mxu0 0.0
  %61 = vmatpush1.msra.mxu0 %v18
  %62 = vmatprep.subr.mxu0 0.0
  %63 = vmatpush1.msra.mxu0 %v17
  %64 = vmatprep.subr.mxu0 0.0
  %65 = vmatpush1.msra.mxu0 %v16
  %66 = vmatprep.subr.mxu0 0.0
  %67 = vmatpush2.msra.mxu0 0.0
  %68 = vmatprep.subr.mxu0 0.0
  %69 = vmatpush2.msra.mxu0 0.0
  %70 = vmatprep.subr.mxu0 0.0
  %71 = vmatpush2.msra.mxu0 0.0
  %72 = vmatprep.subr.mxu0 0.0
  %73 = vmatpush2.msra.mxu0 0.0
  %74 = vmatprep.subr.mxu0 0.0
  %75 = vmatpush2.msra.mxu0 0.0
  %76 = vmatprep.subr.mxu0 0.0
  %77 = vmatpush2.msra.mxu0 0.0
  %78 = vmatprep.subr.mxu0 0.0
  %79 = vmatpush2.msra.mxu0 0.0
  %80 = vmatprep.subr.mxu0 0.0
  %81 = vmatpush2.msra.mxu0 0.0
  %82 = vmatprep.subr.mxu0 0.0
  %83 = vmatpush2.msra.mxu0 0.0
  %84 = vmatprep.subr.mxu0 0.0
  %85 = vmatpush2.msra.mxu0 0.0
  %86 = vmatprep.subr.mxu0 0.0
  %87 = vmatpush2.msra.mxu0 0.0
  %88 = vmatprep.subr.mxu0 0.0
  %89 = vmatpush2.msra.mxu0 0.0
  %90 = vmatprep.subr.mxu0 0.0
  %91 = vmatpush2.msra.mxu0 0.0
  %92 = vmatprep.subr.mxu0 0.0
  %93 = vmatpush2.msra.mxu0 0.0
  %94 = vmatprep.subr.mxu0 0.0
  %95 = vmatpush2.msra.mxu0 0.0
  %96 = vmatprep.subr.mxu0 0.0
  %97 = vmatpush2.msra.mxu0 0.0
  %98 = vmatprep.mubr.f32.mxu0 0.0
  %99 = vmatmul.mubr.f32.gmra.mxu0 %v29
  %v100 = vpop.f32.mrf.mxu0
  %v101 = vadd.f32 %v25, %v100
  %v102 = vpop.f32.mrf.mxu0
  %103 = vmatprep.mubr.f32.mxu0 0.0
  %104 = vmatmul.mubr.f32.gmra.mxu0 %v32
  %v105 = vpop.f32.mrf.mxu0
  %v106 = vadd.f32 %v25, %v105
  %v107 = vpop.f32.mrf.mxu0
  %108 = vdwg.mxu0
  %v109 = vmax.f32 %v101, 0.0
  %v110 = vmax.f32 %v106, 0.0
  %vm111 = vcmask 523264
  %112 = vst.msk [vmem:[%s3] sm:$0xff] %vm111, %v109
  %113 = vst.msk [vmem:[%s3 + $0x8] sm:$0xff] %vm111, %v110
  // Predicated region
  $region14: #{transformer_encoder_forward.15} parent=0 // pred_check
    _
  $region15: #{transformer_encoder_forward.15} parent=0 // pred_check_branch
    %115 = sbr.rel (0) target = $region17
  $region16: #{transformer_encoder_forward.15} parent=0 // pred_region
    _
  $region17: #{transformer_encoder_forward.15} parent=0 // pred_fallthru
    _
  // Predicated region
  $region18: #{transformer_encoder_forward.15} parent=0 // pred_check
    _
  $region19: #{transformer_encoder_forward.15} parent=0 // pred_check_branch
    %117 = sbr.rel (0) target = $region21
  $region20: #{transformer_encoder_forward.15} parent=0 // pred_region
    _
  $region21: #{transformer_encoder_forward.15} parent=0 // pred_fallthru
    _

// kernel: transformer_encoder_forward.16
$region0: #{transformer_encoder_forward.16}
  #allocation0 [shape = 'u32[]', space=smem, size = 0x4, offset = 0x4, fixed_abs, tag = 'smem constant byte address 0x4 - core index']
  #allocation1 [shape = 'u32[144,128]{1,0:T(1,128)}', space=vmem, size = 0x12000, scoped, tag = 'internal scratch']
  #allocation2 [shape = 'f32[16,32]{1,0:T(8,128)}', space=vmem, size = 0x2000, scoped, tag = 'scratch operand']
  %s0 = inlined_call_operand.vmem [shape: f32[1,16,64], index: 0, kind: input, shape index: {}]
  %s1 = inlined_call_operand.vmem [shape: f32[1,64,32], index: 1, kind: input, shape index: {}]
  %s2 = inlined_call_operand.vmem [shape: f32[1,32], index: 2, kind: input, shape index: {}]
  %s3 = inlined_call_operand.vmem [shape: f32[16,32], index: 3, kind: input, shape index: {}]
  %s4 = inlined_call_operand.vmem [shape: f32[1,32], index: 4, kind: input, shape index: {}]
  %s5 = inlined_call_operand.vmem [shape: f32[1,32], index: 5, kind: input, shape index: {}]
  %s6 = inlined_call_operand.vmem [shape: f32[16,32], index: 6, kind: output, shape index: {}]
  %s7 = sld [smem:[#allocation0]]
  $region42: #{transformer_encoder_forward.16} parent=0
    _
  %s9 = ssub.s32 1, %s7
  %s10 = scalar_select 0, %s9, %s7
  // Predicated region
  $region2: #{transformer_encoder_forward.16} parent=0 // pred_check
    _
  $region3: #{transformer_encoder_forward.16} parent=0 // pred_check_branch
    %12 = sbr.rel (0) target = $region5
  $region4: #{transformer_encoder_forward.16} parent=0 // pred_region
    _
  $region5: #{transformer_encoder_forward.16} parent=0 // pred_fallthru
    _
  // Predicated region
  $region6: #{transformer_encoder_forward.16} parent=0 // pred_check
    _
  $region7: #{transformer_encoder_forward.16} parent=0 // pred_check_branch
    %14 = sbr.rel (0) target = $region9
  $region8: #{transformer_encoder_forward.16} parent=0 // pred_region
    _
  $region9: #{transformer_encoder_forward.16} parent=0 // pred_fallthru
    _
  // Predicated region
  $region10: #{transformer_encoder_forward.16} parent=0 // pred_check
    _
  $region11: #{transformer_encoder_forward.16} parent=0 // pred_check_branch
    %16 = sbr.rel (0) target = $region13
  $region12: #{transformer_encoder_forward.16} parent=0 // pred_region
    _
  $region13: #{transformer_encoder_forward.16} parent=0 // pred_fallthru
    _
  // Predicated region
  $region14: #{transformer_encoder_forward.16} parent=0 // pred_check
    _
  $region15: #{transformer_encoder_forward.16} parent=0 // pred_check_branch
    %18 = sbr.rel (0) target = $region17
  $region16: #{transformer_encoder_forward.16} parent=0 // pred_region
    _
  $region17: #{transformer_encoder_forward.16} parent=0 // pred_fallthru
    _
  // Predicated region
  $region18: #{transformer_encoder_forward.16} parent=0 // pred_check
    _
  $region19: #{transformer_encoder_forward.16} parent=0 // pred_check_branch
    %20 = sbr.rel (0) target = $region21
  $region20: #{transformer_encoder_forward.16} parent=0 // pred_region
    _
  $region21: #{transformer_encoder_forward.16} parent=0 // pred_fallthru
    _
  // Predicated region
  $region22: #{transformer_encoder_forward.16} parent=0 // pred_check
    _
  $region23: #{transformer_encoder_forward.16} parent=0 // pred_check_branch
    %22 = sbr.rel (0) target = $region25
  $region24: #{transformer_encoder_forward.16} parent=0 // pred_region
    _
  $region25: #{transformer_encoder_forward.16} parent=0 // pred_fallthru
    _
  %p23 = scmp.eq.s32.totalorder 0, 0
  // Predicated region
  $region26: #{transformer_encoder_forward.16} parent=0 // pred_check
    %p24 = pneg %p23
  $region27: #{transformer_encoder_forward.16} parent=0 // pred_check_branch
    %26 = sbr.rel (%p24) target = $region29
  $region28: #{transformer_encoder_forward.16} parent=0 // pred_region
    %vm27 = vcmask 261120
    %28 = vst.msk [vmem:[#allocation2] sm:$0xff] %vm27, 0.0
    %29 = vst.msk [vmem:[#allocation2 + $0x8] sm:$0xff] %vm27, 0.0
  $region29: #{transformer_encoder_forward.16} parent=0 // pred_fallthru
    _
  %v30 = vld [vmem:[#allocation2] sm:$0xff]
  %v31 = vld [vmem:[#allocation2 + $0x8] sm:$0xff]
  %v32 = vld [vmem:[%s0] sm:$0xff]
  %v33 = vld [vmem:[%s0 + $0x8] sm:$0xff]
  %v34 = vld [vmem:[%s1] sm:$0xff]
  %v35 = vld [vmem:[%s1 + $0x8] sm:$0xff]
  %v36 = vld [vmem:[%s1 + $0x10] sm:$0xff]
  %v37 = vld [vmem:[%s1 + $0x18] sm:$0xff]
  %v38 = vld [vmem:[%s1 + $0x20] sm:$0xff]
  %v39 = vld [vmem:[%s1 + $0x28] sm:$0xff]
  %v40 = vld [vmem:[%s1 + $0x30] sm:$0xff]
  %v41 = vld [vmem:[%s1 + $0x38] sm:$0xff]
  %vm42 = vcmask 523264
  %v44 = vsel %vm42, %v32, 0
  %v47 = vsel %vm42, %v33, 0
  %49 = vmatprep.subr.mxu0 0.0
  %50 = vmatpush1.msra.mxu0 0.0
  %51 = vmatprep.subr.mxu0 0.0
  %52 = vmatpush1.msra.mxu0 0.0
  %53 = vmatprep.subr.mxu0 0.0
  %54 = vmatpush1.msra.mxu0 0.0
  %55 = vmatprep.subr.mxu0 0.0
  %56 = vmatpush1.msra.mxu0 0.0
  %57 = vmatprep.subr.mxu0 0.0
  %58 = vmatpush1.msra.mxu0 0.0
  %59 = vmatprep.subr.mxu0 0.0
  %60 = vmatpush1.msra.mxu0 0.0
  %61 = vmatprep.subr.mxu0 0.0
  %62 = vmatpush1.msra.mxu0 0.0
  %63 = vmatprep.subr.mxu0 0.0
  %64 = vmatpush1.msra.mxu0 0.0
  %65 = vmatprep.subr.mxu0 0.0
  %66 = vmatpush1.msra.mxu0 %v41
  %67 = vmatprep.subr.mxu0 0.0
  %68 = vmatpush1.msra.mxu0 %v40
  %69 = vmatprep.subr.mxu0 0.0
  %70 = vmatpush1.msra.mxu0 %v39
  %71 = vmatprep.subr.mxu0 0.0
  %72 = vmatpush1.msra.mxu0 %v38
  %73 = vmatprep.subr.mxu0 0.0
  %74 = vmatpush1.msra.mxu0 %v37
  %75 = vmatprep.subr.mxu0 0.0
  %76 = vmatpush1.msra.mxu0 %v36
  %77 = vmatprep.subr.mxu0 0.0
  %78 = vmatpush1.msra.mxu0 %v35
  %79 = vmatprep.subr.mxu0 0.0
  %80 = vmatpush1.msra.mxu0 %v34
  %81 = vmatprep.subr.mxu0 0.0
  %82 = vmatpush2.msra.mxu0 0.0
  %83 = vmatprep.subr.mxu0 0.0
  %84 = vmatpush2.msra.mxu0 0.0
  %85 = vmatprep.subr.mxu0 0.0
  %86 = vmatpush2.msra.mxu0 0.0
  %87 = vmatprep.subr.mxu0 0.0
  %88 = vmatpush2.msra.mxu0 0.0
  %89 = vmatprep.subr.mxu0 0.0
  %90 = vmatpush2.msra.mxu0 0.0
  %91 = vmatprep.subr.mxu0 0.0
  %92 = vmatpush2.msra.mxu0 0.0
  %93 = vmatprep.subr.mxu0 0.0
  %94 = vmatpush2.msra.mxu0 0.0
  %95 = vmatprep.subr.mxu0 0.0
  %96 = vmatpush2.msra.mxu0 0.0
  %97 = vmatprep.subr.mxu0 0.0
  %98 = vmatpush2.msra.mxu0 0.0
  %99 = vmatprep.subr.mxu0 0.0
  %100 = vmatpush2.msra.mxu0 0.0
  %101 = vmatprep.subr.mxu0 0.0
  %102 = vmatpush2.msra.mxu0 0.0
  %103 = vmatprep.subr.mxu0 0.0
  %104 = vmatpush2.msra.mxu0 0.0
  %105 = vmatprep.subr.mxu0 0.0
  %106 = vmatpush2.msra.mxu0 0.0
  %107 = vmatprep.subr.mxu0 0.0
  %108 = vmatpush2.msra.mxu0 0.0
  %109 = vmatprep.subr.mxu0 0.0
  %110 = vmatpush2.msra.mxu0 0.0
  %111 = vmatprep.subr.mxu0 0.0
  %112 = vmatpush2.msra.mxu0 0.0
  %113 = vmatprep.mubr.f32.mxu0 0.0
  %114 = vmatmul.mubr.f32.gmra.mxu0 %v44
  %v115 = vpop.f32.mrf.mxu0
  %v116 = vadd.f32 0.0, %v115
  %v117 = vpop.f32.mrf.mxu0
  %118 = vmatprep.mubr.f32.mxu0 0.0
  %119 = vmatmul.mubr.f32.gmra.mxu0 %v47
  %v120 = vpop.f32.mrf.mxu0
  %v121 = vadd.f32 0.0, %v120
  %v122 = vpop.f32.mrf.mxu0
  %123 = vdwg.mxu0
  %v124 = vadd.f32 %v30, %v116
  %v125 = vadd.f32 %v31, %v121
  %vm126 = vcmask 261120
  %127 = vst.msk [vmem:[#allocation2] sm:$0xff] %vm126, %v124
  %128 = vst.msk [vmem:[#allocation2 + $0x8] sm:$0xff] %vm126, %v125
  // Predicated region
  $region30: #{transformer_encoder_forward.16} parent=0 // pred_check
    %p129 = pneg %p23
  $region31: #{transformer_encoder_forward.16} parent=0 // pred_check_branch
    %131 = sbr.rel (%p129) target = $region33
  $region32: #{transformer_encoder_forward.16} parent=0 // pred_region
    %v132 = vld [vmem:[#allocation2] sm:$0xff]
    %v133 = vld [vmem:[#allocation2 + $0x8] sm:$0xff]
    %v134 = vld [vmem:[%s2] sm:$0x1]
    %v136 = vlaneseq
    %v137 = vshrl.u32 %v136, 7
    %v138 = vsub.s32 0, %v137
    %v139 = vrot.slane %v134, %v138
    %v141 = vadd.f32 %v132, %v139
    %v142 = vadd.f32 %v133, %v139
    %v143 = vld [vmem:[%s3] sm:$0xff]
    %v144 = vld [vmem:[%s3 + $0x8] sm:$0xff]
    %v145 = vadd.f32 %v141, %v143
    %v146 = vadd.f32 %v142, %v144
    %v147 = vsel %vm126, %v145, 0.0
    %148 = vadd.xlane.f32.xlu0 %v147
    %v149 = vpop.xlane.xlu0 %148
    %v150 = vsel %vm126, %v146, 0.0
    %151 = vadd.xlane.f32.xlu0 %v150
    %v152 = vpop.xlane.xlu0 %151
    %v153 = vrcp.pop 32.0
    %v154 = vmul.f32 %v149, %v153
    %v155 = vmul.f32 %v152, %v153
    %v156 = vsub.f32 %v145, %v154
    %v157 = vsub.f32 %v146, %v155
    %v158 = vmul.f32 %v156, %v156
    %v159 = vmul.f32 %v157, %v157
    %v160 = vsel %vm126, %v158, 0.0
    %161 = vadd.xlane.f32.xlu0 %v160
    %v162 = vpop.xlane.xlu0 %161
    %v163 = vsel %vm126, %v159, 0.0
    %164 = vadd.xlane.f32.xlu0 %v163
    %v165 = vpop.xlane.xlu0 %164
    %v166 = vmul.f32 %v162, %v153
    %v167 = vmul.f32 %v165, %v153
    %v168 = vadd.f32 %v166, 1e-05
    %v169 = vadd.f32 %v167, 1e-05
    %v170 = vrsqrt.pop %v168
    %v171 = vrsqrt.pop %v169
    %v172 = vmul.f32 %v156, %v170
    %v173 = vmul.f32 %v157, %v171
    %v174 = vld [vmem:[%s4] sm:$0x1]
    %v176 = vlaneseq
    %v177 = vshrl.u32 %v176, 7
    %v178 = vsub.s32 0, %v177
    %v179 = vrot.slane %v174, %v178
    %v181 = vmul.f32 %v172, %v179
    %v182 = vmul.f32 %v173, %v179
    %v183 = vld [vmem:[%s5] sm:$0x1]
    %v185 = vlaneseq
    %v186 = vshrl.u32 %v185, 7
    %v187 = vsub.s32 0, %v186
    %v188 = vrot.slane %v183, %v187
    %v190 = vadd.f32 %v181, %v188
    %v191 = vadd.f32 %v182, %v188
    %192 = vst.msk [vmem:[%s6] sm:$0xff] %vm126, %v190
    %193 = vst.msk [vmem:[%s6 + $0x8] sm:$0xff] %vm126, %v191
  $region33: #{transformer_encoder_forward.16} parent=0 // pred_fallthru
    _
  // Predicated region
  $region34: #{transformer_encoder_forward.16} parent=0 // pred_check
    _
  $region35: #{transformer_encoder_forward.16} parent=0 // pred_check_branch
    %195 = sbr.rel (0) target = $region37
  $region36: #{transformer_encoder_forward.16} parent=0 // pred_region
    _
  $region37: #{transformer_encoder_forward.16} parent=0 // pred_fallthru
    _
  // Predicated region
  $region38: #{transformer_encoder_forward.16} parent=0 // pred_check
    _
  $region39: #{transformer_encoder_forward.16} parent=0 // pred_check_branch
    %197 = sbr.rel (0) target = $region41
  $region40: #{transformer_encoder_forward.16} parent=0 // pred_region
    _
  $region41: #{transformer_encoder_forward.16} parent=0 // pred_fallthru
    _

// kernel: transformer_encoder_forward.21
$region0: #{transformer_encoder_forward.21}
  #allocation0 [shape = 'u32[]', space=smem, size = 0x4, offset = 0x4, fixed_abs, tag = 'smem constant byte address 0x4 - core index']
  #allocation1 [shape = 'u32[144,128]{1,0:T(1,128)}', space=vmem, size = 0x12000, scoped, tag = 'internal scratch']
  #allocation2 [shape = 'f32[16,32]{1,0:T(8,128)}', space=vmem, size = 0x2000, scoped, tag = 'scratch operand']
  %s0 = inlined_call_operand.vmem [shape: f32[1,16,64], index: 0, kind: input, shape index: {}]
  %s1 = inlined_call_operand.vmem [shape: f32[1,64,32], index: 1, kind: input, shape index: {}]
  %s2 = inlined_call_operand.vmem [shape: f32[1,32], index: 2, kind: input, shape index: {}]
  %s3 = inlined_call_operand.vmem [shape: f32[16,32], index: 3, kind: input, shape index: {}]
  %s4 = inlined_call_operand.vmem [shape: f32[1,32], index: 4, kind: input, shape index: {}]
  %s5 = inlined_call_operand.vmem [shape: f32[1,32], index: 5, kind: input, shape index: {}]
  %s6 = inlined_call_operand.hbm [shape: f32[16,32], index: 6, kind: output, shape index: {}]
  %s7 = sld [smem:[#allocation0]]
  $region42: #{transformer_encoder_forward.21} parent=0
    _
  %s9 = ssub.s32 1, %s7
  %s10 = scalar_select 0, %s9, %s7
  $region1: #{transformer_encoder_forward.21} parent=0
    #allocation3 [shape = 'u8[8192]{0}', space=vmem, size = 0x2000, scoped, tag = 'output window, operand 0, single buffered']
    #allocation4 [shape = 's32[1]{0}', space=sflag, size = 0x4, scoped, tag = 'scoped memory for transformer_encoder_forward.21']
    %11 = vsyncpa [#allocation4], 0
    // Predicated region
    $region2: #{transformer_encoder_forward.21} parent=1 // pred_check
      _
    $region3: #{transformer_encoder_forward.21} parent=1 // pred_check_branch
      %13 = sbr.rel (0) target = $region5
    $region4: #{transformer_encoder_forward.21} parent=1 // pred_region
      _
    $region5: #{transformer_encoder_forward.21} parent=1 // pred_fallthru
      _
    // Predicated region
    $region6: #{transformer_encoder_forward.21} parent=1 // pred_check
      _
    $region7: #{transformer_encoder_forward.21} parent=1 // pred_check_branch
      %15 = sbr.rel (0) target = $region9
    $region8: #{transformer_encoder_forward.21} parent=1 // pred_region
      _
    $region9: #{transformer_encoder_forward.21} parent=1 // pred_fallthru
      _
    // Predicated region
    $region10: #{transformer_encoder_forward.21} parent=1 // pred_check
      _
    $region11: #{transformer_encoder_forward.21} parent=1 // pred_check_branch
      %17 = sbr.rel (0) target = $region13
    $region12: #{transformer_encoder_forward.21} parent=1 // pred_region
      _
    $region13: #{transformer_encoder_forward.21} parent=1 // pred_fallthru
      _
    // Predicated region
    $region14: #{transformer_encoder_forward.21} parent=1 // pred_check
      _
    $region15: #{transformer_encoder_forward.21} parent=1 // pred_check_branch
      %19 = sbr.rel (0) target = $region17
    $region16: #{transformer_encoder_forward.21} parent=1 // pred_region
      _
    $region17: #{transformer_encoder_forward.21} parent=1 // pred_fallthru
      _
    // Predicated region
    $region18: #{transformer_encoder_forward.21} parent=1 // pred_check
      _
    $region19: #{transformer_encoder_forward.21} parent=1 // pred_check_branch
      %21 = sbr.rel (0) target = $region21
    $region20: #{transformer_encoder_forward.21} parent=1 // pred_region
      _
    $region21: #{transformer_encoder_forward.21} parent=1 // pred_fallthru
      _
    // Predicated region
    $region22: #{transformer_encoder_forward.21} parent=1 // pred_check
      _
    $region23: #{transformer_encoder_forward.21} parent=1 // pred_check_branch
      %23 = sbr.rel (0) target = $region25
    $region24: #{transformer_encoder_forward.21} parent=1 // pred_region
      _
    $region25: #{transformer_encoder_forward.21} parent=1 // pred_fallthru
      _
    %p24 = scmp.eq.s32.totalorder 0, 0
    // Predicated region
    $region26: #{transformer_encoder_forward.21} parent=1 // pred_check
      %p25 = pneg %p24
    $region27: #{transformer_encoder_forward.21} parent=1 // pred_check_branch
      %27 = sbr.rel (%p25) target = $region29
    $region28: #{transformer_encoder_forward.21} parent=1 // pred_region
      %vm28 = vcmask 261120
      %29 = vst.msk [vmem:[#allocation2] sm:$0xff] %vm28, 0.0
      %30 = vst.msk [vmem:[#allocation2 + $0x8] sm:$0xff] %vm28, 0.0
    $region29: #{transformer_encoder_forward.21} parent=1 // pred_fallthru
      _
    %v31 = vld [vmem:[#allocation2] sm:$0xff]
    %v32 = vld [vmem:[#allocation2 + $0x8] sm:$0xff]
    %v33 = vld [vmem:[%s0] sm:$0xff]
    %v34 = vld [vmem:[%s0 + $0x8] sm:$0xff]
    %v35 = vld [vmem:[%s1] sm:$0xff]
    %v36 = vld [vmem:[%s1 + $0x8] sm:$0xff]
    %v37 = vld [vmem:[%s1 + $0x10] sm:$0xff]
    %v38 = vld [vmem:[%s1 + $0x18] sm:$0xff]
    %v39 = vld [vmem:[%s1 + $0x20] sm:$0xff]
    %v40 = vld [vmem:[%s1 + $0x28] sm:$0xff]
    %v41 = vld [vmem:[%s1 + $0x30] sm:$0xff]
    %v42 = vld [vmem:[%s1 + $0x38] sm:$0xff]
    %vm43 = vcmask 523264
    %v45 = vsel %vm43, %v33, 0
    %v48 = vsel %vm43, %v34, 0
    %50 = vmatprep.subr.mxu0 0.0
    %51 = vmatpush1.msra.mxu0 0.0
    %52 = vmatprep.subr.mxu0 0.0
    %53 = vmatpush1.msra.mxu0 0.0
    %54 = vmatprep.subr.mxu0 0.0
    %55 = vmatpush1.msra.mxu0 0.0
    %56 = vmatprep.subr.mxu0 0.0
    %57 = vmatpush1.msra.mxu0 0.0
    %58 = vmatprep.subr.mxu0 0.0
    %59 = vmatpush1.msra.mxu0 0.0
    %60 = vmatprep.subr.mxu0 0.0
    %61 = vmatpush1.msra.mxu0 0.0
    %62 = vmatprep.subr.mxu0 0.0
    %63 = vmatpush1.msra.mxu0 0.0
    %64 = vmatprep.subr.mxu0 0.0
    %65 = vmatpush1.msra.mxu0 0.0
    %66 = vmatprep.subr.mxu0 0.0
    %67 = vmatpush1.msra.mxu0 %v42
    %68 = vmatprep.subr.mxu0 0.0
    %69 = vmatpush1.msra.mxu0 %v41
    %70 = vmatprep.subr.mxu0 0.0
    %71 = vmatpush1.msra.mxu0 %v40
    %72 = vmatprep.subr.mxu0 0.0
    %73 = vmatpush1.msra.mxu0 %v39
    %74 = vmatprep.subr.mxu0 0.0
    %75 = vmatpush1.msra.mxu0 %v38
    %76 = vmatprep.subr.mxu0 0.0
    %77 = vmatpush1.msra.mxu0 %v37
    %78 = vmatprep.subr.mxu0 0.0
    %79 = vmatpush1.msra.mxu0 %v36
    %80 = vmatprep.subr.mxu0 0.0
    %81 = vmatpush1.msra.mxu0 %v35
    %82 = vmatprep.subr.mxu0 0.0
    %83 = vmatpush2.msra.mxu0 0.0
    %84 = vmatprep.subr.mxu0 0.0
    %85 = vmatpush2.msra.mxu0 0.0
    %86 = vmatprep.subr.mxu0 0.0
    %87 = vmatpush2.msra.mxu0 0.0
    %88 = vmatprep.subr.mxu0 0.0
    %89 = vmatpush2.msra.mxu0 0.0
    %90 = vmatprep.subr.mxu0 0.0
    %91 = vmatpush2.msra.mxu0 0.0
    %92 = vmatprep.subr.mxu0 0.0
    %93 = vmatpush2.msra.mxu0 0.0
    %94 = vmatprep.subr.mxu0 0.0
    %95 = vmatpush2.msra.mxu0 0.0
    %96 = vmatprep.subr.mxu0 0.0
    %97 = vmatpush2.msra.mxu0 0.0
    %98 = vmatprep.subr.mxu0 0.0
    %99 = vmatpush2.msra.mxu0 0.0
    %100 = vmatprep.subr.mxu0 0.0
    %101 = vmatpush2.msra.mxu0 0.0
    %102 = vmatprep.subr.mxu0 0.0
    %103 = vmatpush2.msra.mxu0 0.0
    %104 = vmatprep.subr.mxu0 0.0
    %105 = vmatpush2.msra.mxu0 0.0
    %106 = vmatprep.subr.mxu0 0.0
    %107 = vmatpush2.msra.mxu0 0.0
    %108 = vmatprep.subr.mxu0 0.0
    %109 = vmatpush2.msra.mxu0 0.0
    %110 = vmatprep.subr.mxu0 0.0
    %111 = vmatpush2.msra.mxu0 0.0
    %112 = vmatprep.subr.mxu0 0.0
    %113 = vmatpush2.msra.mxu0 0.0
    %114 = vmatprep.mubr.f32.mxu0 0.0
    %115 = vmatmul.mubr.f32.gmra.mxu0 %v45
    %v116 = vpop.f32.mrf.mxu0
    %v117 = vadd.f32 0.0, %v116
    %v118 = vpop.f32.mrf.mxu0
    %119 = vmatprep.mubr.f32.mxu0 0.0
    %120 = vmatmul.mubr.f32.gmra.mxu0 %v48
    %v121 = vpop.f32.mrf.mxu0
    %v122 = vadd.f32 0.0, %v121
    %v123 = vpop.f32.mrf.mxu0
    %124 = vdwg.mxu0
    %v125 = vadd.f32 %v31, %v117
    %v126 = vadd.f32 %v32, %v122
    %vm127 = vcmask 261120
    %128 = vst.msk [vmem:[#allocation2] sm:$0xff] %vm127, %v125
    %129 = vst.msk [vmem:[#allocation2 + $0x8] sm:$0xff] %vm127, %v126
    // Predicated region
    $region30: #{transformer_encoder_forward.21} parent=1 // pred_check
      %p130 = pneg %p24
    $region31: #{transformer_encoder_forward.21} parent=1 // pred_check_branch
      %132 = sbr.rel (%p130) target = $region33
    $region32: #{transformer_encoder_forward.21} parent=1 // pred_region
      %v133 = vld [vmem:[#allocation2] sm:$0xff]
      %v134 = vld [vmem:[#allocation2 + $0x8] sm:$0xff]
      %v135 = vld [vmem:[%s2] sm:$0x1]
      %v137 = vlaneseq
      %v138 = vshrl.u32 %v137, 7
      %v139 = vsub.s32 0, %v138
      %v140 = vrot.slane %v135, %v139
      %v142 = vadd.f32 %v133, %v140
      %v143 = vadd.f32 %v134, %v140
      %v144 = vld [vmem:[%s3] sm:$0xff]
      %v145 = vld [vmem:[%s3 + $0x8] sm:$0xff]
      %v146 = vadd.f32 %v142, %v144
      %v147 = vadd.f32 %v143, %v145
      %v148 = vsel %vm127, %v146, 0.0
      %149 = vadd.xlane.f32.xlu0 %v148
      %v150 = vpop.xlane.xlu0 %149
      %v151 = vsel %vm127, %v147, 0.0
      %152 = vadd.xlane.f32.xlu0 %v151
      %v153 = vpop.xlane.xlu0 %152
      %v154 = vrcp.pop 32.0
      %v155 = vmul.f32 %v150, %v154
      %v156 = vmul.f32 %v153, %v154
      %v157 = vsub.f32 %v146, %v155
      %v158 = vsub.f32 %v147, %v156
      %v159 = vmul.f32 %v157, %v157
      %v160 = vmul.f32 %v158, %v158
      %v161 = vsel %vm127, %v159, 0.0
      %162 = vadd.xlane.f32.xlu0 %v161
      %v163 = vpop.xlane.xlu0 %162
      %v164 = vsel %vm127, %v160, 0.0
      %165 = vadd.xlane.f32.xlu0 %v164
      %v166 = vpop.xlane.xlu0 %165
      %v167 = vmul.f32 %v163, %v154
      %v168 = vmul.f32 %v166, %v154
      %v169 = vadd.f32 %v167, 1e-05
      %v170 = vadd.f32 %v168, 1e-05
      %v171 = vrsqrt.pop %v169
      %v172 = vrsqrt.pop %v170
      %v173 = vmul.f32 %v157, %v171
      %v174 = vmul.f32 %v158, %v172
      %v175 = vld [vmem:[%s4] sm:$0x1]
      %v177 = vlaneseq
      %v178 = vshrl.u32 %v177, 7
      %v179 = vsub.s32 0, %v178
      %v180 = vrot.slane %v175, %v179
      %v182 = vmul.f32 %v173, %v180
      %v183 = vmul.f32 %v174, %v180
      %v184 = vld [vmem:[%s5] sm:$0x1]
      %v186 = vlaneseq
      %v187 = vshrl.u32 %v186, 7
      %v188 = vsub.s32 0, %v187
      %v189 = vrot.slane %v184, %v188
      %v191 = vadd.f32 %v182, %v189
      %v192 = vadd.f32 %v183, %v189
      %193 = vst.msk [vmem:[#allocation3] sm:$0xff] %vm127, %v191
      %194 = vst.msk [vmem:[#allocation3 + $0x8] sm:$0xff] %vm127, %v192
    $region33: #{transformer_encoder_forward.21} parent=1 // pred_fallthru
      _
    // Predicated region
    $region34: #{transformer_encoder_forward.21} parent=1 // pred_check
      _
    $region35: #{transformer_encoder_forward.21} parent=1 // pred_check_branch
      %196 = sbr.rel (0) target = $region37
    $region36: #{transformer_encoder_forward.21} parent=1 // pred_region
      %s198 = ssub.s32 256, 256
      %199 = vsyncadd [#allocation4], %s198
      %s200 = sshll.u32 [#allocation3], 4
      %s201 = int_to_ptr.vmem [resolvable:$true] %s200
      %206 = dma.vmem_to_hbm [thread:$0]  %s201, 256, %s6, [#allocation4], 128, 128, 8
    $region37: #{transformer_encoder_forward.21} parent=1 // pred_fallthru
      _
    // Predicated region
    $region38: #{transformer_encoder_forward.21} parent=1 // pred_check
      _
    $region39: #{transformer_encoder_forward.21} parent=1 // pred_check_branch
      %208 = sbr.rel (0) target = $region41
    $region40: #{transformer_encoder_forward.21} parent=1 // pred_region
      %209 = dma.done [#allocation4], 256
    $region41: #{transformer_encoder_forward.21} parent=1 // pred_fallthru
      _
    %210 = vsyncpa [#allocation4], 1

</llo_original>
